<compile_context>
chip_gen: v5e
topology: v5e:2x2
jax: 0.10.0
libtpu: 0.0.40
codegen_flags: <defaults>
</compile_context>

<pallas_src>
import functools

import jax
import jax.numpy as jnp
import numpy as np
from jax.experimental import pallas as pl
from jax.experimental.pallas import tpu as pltpu

INPUT_SIZE = 3 * 384      # 1152
HIDDEN_SIZE = 54
HIDDEN_PAD = 64           # padded gate width (lane-friendly)
NUM_LAYERS = 3
N_CLASSES = 5             # config.n_classes for this synthetic run


# ----------------------------- Pallas kernel ------------------------------- #

def lstm_fused_kernel(x_ref,
                      wih0_ref, whh0_ref, b0_ref,
                      w1_ref, b1_ref,
                      w2_ref, b2_ref,
                      fcw_ref, fcb_ref,
                      out_ref,
                      *, seq_len, batch, hidden_pad):
    """Fused 3-layer LSTM (wavefront-scheduled) + FC head.

    x_ref   : (T*Bp, D)   time-major rows (row = t*Bp + b), bf16
    wih0    : (D, 4Hp)    layer-0 input weights, gate order (i,f,o,g), bf16
    whh0    : (Hp, 4Hp)   layer-0 recurrent weights, f32
    w1, w2  : (2Hp, 4Hp)  fused [W_ih; W_hh] for layers 1/2, f32
    b*      : (1, 4Hp)    combined bias (b_ih + b_hh), f32
    fcw     : (Hp, C), fcb: (1, C)
    out_ref : (Bp, C)     logits, f32
    """
    T, Bp, Hp = seq_len, batch, hidden_pad

    # ---- Layer 0 input projection hoisted out of the recurrence:
    # one bf16 MXU matmul over all timesteps & gates, bias folded in.
    g0 = jnp.dot(x_ref[...], wih0_ref[...],
                 preferred_element_type=jnp.float32) + b0_ref[...]      # (T*Bp, 4Hp)

    whh0 = whh0_ref[...]
    w1, b1 = w1_ref[...], b1_ref[...]
    w2, b2 = w2_ref[...], b2_ref[...]

    def cell(z, c):
        # Gate order (i, f, o, g): one sigmoid over the 3 sigmoid gates,
        # one tanh over g. Padded lanes (54:64 of each gate) stay exactly 0.
        sg = jax.nn.sigmoid(z[:, :3 * Hp])
        g_t = jnp.tanh(z[:, 3 * Hp:])
        i_g = sg[:, 0:Hp]
        f_g = sg[:, Hp:2 * Hp]
        o_g = sg[:, 2 * Hp:3 * Hp]
        c_new = f_g * c + i_g * g_t
        h_new = o_g * jnp.tanh(c_new)
        return h_new, c_new

    zero = jnp.zeros((Bp, Hp), jnp.float32)
    h0, c0 = zero, zero
    h1, c1 = zero, zero
    h2, c2 = zero, zero

    # ---- Wavefront over the three layers. Statically unrolled (T+2 = 10 steps).
    # Within a step, the three cell updates only read *pre-commit* state, so
    # they are mutually independent and the LLO scheduler can overlap them.
    # TODO(synk): switch to lax.fori_loop / a grid axis if T grows large.
    for s in range(T + 2):
        upd0 = upd1 = upd2 = None
        if s <= T - 1:                                       # layer 0, t = s
            z0 = g0[s * Bp:(s + 1) * Bp, :] + jnp.dot(
                h0, whh0, preferred_element_type=jnp.float32)
            upd0 = cell(z0, c0)
        if 1 <= s <= T:                                      # layer 1, t = s-1
            z1 = jnp.dot(jnp.concatenate([h0, h1], axis=1), w1,
                         preferred_element_type=jnp.float32) + b1
            upd1 = cell(z1, c1)
        if 2 <= s <= T + 1:                                  # layer 2, t = s-2
            z2 = jnp.dot(jnp.concatenate([h1, h2], axis=1), w2,
                         preferred_element_type=jnp.float32) + b2
            upd2 = cell(z2, c2)
        if upd0 is not None:
            h0, c0 = upd0
        if upd1 is not None:
            h1, c1 = upd1
        if upd2 is not None:
            h2, c2 = upd2

    # ---- FC head fused in:  fc(out[:, -1, :])  (h2 = top-layer h at t = T-1)
    out_ref[...] = (jnp.dot(h2, fcw_ref[...], preferred_element_type=jnp.float32)
                    + fcb_ref[...]).astype(out_ref.dtype)


# ------------------------------ JAX wrapper -------------------------------- #

@jax.jit
def lstm_forward(x_btd, kp):
    # x_btd: (B, T, D) batch_first, matching nn.LSTM(batch_first=True)
    B, T, D = x_btd.shape
    Bp = ((B + 7) // 8) * 8                      # pad batch to 8 sublanes
    x = x_btd.astype(jnp.bfloat16)
    if Bp != B:
        x = jnp.pad(x, ((0, Bp - B), (0, 0), (0, 0)))
    # Time-major layout so each timestep is a contiguous, aligned row block.
    x_tm = jnp.transpose(x, (1, 0, 2)).reshape(T * Bp, D)

    vmem = pl.BlockSpec(memory_space=pltpu.MemorySpace.VMEM)
    out = pl.pallas_call(
        functools.partial(lstm_fused_kernel,
                          seq_len=T, batch=Bp, hidden_pad=HIDDEN_PAD),
        out_shape=jax.ShapeDtypeStruct((Bp, N_CLASSES), jnp.float32),
        in_specs=[vmem] * 10,
        out_specs=vmem,
        # Whole working set (~0.7 MiB) is VMEM-resident; 32 MiB is within the
        # scoped limit on v5e/v6e and the physical 64 MiB on v7x.
        compiler_params=pltpu.CompilerParams(vmem_limit_bytes=32 * 1024 * 1024),
    )(x_tm,
      kp["wih0"], kp["whh0"], kp["b0"],
      kp["w1"], kp["b1"], kp["w2"], kp["b2"],
      kp["fcw"], kp["fcb"])
    return out[:B]


# --------------------------- parameter construction ------------------------ #

def _pack_gates_cols(w, hidden, hidden_pad):
    """(d, 4H) in PyTorch gate order (i,f,g,o) -> (d, 4Hp) in order (i,f,o,g),
    each gate block zero-padded from H to Hp columns."""
    H, Hp = hidden, hidden_pad
    blocks = [w[:, 0:H], w[:, H:2 * H], w[:, 3 * H:4 * H], w[:, 2 * H:3 * H]]  # i,f,o,g
    return jnp.concatenate(
        [jnp.pad(b, ((0, 0), (0, Hp - H))) for b in blocks], axis=1)


def _pad_rows(w, rows_pad):
    return jnp.pad(w, ((0, rows_pad - w.shape[0]), (0, 0)))


def init_params(key):
    """Deterministic synthetic weights with nn.LSTM / nn.Linear shapes & init range.

    Returns (kernel_params, reference_params):
      kernel_params: packed (i,f,o,g) gate order, gates padded 54->64, layer-0
        input weights in bf16, layers 1/2 stored as fused [W_ih; W_hh] (2Hp,4Hp),
        biases pre-combined (b_ih + b_hh).
      reference_params: plain f32 weights in PyTorch layout for the pure-JAX check.
    """
    H, Hp, G = HIDDEN_SIZE, HIDDEN_PAD, 4 * HIDDEN_SIZE
    k = 1.0 / np.sqrt(H)
    ref = {"lstm": []}
    packed = []
    for layer in range(NUM_LAYERS):
        d_in = INPUT_SIZE if layer == 0 else H
        key, k1, k2, k3, k4 = jax.random.split(key, 5)
        wih = jax.random.uniform(k1, (d_in, G), jnp.float32, -k, k)   # cols: i|f|g|o
        whh = jax.random.uniform(k2, (H, G), jnp.float32, -k, k)
        b = (jax.random.uniform(k3, (1, G), jnp.float32, -k, k)
             + jax.random.uniform(k4, (1, G), jnp.float32, -k, k))
        ref["lstm"].append((wih, whh, b))
        packed.append((_pack_gates_cols(wih, H, Hp),
                       _pad_rows(_pack_gates_cols(whh, H, Hp), Hp),
                       _pack_gates_cols(b, H, Hp)))
    key, k1, k2 = jax.random.split(key, 3)
    fcw = jax.random.uniform(k1, (H, N_CLASSES), jnp.float32, -k, k)
    fcb = jax.random.uniform(k2, (1, N_CLASSES), jnp.float32, -k, k)
    ref["fc_w"], ref["fc_b"] = fcw, fcb

    wih0_p, whh0_p, b0_p = packed[0]
    kern = {
        "wih0": wih0_p.astype(jnp.bfloat16),   # big weight -> bf16 (f32 accumulate)
        "whh0": whh0_p,
        "b0": b0_p,
        "fcw": _pad_rows(fcw, Hp),
        "fcb": fcb,
    }
    for name, (wih_p, whh_p, b_p) in zip(("1", "2"), packed[1:]):
        # Fused [W_ih; W_hh]: rows 0:Hp multiply h_below, rows Hp:2Hp multiply h_prev.
        kern["w" + name] = jnp.concatenate([_pad_rows(wih_p, Hp), whh_p], axis=0)
        kern["b" + name] = b_p
    return kern, ref


# ------------------------------ pure-JAX reference ------------------------- #

def reference_forward(x_btd, params):
    h_seq = jnp.transpose(x_btd, (1, 0, 2)).astype(jnp.float32)   # (T, B, D)
    H = HIDDEN_SIZE
    for layer in range(NUM_LAYERS):
        wih, whh, b = params["lstm"][layer]
        B = h_seq.shape[1]

        def step(carry, x_t, wih=wih, whh=whh, b=b):
            h, c = carry
            z = x_t @ wih + h @ whh + b                      # (B, 4H), order i,f,g,o
            i_g = jax.nn.sigmoid(z[:, 0:H])
            f_g = jax.nn.sigmoid(z[:, H:2 * H])
            g_g = jnp.tanh(z[:, 2 * H:3 * H])
            o_g = jax.nn.sigmoid(z[:, 3 * H:4 * H])
            c_new = f_g * c + i_g * g_g
            h_new = o_g * jnp.tanh(c_new)
            return (h_new, c_new), h_new

        init = (jnp.zeros((B, H), jnp.float32), jnp.zeros((B, H), jnp.float32))
        _, h_seq = jax.lax.scan(step, init, h_seq)
    return h_seq[-1] @ params["fc_w"] + params["fc_b"]


# ----------------------------------- main ----------------------------------- #

if __name__ == "__main__":
    key = jax.random.PRNGKey(0)
    key, pkey, xkey = jax.random.split(key, 3)

    kern_params, ref_params = init_params(pkey)

    B, T = 2, 8
    x = jax.random.normal(xkey, (B, T, INPUT_SIZE), jnp.float32)   # (batch, seq, 3*384)

    out = jax.block_until_ready(lstm_forward(x, kern_params))
    assert out.shape == (B, N_CLASSES), out.shape

    ref = jax.block_until_ready(reference_forward(x, ref_params))
    # Tolerance loosened (bf16 layer-0 input projection, f32 everywhere else).
    np.testing.assert_allclose(np.asarray(out), np.asarray(ref), rtol=1e-2, atol=1e-2)

    print("KERNEL_OK")
</pallas_src>

<mosaic_0001>
module attributes {stable_mosaic.version = 11 : i64} {
  func.func @lstm_fused_kernel(%arg0: memref<64x1152xbf16, #tpu.memory_space<vmem>>, %arg1: memref<1152x256xbf16, #tpu.memory_space<vmem>>, %arg2: memref<64x256xf32, #tpu.memory_space<vmem>>, %arg3: memref<1x256xf32, #tpu.memory_space<vmem>>, %arg4: memref<128x256xf32, #tpu.memory_space<vmem>>, %arg5: memref<1x256xf32, #tpu.memory_space<vmem>>, %arg6: memref<128x256xf32, #tpu.memory_space<vmem>>, %arg7: memref<1x256xf32, #tpu.memory_space<vmem>>, %arg8: memref<64x5xf32, #tpu.memory_space<vmem>>, %arg9: memref<1x5xf32, #tpu.memory_space<vmem>>, %arg10: memref<8x5xf32, #tpu.memory_space<vmem>>) attributes {dimension_semantics = [], scalar_prefetch = 0 : i64, scratch_operands = 0 : i64, tpu.core_type = #tpu.core_type<tc>} {
    %c0 = arith.constant 0 : index
    %c0_0 = arith.constant 0 : index
    %0 = vector.load %arg0[%c0, %c0_0] : memref<64x1152xbf16, #tpu.memory_space<vmem>>, vector<64x1152xbf16>
    %c0_1 = arith.constant 0 : index
    %c0_2 = arith.constant 0 : index
    %1 = vector.load %arg1[%c0_1, %c0_2] : memref<1152x256xbf16, #tpu.memory_space<vmem>>, vector<1152x256xbf16>
    %cst = arith.constant dense<0.000000e+00> : vector<64x256xf32>
    %2 = tpu.matmul %0, %1, %cst {dimension_numbers = #tpu.dot_dimension_numbers<[1], [0], [0], [1], [0, 0, 1, 1], [], []>} : vector<64x1152xbf16>, vector<1152x256xbf16>, vector<64x256xf32> -> vector<64x256xf32>
    %c0_3 = arith.constant 0 : index
    %c0_4 = arith.constant 0 : index
    %3 = vector.load %arg3[%c0_3, %c0_4] : memref<1x256xf32, #tpu.memory_space<vmem>>, vector<1x256xf32>
    %4 = vector.broadcast %3 : vector<1x256xf32> to vector<64x256xf32>
    %5 = arith.addf %2, %4 : vector<64x256xf32>
    %c0_5 = arith.constant 0 : index
    %c0_6 = arith.constant 0 : index
    %6 = vector.load %arg2[%c0_5, %c0_6] : memref<64x256xf32, #tpu.memory_space<vmem>>, vector<64x256xf32>
    %c0_7 = arith.constant 0 : index
    %c0_8 = arith.constant 0 : index
    %7 = vector.load %arg4[%c0_7, %c0_8] : memref<128x256xf32, #tpu.memory_space<vmem>>, vector<128x256xf32>
    %c0_9 = arith.constant 0 : index
    %c0_10 = arith.constant 0 : index
    %8 = vector.load %arg5[%c0_9, %c0_10] : memref<1x256xf32, #tpu.memory_space<vmem>>, vector<1x256xf32>
    %c0_11 = arith.constant 0 : index
    %c0_12 = arith.constant 0 : index
    %9 = vector.load %arg6[%c0_11, %c0_12] : memref<128x256xf32, #tpu.memory_space<vmem>>, vector<128x256xf32>
    %c0_13 = arith.constant 0 : index
    %c0_14 = arith.constant 0 : index
    %10 = vector.load %arg7[%c0_13, %c0_14] : memref<1x256xf32, #tpu.memory_space<vmem>>, vector<1x256xf32>
    %cst_15 = arith.constant 0.000000e+00 : f32
    %11 = vector.broadcast %cst_15 : f32 to vector<8x64xf32>
    %12 = vector.extract_strided_slice %5 {offsets = [0, 0], sizes = [8, 256], strides = [1, 1]} : vector<64x256xf32> to vector<8x256xf32>
    %cst_16 = arith.constant dense<0.000000e+00> : vector<8x256xf32>
    %13 = tpu.matmul %11, %6, %cst_16 {dimension_numbers = #tpu.dot_dimension_numbers<[1], [0], [0], [1], [0, 0, 1, 1], [], []>} : vector<8x64xf32>, vector<64x256xf32>, vector<8x256xf32> -> vector<8x256xf32>
    %14 = arith.addf %12, %13 : vector<8x256xf32>
    %15 = vector.extract_strided_slice %14 {offsets = [0, 0], sizes = [8, 192], strides = [1, 1]} : vector<8x256xf32> to vector<8x192xf32>
    %16 = arith.negf %15 : vector<8x192xf32>
    %17 = math.exp %16 : vector<8x192xf32>
    %cst_17 = arith.constant 1.000000e+00 : f32
    %18 = vector.broadcast %cst_17 : f32 to vector<8x192xf32>
    %19 = arith.addf %18, %17 : vector<8x192xf32>
    %20 = arith.divf %18, %19 : vector<8x192xf32>
    %21 = vector.extract_strided_slice %14 {offsets = [0, 192], sizes = [8, 64], strides = [1, 1]} : vector<8x256xf32> to vector<8x64xf32>
    %22 = math.tanh %21 : vector<8x64xf32>
    %23 = vector.extract_strided_slice %20 {offsets = [0, 0], sizes = [8, 64], strides = [1, 1]} : vector<8x192xf32> to vector<8x64xf32>
    %24 = vector.extract_strided_slice %20 {offsets = [0, 64], sizes = [8, 64], strides = [1, 1]} : vector<8x192xf32> to vector<8x64xf32>
    %25 = vector.extract_strided_slice %20 {offsets = [0, 128], sizes = [8, 64], strides = [1, 1]} : vector<8x192xf32> to vector<8x64xf32>
    %26 = arith.mulf %24, %11 : vector<8x64xf32>
    %27 = arith.mulf %23, %22 : vector<8x64xf32>
    %28 = arith.addf %26, %27 : vector<8x64xf32>
    %29 = math.tanh %28 : vector<8x64xf32>
    %30 = arith.mulf %25, %29 : vector<8x64xf32>
    %31 = vector.extract_strided_slice %5 {offsets = [8, 0], sizes = [8, 256], strides = [1, 1]} : vector<64x256xf32> to vector<8x256xf32>
    %cst_18 = arith.constant dense<0.000000e+00> : vector<8x256xf32>
    %32 = tpu.matmul %30, %6, %cst_18 {dimension_numbers = #tpu.dot_dimension_numbers<[1], [0], [0], [1], [0, 0, 1, 1], [], []>} : vector<8x64xf32>, vector<64x256xf32>, vector<8x256xf32> -> vector<8x256xf32>
    %33 = arith.addf %31, %32 : vector<8x256xf32>
    %34 = vector.extract_strided_slice %33 {offsets = [0, 0], sizes = [8, 192], strides = [1, 1]} : vector<8x256xf32> to vector<8x192xf32>
    %35 = arith.negf %34 : vector<8x192xf32>
    %36 = math.exp %35 : vector<8x192xf32>
    %cst_19 = arith.constant 1.000000e+00 : f32
    %37 = vector.broadcast %cst_19 : f32 to vector<8x192xf32>
    %38 = arith.addf %37, %36 : vector<8x192xf32>
    %39 = arith.divf %37, %38 : vector<8x192xf32>
    %40 = vector.extract_strided_slice %33 {offsets = [0, 192], sizes = [8, 64], strides = [1, 1]} : vector<8x256xf32> to vector<8x64xf32>
    %41 = math.tanh %40 : vector<8x64xf32>
    %42 = vector.extract_strided_slice %39 {offsets = [0, 0], sizes = [8, 64], strides = [1, 1]} : vector<8x192xf32> to vector<8x64xf32>
    %43 = vector.extract_strided_slice %39 {offsets = [0, 64], sizes = [8, 64], strides = [1, 1]} : vector<8x192xf32> to vector<8x64xf32>
    %44 = vector.extract_strided_slice %39 {offsets = [0, 128], sizes = [8, 64], strides = [1, 1]} : vector<8x192xf32> to vector<8x64xf32>
    %45 = arith.mulf %43, %28 : vector<8x64xf32>
    %46 = arith.mulf %42, %41 : vector<8x64xf32>
    %47 = arith.addf %45, %46 : vector<8x64xf32>
    %48 = math.tanh %47 : vector<8x64xf32>
    %49 = arith.mulf %44, %48 : vector<8x64xf32>
    %50 = tpu.concatenate %30, %11 in 1 : vector<8x64xf32>, vector<8x64xf32> -> vector<8x128xf32>
    %cst_20 = arith.constant dense<0.000000e+00> : vector<8x256xf32>
    %51 = tpu.matmul %50, %7, %cst_20 {dimension_numbers = #tpu.dot_dimension_numbers<[1], [0], [0], [1], [0, 0, 1, 1], [], []>} : vector<8x128xf32>, vector<128x256xf32>, vector<8x256xf32> -> vector<8x256xf32>
    %52 = vector.broadcast %8 : vector<1x256xf32> to vector<8x256xf32>
    %53 = arith.addf %51, %52 : vector<8x256xf32>
    %54 = vector.extract_strided_slice %53 {offsets = [0, 0], sizes = [8, 192], strides = [1, 1]} : vector<8x256xf32> to vector<8x192xf32>
    %55 = arith.negf %54 : vector<8x192xf32>
    %56 = math.exp %55 : vector<8x192xf32>
    %cst_21 = arith.constant 1.000000e+00 : f32
    %57 = vector.broadcast %cst_21 : f32 to vector<8x192xf32>
    %58 = arith.addf %57, %56 : vector<8x192xf32>
    %59 = arith.divf %57, %58 : vector<8x192xf32>
    %60 = vector.extract_strided_slice %53 {offsets = [0, 192], sizes = [8, 64], strides = [1, 1]} : vector<8x256xf32> to vector<8x64xf32>
    %61 = math.tanh %60 : vector<8x64xf32>
    %62 = vector.extract_strided_slice %59 {offsets = [0, 0], sizes = [8, 64], strides = [1, 1]} : vector<8x192xf32> to vector<8x64xf32>
    %63 = vector.extract_strided_slice %59 {offsets = [0, 64], sizes = [8, 64], strides = [1, 1]} : vector<8x192xf32> to vector<8x64xf32>
    %64 = vector.extract_strided_slice %59 {offsets = [0, 128], sizes = [8, 64], strides = [1, 1]} : vector<8x192xf32> to vector<8x64xf32>
    %65 = arith.mulf %63, %11 : vector<8x64xf32>
    %66 = arith.mulf %62, %61 : vector<8x64xf32>
    %67 = arith.addf %65, %66 : vector<8x64xf32>
    %68 = math.tanh %67 : vector<8x64xf32>
    %69 = arith.mulf %64, %68 : vector<8x64xf32>
    %70 = vector.extract_strided_slice %5 {offsets = [16, 0], sizes = [8, 256], strides = [1, 1]} : vector<64x256xf32> to vector<8x256xf32>
    %cst_22 = arith.constant dense<0.000000e+00> : vector<8x256xf32>
    %71 = tpu.matmul %49, %6, %cst_22 {dimension_numbers = #tpu.dot_dimension_numbers<[1], [0], [0], [1], [0, 0, 1, 1], [], []>} : vector<8x64xf32>, vector<64x256xf32>, vector<8x256xf32> -> vector<8x256xf32>
    %72 = arith.addf %70, %71 : vector<8x256xf32>
    %73 = vector.extract_strided_slice %72 {offsets = [0, 0], sizes = [8, 192], strides = [1, 1]} : vector<8x256xf32> to vector<8x192xf32>
    %74 = arith.negf %73 : vector<8x192xf32>
    %75 = math.exp %74 : vector<8x192xf32>
    %cst_23 = arith.constant 1.000000e+00 : f32
    %76 = vector.broadcast %cst_23 : f32 to vector<8x192xf32>
    %77 = arith.addf %76, %75 : vector<8x192xf32>
    %78 = arith.divf %76, %77 : vector<8x192xf32>
    %79 = vector.extract_strided_slice %72 {offsets = [0, 192], sizes = [8, 64], strides = [1, 1]} : vector<8x256xf32> to vector<8x64xf32>
    %80 = math.tanh %79 : vector<8x64xf32>
    %81 = vector.extract_strided_slice %78 {offsets = [0, 0], sizes = [8, 64], strides = [1, 1]} : vector<8x192xf32> to vector<8x64xf32>
    %82 = vector.extract_strided_slice %78 {offsets = [0, 64], sizes = [8, 64], strides = [1, 1]} : vector<8x192xf32> to vector<8x64xf32>
    %83 = vector.extract_strided_slice %78 {offsets = [0, 128], sizes = [8, 64], strides = [1, 1]} : vector<8x192xf32> to vector<8x64xf32>
    %84 = arith.mulf %82, %47 : vector<8x64xf32>
    %85 = arith.mulf %81, %80 : vector<8x64xf32>
    %86 = arith.addf %84, %85 : vector<8x64xf32>
    %87 = math.tanh %86 : vector<8x64xf32>
    %88 = arith.mulf %83, %87 : vector<8x64xf32>
    %89 = tpu.concatenate %49, %69 in 1 : vector<8x64xf32>, vector<8x64xf32> -> vector<8x128xf32>
    %cst_24 = arith.constant dense<0.000000e+00> : vector<8x256xf32>
    %90 = tpu.matmul %89, %7, %cst_24 {dimension_numbers = #tpu.dot_dimension_numbers<[1], [0], [0], [1], [0, 0, 1, 1], [], []>} : vector<8x128xf32>, vector<128x256xf32>, vector<8x256xf32> -> vector<8x256xf32>
    %91 = vector.broadcast %8 : vector<1x256xf32> to vector<8x256xf32>
    %92 = arith.addf %90, %91 : vector<8x256xf32>
    %93 = vector.extract_strided_slice %92 {offsets = [0, 0], sizes = [8, 192], strides = [1, 1]} : vector<8x256xf32> to vector<8x192xf32>
    %94 = arith.negf %93 : vector<8x192xf32>
    %95 = math.exp %94 : vector<8x192xf32>
    %cst_25 = arith.constant 1.000000e+00 : f32
    %96 = vector.broadcast %cst_25 : f32 to vector<8x192xf32>
    %97 = arith.addf %96, %95 : vector<8x192xf32>
    %98 = arith.divf %96, %97 : vector<8x192xf32>
    %99 = vector.extract_strided_slice %92 {offsets = [0, 192], sizes = [8, 64], strides = [1, 1]} : vector<8x256xf32> to vector<8x64xf32>
    %100 = math.tanh %99 : vector<8x64xf32>
    %101 = vector.extract_strided_slice %98 {offsets = [0, 0], sizes = [8, 64], strides = [1, 1]} : vector<8x192xf32> to vector<8x64xf32>
    %102 = vector.extract_strided_slice %98 {offsets = [0, 64], sizes = [8, 64], strides = [1, 1]} : vector<8x192xf32> to vector<8x64xf32>
    %103 = vector.extract_strided_slice %98 {offsets = [0, 128], sizes = [8, 64], strides = [1, 1]} : vector<8x192xf32> to vector<8x64xf32>
    %104 = arith.mulf %102, %67 : vector<8x64xf32>
    %105 = arith.mulf %101, %100 : vector<8x64xf32>
    %106 = arith.addf %104, %105 : vector<8x64xf32>
    %107 = math.tanh %106 : vector<8x64xf32>
    %108 = arith.mulf %103, %107 : vector<8x64xf32>
    %109 = tpu.concatenate %69, %11 in 1 : vector<8x64xf32>, vector<8x64xf32> -> vector<8x128xf32>
    %cst_26 = arith.constant dense<0.000000e+00> : vector<8x256xf32>
    %110 = tpu.matmul %109, %9, %cst_26 {dimension_numbers = #tpu.dot_dimension_numbers<[1], [0], [0], [1], [0, 0, 1, 1], [], []>} : vector<8x128xf32>, vector<128x256xf32>, vector<8x256xf32> -> vector<8x256xf32>
    %111 = vector.broadcast %10 : vector<1x256xf32> to vector<8x256xf32>
    %112 = arith.addf %110, %111 : vector<8x256xf32>
    %113 = vector.extract_strided_slice %112 {offsets = [0, 0], sizes = [8, 192], strides = [1, 1]} : vector<8x256xf32> to vector<8x192xf32>
    %114 = arith.negf %113 : vector<8x192xf32>
    %115 = math.exp %114 : vector<8x192xf32>
    %cst_27 = arith.constant 1.000000e+00 : f32
    %116 = vector.broadcast %cst_27 : f32 to vector<8x192xf32>
    %117 = arith.addf %116, %115 : vector<8x192xf32>
    %118 = arith.divf %116, %117 : vector<8x192xf32>
    %119 = vector.extract_strided_slice %112 {offsets = [0, 192], sizes = [8, 64], strides = [1, 1]} : vector<8x256xf32> to vector<8x64xf32>
    %120 = math.tanh %119 : vector<8x64xf32>
    %121 = vector.extract_strided_slice %118 {offsets = [0, 0], sizes = [8, 64], strides = [1, 1]} : vector<8x192xf32> to vector<8x64xf32>
    %122 = vector.extract_strided_slice %118 {offsets = [0, 64], sizes = [8, 64], strides = [1, 1]} : vector<8x192xf32> to vector<8x64xf32>
    %123 = vector.extract_strided_slice %118 {offsets = [0, 128], sizes = [8, 64], strides = [1, 1]} : vector<8x192xf32> to vector<8x64xf32>
    %124 = arith.mulf %122, %11 : vector<8x64xf32>
    %125 = arith.mulf %121, %120 : vector<8x64xf32>
    %126 = arith.addf %124, %125 : vector<8x64xf32>
    %127 = math.tanh %126 : vector<8x64xf32>
    %128 = arith.mulf %123, %127 : vector<8x64xf32>
    %129 = vector.extract_strided_slice %5 {offsets = [24, 0], sizes = [8, 256], strides = [1, 1]} : vector<64x256xf32> to vector<8x256xf32>
    %cst_28 = arith.constant dense<0.000000e+00> : vector<8x256xf32>
    %130 = tpu.matmul %88, %6, %cst_28 {dimension_numbers = #tpu.dot_dimension_numbers<[1], [0], [0], [1], [0, 0, 1, 1], [], []>} : vector<8x64xf32>, vector<64x256xf32>, vector<8x256xf32> -> vector<8x256xf32>
    %131 = arith.addf %129, %130 : vector<8x256xf32>
    %132 = vector.extract_strided_slice %131 {offsets = [0, 0], sizes = [8, 192], strides = [1, 1]} : vector<8x256xf32> to vector<8x192xf32>
    %133 = arith.negf %132 : vector<8x192xf32>
    %134 = math.exp %133 : vector<8x192xf32>
    %cst_29 = arith.constant 1.000000e+00 : f32
    %135 = vector.broadcast %cst_29 : f32 to vector<8x192xf32>
    %136 = arith.addf %135, %134 : vector<8x192xf32>
    %137 = arith.divf %135, %136 : vector<8x192xf32>
    %138 = vector.extract_strided_slice %131 {offsets = [0, 192], sizes = [8, 64], strides = [1, 1]} : vector<8x256xf32> to vector<8x64xf32>
    %139 = math.tanh %138 : vector<8x64xf32>
    %140 = vector.extract_strided_slice %137 {offsets = [0, 0], sizes = [8, 64], strides = [1, 1]} : vector<8x192xf32> to vector<8x64xf32>
    %141 = vector.extract_strided_slice %137 {offsets = [0, 64], sizes = [8, 64], strides = [1, 1]} : vector<8x192xf32> to vector<8x64xf32>
    %142 = vector.extract_strided_slice %137 {offsets = [0, 128], sizes = [8, 64], strides = [1, 1]} : vector<8x192xf32> to vector<8x64xf32>
    %143 = arith.mulf %141, %86 : vector<8x64xf32>
    %144 = arith.mulf %140, %139 : vector<8x64xf32>
    %145 = arith.addf %143, %144 : vector<8x64xf32>
    %146 = math.tanh %145 : vector<8x64xf32>
    %147 = arith.mulf %142, %146 : vector<8x64xf32>
    %148 = tpu.concatenate %88, %108 in 1 : vector<8x64xf32>, vector<8x64xf32> -> vector<8x128xf32>
    %cst_30 = arith.constant dense<0.000000e+00> : vector<8x256xf32>
    %149 = tpu.matmul %148, %7, %cst_30 {dimension_numbers = #tpu.dot_dimension_numbers<[1], [0], [0], [1], [0, 0, 1, 1], [], []>} : vector<8x128xf32>, vector<128x256xf32>, vector<8x256xf32> -> vector<8x256xf32>
    %150 = vector.broadcast %8 : vector<1x256xf32> to vector<8x256xf32>
    %151 = arith.addf %149, %150 : vector<8x256xf32>
    %152 = vector.extract_strided_slice %151 {offsets = [0, 0], sizes = [8, 192], strides = [1, 1]} : vector<8x256xf32> to vector<8x192xf32>
    %153 = arith.negf %152 : vector<8x192xf32>
    %154 = math.exp %153 : vector<8x192xf32>
    %cst_31 = arith.constant 1.000000e+00 : f32
    %155 = vector.broadcast %cst_31 : f32 to vector<8x192xf32>
    %156 = arith.addf %155, %154 : vector<8x192xf32>
    %157 = arith.divf %155, %156 : vector<8x192xf32>
    %158 = vector.extract_strided_slice %151 {offsets = [0, 192], sizes = [8, 64], strides = [1, 1]} : vector<8x256xf32> to vector<8x64xf32>
    %159 = math.tanh %158 : vector<8x64xf32>
    %160 = vector.extract_strided_slice %157 {offsets = [0, 0], sizes = [8, 64], strides = [1, 1]} : vector<8x192xf32> to vector<8x64xf32>
    %161 = vector.extract_strided_slice %157 {offsets = [0, 64], sizes = [8, 64], strides = [1, 1]} : vector<8x192xf32> to vector<8x64xf32>
    %162 = vector.extract_strided_slice %157 {offsets = [0, 128], sizes = [8, 64], strides = [1, 1]} : vector<8x192xf32> to vector<8x64xf32>
    %163 = arith.mulf %161, %106 : vector<8x64xf32>
    %164 = arith.mulf %160, %159 : vector<8x64xf32>
    %165 = arith.addf %163, %164 : vector<8x64xf32>
    %166 = math.tanh %165 : vector<8x64xf32>
    %167 = arith.mulf %162, %166 : vector<8x64xf32>
    %168 = tpu.concatenate %108, %128 in 1 : vector<8x64xf32>, vector<8x64xf32> -> vector<8x128xf32>
    %cst_32 = arith.constant dense<0.000000e+00> : vector<8x256xf32>
    %169 = tpu.matmul %168, %9, %cst_32 {dimension_numbers = #tpu.dot_dimension_numbers<[1], [0], [0], [1], [0, 0, 1, 1], [], []>} : vector<8x128xf32>, vector<128x256xf32>, vector<8x256xf32> -> vector<8x256xf32>
    %170 = vector.broadcast %10 : vector<1x256xf32> to vector<8x256xf32>
    %171 = arith.addf %169, %170 : vector<8x256xf32>
    %172 = vector.extract_strided_slice %171 {offsets = [0, 0], sizes = [8, 192], strides = [1, 1]} : vector<8x256xf32> to vector<8x192xf32>
    %173 = arith.negf %172 : vector<8x192xf32>
    %174 = math.exp %173 : vector<8x192xf32>
    %cst_33 = arith.constant 1.000000e+00 : f32
    %175 = vector.broadcast %cst_33 : f32 to vector<8x192xf32>
    %176 = arith.addf %175, %174 : vector<8x192xf32>
    %177 = arith.divf %175, %176 : vector<8x192xf32>
    %178 = vector.extract_strided_slice %171 {offsets = [0, 192], sizes = [8, 64], strides = [1, 1]} : vector<8x256xf32> to vector<8x64xf32>
    %179 = math.tanh %178 : vector<8x64xf32>
    %180 = vector.extract_strided_slice %177 {offsets = [0, 0], sizes = [8, 64], strides = [1, 1]} : vector<8x192xf32> to vector<8x64xf32>
    %181 = vector.extract_strided_slice %177 {offsets = [0, 64], sizes = [8, 64], strides = [1, 1]} : vector<8x192xf32> to vector<8x64xf32>
    %182 = vector.extract_strided_slice %177 {offsets = [0, 128], sizes = [8, 64], strides = [1, 1]} : vector<8x192xf32> to vector<8x64xf32>
    %183 = arith.mulf %181, %126 : vector<8x64xf32>
    %184 = arith.mulf %180, %179 : vector<8x64xf32>
    %185 = arith.addf %183, %184 : vector<8x64xf32>
    %186 = math.tanh %185 : vector<8x64xf32>
    %187 = arith.mulf %182, %186 : vector<8x64xf32>
    %188 = vector.extract_strided_slice %5 {offsets = [32, 0], sizes = [8, 256], strides = [1, 1]} : vector<64x256xf32> to vector<8x256xf32>
    %cst_34 = arith.constant dense<0.000000e+00> : vector<8x256xf32>
    %189 = tpu.matmul %147, %6, %cst_34 {dimension_numbers = #tpu.dot_dimension_numbers<[1], [0], [0], [1], [0, 0, 1, 1], [], []>} : vector<8x64xf32>, vector<64x256xf32>, vector<8x256xf32> -> vector<8x256xf32>
    %190 = arith.addf %188, %189 : vector<8x256xf32>
    %191 = vector.extract_strided_slice %190 {offsets = [0, 0], sizes = [8, 192], strides = [1, 1]} : vector<8x256xf32> to vector<8x192xf32>
    %192 = arith.negf %191 : vector<8x192xf32>
    %193 = math.exp %192 : vector<8x192xf32>
    %cst_35 = arith.constant 1.000000e+00 : f32
    %194 = vector.broadcast %cst_35 : f32 to vector<8x192xf32>
    %195 = arith.addf %194, %193 : vector<8x192xf32>
    %196 = arith.divf %194, %195 : vector<8x192xf32>
    %197 = vector.extract_strided_slice %190 {offsets = [0, 192], sizes = [8, 64], strides = [1, 1]} : vector<8x256xf32> to vector<8x64xf32>
    %198 = math.tanh %197 : vector<8x64xf32>
    %199 = vector.extract_strided_slice %196 {offsets = [0, 0], sizes = [8, 64], strides = [1, 1]} : vector<8x192xf32> to vector<8x64xf32>
    %200 = vector.extract_strided_slice %196 {offsets = [0, 64], sizes = [8, 64], strides = [1, 1]} : vector<8x192xf32> to vector<8x64xf32>
    %201 = vector.extract_strided_slice %196 {offsets = [0, 128], sizes = [8, 64], strides = [1, 1]} : vector<8x192xf32> to vector<8x64xf32>
    %202 = arith.mulf %200, %145 : vector<8x64xf32>
    %203 = arith.mulf %199, %198 : vector<8x64xf32>
    %204 = arith.addf %202, %203 : vector<8x64xf32>
    %205 = math.tanh %204 : vector<8x64xf32>
    %206 = arith.mulf %201, %205 : vector<8x64xf32>
    %207 = tpu.concatenate %147, %167 in 1 : vector<8x64xf32>, vector<8x64xf32> -> vector<8x128xf32>
    %cst_36 = arith.constant dense<0.000000e+00> : vector<8x256xf32>
    %208 = tpu.matmul %207, %7, %cst_36 {dimension_numbers = #tpu.dot_dimension_numbers<[1], [0], [0], [1], [0, 0, 1, 1], [], []>} : vector<8x128xf32>, vector<128x256xf32>, vector<8x256xf32> -> vector<8x256xf32>
    %209 = vector.broadcast %8 : vector<1x256xf32> to vector<8x256xf32>
    %210 = arith.addf %208, %209 : vector<8x256xf32>
    %211 = vector.extract_strided_slice %210 {offsets = [0, 0], sizes = [8, 192], strides = [1, 1]} : vector<8x256xf32> to vector<8x192xf32>
    %212 = arith.negf %211 : vector<8x192xf32>
    %213 = math.exp %212 : vector<8x192xf32>
    %cst_37 = arith.constant 1.000000e+00 : f32
    %214 = vector.broadcast %cst_37 : f32 to vector<8x192xf32>
    %215 = arith.addf %214, %213 : vector<8x192xf32>
    %216 = arith.divf %214, %215 : vector<8x192xf32>
    %217 = vector.extract_strided_slice %210 {offsets = [0, 192], sizes = [8, 64], strides = [1, 1]} : vector<8x256xf32> to vector<8x64xf32>
    %218 = math.tanh %217 : vector<8x64xf32>
    %219 = vector.extract_strided_slice %216 {offsets = [0, 0], sizes = [8, 64], strides = [1, 1]} : vector<8x192xf32> to vector<8x64xf32>
    %220 = vector.extract_strided_slice %216 {offsets = [0, 64], sizes = [8, 64], strides = [1, 1]} : vector<8x192xf32> to vector<8x64xf32>
    %221 = vector.extract_strided_slice %216 {offsets = [0, 128], sizes = [8, 64], strides = [1, 1]} : vector<8x192xf32> to vector<8x64xf32>
    %222 = arith.mulf %220, %165 : vector<8x64xf32>
    %223 = arith.mulf %219, %218 : vector<8x64xf32>
    %224 = arith.addf %222, %223 : vector<8x64xf32>
    %225 = math.tanh %224 : vector<8x64xf32>
    %226 = arith.mulf %221, %225 : vector<8x64xf32>
    %227 = tpu.concatenate %167, %187 in 1 : vector<8x64xf32>, vector<8x64xf32> -> vector<8x128xf32>
    %cst_38 = arith.constant dense<0.000000e+00> : vector<8x256xf32>
    %228 = tpu.matmul %227, %9, %cst_38 {dimension_numbers = #tpu.dot_dimension_numbers<[1], [0], [0], [1], [0, 0, 1, 1], [], []>} : vector<8x128xf32>, vector<128x256xf32>, vector<8x256xf32> -> vector<8x256xf32>
    %229 = vector.broadcast %10 : vector<1x256xf32> to vector<8x256xf32>
    %230 = arith.addf %228, %229 : vector<8x256xf32>
    %231 = vector.extract_strided_slice %230 {offsets = [0, 0], sizes = [8, 192], strides = [1, 1]} : vector<8x256xf32> to vector<8x192xf32>
    %232 = arith.negf %231 : vector<8x192xf32>
    %233 = math.exp %232 : vector<8x192xf32>
    %cst_39 = arith.constant 1.000000e+00 : f32
    %234 = vector.broadcast %cst_39 : f32 to vector<8x192xf32>
    %235 = arith.addf %234, %233 : vector<8x192xf32>
    %236 = arith.divf %234, %235 : vector<8x192xf32>
    %237 = vector.extract_strided_slice %230 {offsets = [0, 192], sizes = [8, 64], strides = [1, 1]} : vector<8x256xf32> to vector<8x64xf32>
    %238 = math.tanh %237 : vector<8x64xf32>
    %239 = vector.extract_strided_slice %236 {offsets = [0, 0], sizes = [8, 64], strides = [1, 1]} : vector<8x192xf32> to vector<8x64xf32>
    %240 = vector.extract_strided_slice %236 {offsets = [0, 64], sizes = [8, 64], strides = [1, 1]} : vector<8x192xf32> to vector<8x64xf32>
    %241 = vector.extract_strided_slice %236 {offsets = [0, 128], sizes = [8, 64], strides = [1, 1]} : vector<8x192xf32> to vector<8x64xf32>
    %242 = arith.mulf %240, %185 : vector<8x64xf32>
    %243 = arith.mulf %239, %238 : vector<8x64xf32>
    %244 = arith.addf %242, %243 : vector<8x64xf32>
    %245 = math.tanh %244 : vector<8x64xf32>
    %246 = arith.mulf %241, %245 : vector<8x64xf32>
    %247 = vector.extract_strided_slice %5 {offsets = [40, 0], sizes = [8, 256], strides = [1, 1]} : vector<64x256xf32> to vector<8x256xf32>
    %cst_40 = arith.constant dense<0.000000e+00> : vector<8x256xf32>
    %248 = tpu.matmul %206, %6, %cst_40 {dimension_numbers = #tpu.dot_dimension_numbers<[1], [0], [0], [1], [0, 0, 1, 1], [], []>} : vector<8x64xf32>, vector<64x256xf32>, vector<8x256xf32> -> vector<8x256xf32>
    %249 = arith.addf %247, %248 : vector<8x256xf32>
    %250 = vector.extract_strided_slice %249 {offsets = [0, 0], sizes = [8, 192], strides = [1, 1]} : vector<8x256xf32> to vector<8x192xf32>
    %251 = arith.negf %250 : vector<8x192xf32>
    %252 = math.exp %251 : vector<8x192xf32>
    %cst_41 = arith.constant 1.000000e+00 : f32
    %253 = vector.broadcast %cst_41 : f32 to vector<8x192xf32>
    %254 = arith.addf %253, %252 : vector<8x192xf32>
    %255 = arith.divf %253, %254 : vector<8x192xf32>
    %256 = vector.extract_strided_slice %249 {offsets = [0, 192], sizes = [8, 64], strides = [1, 1]} : vector<8x256xf32> to vector<8x64xf32>
    %257 = math.tanh %256 : vector<8x64xf32>
    %258 = vector.extract_strided_slice %255 {offsets = [0, 0], sizes = [8, 64], strides = [1, 1]} : vector<8x192xf32> to vector<8x64xf32>
    %259 = vector.extract_strided_slice %255 {offsets = [0, 64], sizes = [8, 64], strides = [1, 1]} : vector<8x192xf32> to vector<8x64xf32>
    %260 = vector.extract_strided_slice %255 {offsets = [0, 128], sizes = [8, 64], strides = [1, 1]} : vector<8x192xf32> to vector<8x64xf32>
    %261 = arith.mulf %259, %204 : vector<8x64xf32>
    %262 = arith.mulf %258, %257 : vector<8x64xf32>
    %263 = arith.addf %261, %262 : vector<8x64xf32>
    %264 = math.tanh %263 : vector<8x64xf32>
    %265 = arith.mulf %260, %264 : vector<8x64xf32>
    %266 = tpu.concatenate %206, %226 in 1 : vector<8x64xf32>, vector<8x64xf32> -> vector<8x128xf32>
    %cst_42 = arith.constant dense<0.000000e+00> : vector<8x256xf32>
    %267 = tpu.matmul %266, %7, %cst_42 {dimension_numbers = #tpu.dot_dimension_numbers<[1], [0], [0], [1], [0, 0, 1, 1], [], []>} : vector<8x128xf32>, vector<128x256xf32>, vector<8x256xf32> -> vector<8x256xf32>
    %268 = vector.broadcast %8 : vector<1x256xf32> to vector<8x256xf32>
    %269 = arith.addf %267, %268 : vector<8x256xf32>
    %270 = vector.extract_strided_slice %269 {offsets = [0, 0], sizes = [8, 192], strides = [1, 1]} : vector<8x256xf32> to vector<8x192xf32>
    %271 = arith.negf %270 : vector<8x192xf32>
    %272 = math.exp %271 : vector<8x192xf32>
    %cst_43 = arith.constant 1.000000e+00 : f32
    %273 = vector.broadcast %cst_43 : f32 to vector<8x192xf32>
    %274 = arith.addf %273, %272 : vector<8x192xf32>
    %275 = arith.divf %273, %274 : vector<8x192xf32>
    %276 = vector.extract_strided_slice %269 {offsets = [0, 192], sizes = [8, 64], strides = [1, 1]} : vector<8x256xf32> to vector<8x64xf32>
    %277 = math.tanh %276 : vector<8x64xf32>
    %278 = vector.extract_strided_slice %275 {offsets = [0, 0], sizes = [8, 64], strides = [1, 1]} : vector<8x192xf32> to vector<8x64xf32>
    %279 = vector.extract_strided_slice %275 {offsets = [0, 64], sizes = [8, 64], strides = [1, 1]} : vector<8x192xf32> to vector<8x64xf32>
    %280 = vector.extract_strided_slice %275 {offsets = [0, 128], sizes = [8, 64], strides = [1, 1]} : vector<8x192xf32> to vector<8x64xf32>
    %281 = arith.mulf %279, %224 : vector<8x64xf32>
    %282 = arith.mulf %278, %277 : vector<8x64xf32>
    %283 = arith.addf %281, %282 : vector<8x64xf32>
    %284 = math.tanh %283 : vector<8x64xf32>
    %285 = arith.mulf %280, %284 : vector<8x64xf32>
    %286 = tpu.concatenate %226, %246 in 1 : vector<8x64xf32>, vector<8x64xf32> -> vector<8x128xf32>
    %cst_44 = arith.constant dense<0.000000e+00> : vector<8x256xf32>
    %287 = tpu.matmul %286, %9, %cst_44 {dimension_numbers = #tpu.dot_dimension_numbers<[1], [0], [0], [1], [0, 0, 1, 1], [], []>} : vector<8x128xf32>, vector<128x256xf32>, vector<8x256xf32> -> vector<8x256xf32>
    %288 = vector.broadcast %10 : vector<1x256xf32> to vector<8x256xf32>
    %289 = arith.addf %287, %288 : vector<8x256xf32>
    %290 = vector.extract_strided_slice %289 {offsets = [0, 0], sizes = [8, 192], strides = [1, 1]} : vector<8x256xf32> to vector<8x192xf32>
    %291 = arith.negf %290 : vector<8x192xf32>
    %292 = math.exp %291 : vector<8x192xf32>
    %cst_45 = arith.constant 1.000000e+00 : f32
    %293 = vector.broadcast %cst_45 : f32 to vector<8x192xf32>
    %294 = arith.addf %293, %292 : vector<8x192xf32>
    %295 = arith.divf %293, %294 : vector<8x192xf32>
    %296 = vector.extract_strided_slice %289 {offsets = [0, 192], sizes = [8, 64], strides = [1, 1]} : vector<8x256xf32> to vector<8x64xf32>
    %297 = math.tanh %296 : vector<8x64xf32>
    %298 = vector.extract_strided_slice %295 {offsets = [0, 0], sizes = [8, 64], strides = [1, 1]} : vector<8x192xf32> to vector<8x64xf32>
    %299 = vector.extract_strided_slice %295 {offsets = [0, 64], sizes = [8, 64], strides = [1, 1]} : vector<8x192xf32> to vector<8x64xf32>
    %300 = vector.extract_strided_slice %295 {offsets = [0, 128], sizes = [8, 64], strides = [1, 1]} : vector<8x192xf32> to vector<8x64xf32>
    %301 = arith.mulf %299, %244 : vector<8x64xf32>
    %302 = arith.mulf %298, %297 : vector<8x64xf32>
    %303 = arith.addf %301, %302 : vector<8x64xf32>
    %304 = math.tanh %303 : vector<8x64xf32>
    %305 = arith.mulf %300, %304 : vector<8x64xf32>
    %306 = vector.extract_strided_slice %5 {offsets = [48, 0], sizes = [8, 256], strides = [1, 1]} : vector<64x256xf32> to vector<8x256xf32>
    %cst_46 = arith.constant dense<0.000000e+00> : vector<8x256xf32>
    %307 = tpu.matmul %265, %6, %cst_46 {dimension_numbers = #tpu.dot_dimension_numbers<[1], [0], [0], [1], [0, 0, 1, 1], [], []>} : vector<8x64xf32>, vector<64x256xf32>, vector<8x256xf32> -> vector<8x256xf32>
    %308 = arith.addf %306, %307 : vector<8x256xf32>
    %309 = vector.extract_strided_slice %308 {offsets = [0, 0], sizes = [8, 192], strides = [1, 1]} : vector<8x256xf32> to vector<8x192xf32>
    %310 = arith.negf %309 : vector<8x192xf32>
    %311 = math.exp %310 : vector<8x192xf32>
    %cst_47 = arith.constant 1.000000e+00 : f32
    %312 = vector.broadcast %cst_47 : f32 to vector<8x192xf32>
    %313 = arith.addf %312, %311 : vector<8x192xf32>
    %314 = arith.divf %312, %313 : vector<8x192xf32>
    %315 = vector.extract_strided_slice %308 {offsets = [0, 192], sizes = [8, 64], strides = [1, 1]} : vector<8x256xf32> to vector<8x64xf32>
    %316 = math.tanh %315 : vector<8x64xf32>
    %317 = vector.extract_strided_slice %314 {offsets = [0, 0], sizes = [8, 64], strides = [1, 1]} : vector<8x192xf32> to vector<8x64xf32>
    %318 = vector.extract_strided_slice %314 {offsets = [0, 64], sizes = [8, 64], strides = [1, 1]} : vector<8x192xf32> to vector<8x64xf32>
    %319 = vector.extract_strided_slice %314 {offsets = [0, 128], sizes = [8, 64], strides = [1, 1]} : vector<8x192xf32> to vector<8x64xf32>
    %320 = arith.mulf %318, %263 : vector<8x64xf32>
    %321 = arith.mulf %317, %316 : vector<8x64xf32>
    %322 = arith.addf %320, %321 : vector<8x64xf32>
    %323 = math.tanh %322 : vector<8x64xf32>
    %324 = arith.mulf %319, %323 : vector<8x64xf32>
    %325 = tpu.concatenate %265, %285 in 1 : vector<8x64xf32>, vector<8x64xf32> -> vector<8x128xf32>
    %cst_48 = arith.constant dense<0.000000e+00> : vector<8x256xf32>
    %326 = tpu.matmul %325, %7, %cst_48 {dimension_numbers = #tpu.dot_dimension_numbers<[1], [0], [0], [1], [0, 0, 1, 1], [], []>} : vector<8x128xf32>, vector<128x256xf32>, vector<8x256xf32> -> vector<8x256xf32>
    %327 = vector.broadcast %8 : vector<1x256xf32> to vector<8x256xf32>
    %328 = arith.addf %326, %327 : vector<8x256xf32>
    %329 = vector.extract_strided_slice %328 {offsets = [0, 0], sizes = [8, 192], strides = [1, 1]} : vector<8x256xf32> to vector<8x192xf32>
    %330 = arith.negf %329 : vector<8x192xf32>
    %331 = math.exp %330 : vector<8x192xf32>
    %cst_49 = arith.constant 1.000000e+00 : f32
    %332 = vector.broadcast %cst_49 : f32 to vector<8x192xf32>
    %333 = arith.addf %332, %331 : vector<8x192xf32>
    %334 = arith.divf %332, %333 : vector<8x192xf32>
    %335 = vector.extract_strided_slice %328 {offsets = [0, 192], sizes = [8, 64], strides = [1, 1]} : vector<8x256xf32> to vector<8x64xf32>
    %336 = math.tanh %335 : vector<8x64xf32>
    %337 = vector.extract_strided_slice %334 {offsets = [0, 0], sizes = [8, 64], strides = [1, 1]} : vector<8x192xf32> to vector<8x64xf32>
    %338 = vector.extract_strided_slice %334 {offsets = [0, 64], sizes = [8, 64], strides = [1, 1]} : vector<8x192xf32> to vector<8x64xf32>
    %339 = vector.extract_strided_slice %334 {offsets = [0, 128], sizes = [8, 64], strides = [1, 1]} : vector<8x192xf32> to vector<8x64xf32>
    %340 = arith.mulf %338, %283 : vector<8x64xf32>
    %341 = arith.mulf %337, %336 : vector<8x64xf32>
    %342 = arith.addf %340, %341 : vector<8x64xf32>
    %343 = math.tanh %342 : vector<8x64xf32>
    %344 = arith.mulf %339, %343 : vector<8x64xf32>
    %345 = tpu.concatenate %285, %305 in 1 : vector<8x64xf32>, vector<8x64xf32> -> vector<8x128xf32>
    %cst_50 = arith.constant dense<0.000000e+00> : vector<8x256xf32>
    %346 = tpu.matmul %345, %9, %cst_50 {dimension_numbers = #tpu.dot_dimension_numbers<[1], [0], [0], [1], [0, 0, 1, 1], [], []>} : vector<8x128xf32>, vector<128x256xf32>, vector<8x256xf32> -> vector<8x256xf32>
    %347 = vector.broadcast %10 : vector<1x256xf32> to vector<8x256xf32>
    %348 = arith.addf %346, %347 : vector<8x256xf32>
    %349 = vector.extract_strided_slice %348 {offsets = [0, 0], sizes = [8, 192], strides = [1, 1]} : vector<8x256xf32> to vector<8x192xf32>
    %350 = arith.negf %349 : vector<8x192xf32>
    %351 = math.exp %350 : vector<8x192xf32>
    %cst_51 = arith.constant 1.000000e+00 : f32
    %352 = vector.broadcast %cst_51 : f32 to vector<8x192xf32>
    %353 = arith.addf %352, %351 : vector<8x192xf32>
    %354 = arith.divf %352, %353 : vector<8x192xf32>
    %355 = vector.extract_strided_slice %348 {offsets = [0, 192], sizes = [8, 64], strides = [1, 1]} : vector<8x256xf32> to vector<8x64xf32>
    %356 = math.tanh %355 : vector<8x64xf32>
    %357 = vector.extract_strided_slice %354 {offsets = [0, 0], sizes = [8, 64], strides = [1, 1]} : vector<8x192xf32> to vector<8x64xf32>
    %358 = vector.extract_strided_slice %354 {offsets = [0, 64], sizes = [8, 64], strides = [1, 1]} : vector<8x192xf32> to vector<8x64xf32>
    %359 = vector.extract_strided_slice %354 {offsets = [0, 128], sizes = [8, 64], strides = [1, 1]} : vector<8x192xf32> to vector<8x64xf32>
    %360 = arith.mulf %358, %303 : vector<8x64xf32>
    %361 = arith.mulf %357, %356 : vector<8x64xf32>
    %362 = arith.addf %360, %361 : vector<8x64xf32>
    %363 = math.tanh %362 : vector<8x64xf32>
    %364 = arith.mulf %359, %363 : vector<8x64xf32>
    %365 = vector.extract_strided_slice %5 {offsets = [56, 0], sizes = [8, 256], strides = [1, 1]} : vector<64x256xf32> to vector<8x256xf32>
    %cst_52 = arith.constant dense<0.000000e+00> : vector<8x256xf32>
    %366 = tpu.matmul %324, %6, %cst_52 {dimension_numbers = #tpu.dot_dimension_numbers<[1], [0], [0], [1], [0, 0, 1, 1], [], []>} : vector<8x64xf32>, vector<64x256xf32>, vector<8x256xf32> -> vector<8x256xf32>
    %367 = arith.addf %365, %366 : vector<8x256xf32>
    %368 = vector.extract_strided_slice %367 {offsets = [0, 0], sizes = [8, 192], strides = [1, 1]} : vector<8x256xf32> to vector<8x192xf32>
    %369 = arith.negf %368 : vector<8x192xf32>
    %370 = math.exp %369 : vector<8x192xf32>
    %cst_53 = arith.constant 1.000000e+00 : f32
    %371 = vector.broadcast %cst_53 : f32 to vector<8x192xf32>
    %372 = arith.addf %371, %370 : vector<8x192xf32>
    %373 = arith.divf %371, %372 : vector<8x192xf32>
    %374 = vector.extract_strided_slice %367 {offsets = [0, 192], sizes = [8, 64], strides = [1, 1]} : vector<8x256xf32> to vector<8x64xf32>
    %375 = math.tanh %374 : vector<8x64xf32>
    %376 = vector.extract_strided_slice %373 {offsets = [0, 0], sizes = [8, 64], strides = [1, 1]} : vector<8x192xf32> to vector<8x64xf32>
    %377 = vector.extract_strided_slice %373 {offsets = [0, 64], sizes = [8, 64], strides = [1, 1]} : vector<8x192xf32> to vector<8x64xf32>
    %378 = vector.extract_strided_slice %373 {offsets = [0, 128], sizes = [8, 64], strides = [1, 1]} : vector<8x192xf32> to vector<8x64xf32>
    %379 = arith.mulf %377, %322 : vector<8x64xf32>
    %380 = arith.mulf %376, %375 : vector<8x64xf32>
    %381 = arith.addf %379, %380 : vector<8x64xf32>
    %382 = math.tanh %381 : vector<8x64xf32>
    %383 = arith.mulf %378, %382 : vector<8x64xf32>
    %384 = tpu.concatenate %324, %344 in 1 : vector<8x64xf32>, vector<8x64xf32> -> vector<8x128xf32>
    %cst_54 = arith.constant dense<0.000000e+00> : vector<8x256xf32>
    %385 = tpu.matmul %384, %7, %cst_54 {dimension_numbers = #tpu.dot_dimension_numbers<[1], [0], [0], [1], [0, 0, 1, 1], [], []>} : vector<8x128xf32>, vector<128x256xf32>, vector<8x256xf32> -> vector<8x256xf32>
    %386 = vector.broadcast %8 : vector<1x256xf32> to vector<8x256xf32>
    %387 = arith.addf %385, %386 : vector<8x256xf32>
    %388 = vector.extract_strided_slice %387 {offsets = [0, 0], sizes = [8, 192], strides = [1, 1]} : vector<8x256xf32> to vector<8x192xf32>
    %389 = arith.negf %388 : vector<8x192xf32>
    %390 = math.exp %389 : vector<8x192xf32>
    %cst_55 = arith.constant 1.000000e+00 : f32
    %391 = vector.broadcast %cst_55 : f32 to vector<8x192xf32>
    %392 = arith.addf %391, %390 : vector<8x192xf32>
    %393 = arith.divf %391, %392 : vector<8x192xf32>
    %394 = vector.extract_strided_slice %387 {offsets = [0, 192], sizes = [8, 64], strides = [1, 1]} : vector<8x256xf32> to vector<8x64xf32>
    %395 = math.tanh %394 : vector<8x64xf32>
    %396 = vector.extract_strided_slice %393 {offsets = [0, 0], sizes = [8, 64], strides = [1, 1]} : vector<8x192xf32> to vector<8x64xf32>
    %397 = vector.extract_strided_slice %393 {offsets = [0, 64], sizes = [8, 64], strides = [1, 1]} : vector<8x192xf32> to vector<8x64xf32>
    %398 = vector.extract_strided_slice %393 {offsets = [0, 128], sizes = [8, 64], strides = [1, 1]} : vector<8x192xf32> to vector<8x64xf32>
    %399 = arith.mulf %397, %342 : vector<8x64xf32>
    %400 = arith.mulf %396, %395 : vector<8x64xf32>
    %401 = arith.addf %399, %400 : vector<8x64xf32>
    %402 = math.tanh %401 : vector<8x64xf32>
    %403 = arith.mulf %398, %402 : vector<8x64xf32>
    %404 = tpu.concatenate %344, %364 in 1 : vector<8x64xf32>, vector<8x64xf32> -> vector<8x128xf32>
    %cst_56 = arith.constant dense<0.000000e+00> : vector<8x256xf32>
    %405 = tpu.matmul %404, %9, %cst_56 {dimension_numbers = #tpu.dot_dimension_numbers<[1], [0], [0], [1], [0, 0, 1, 1], [], []>} : vector<8x128xf32>, vector<128x256xf32>, vector<8x256xf32> -> vector<8x256xf32>
    %406 = vector.broadcast %10 : vector<1x256xf32> to vector<8x256xf32>
    %407 = arith.addf %405, %406 : vector<8x256xf32>
    %408 = vector.extract_strided_slice %407 {offsets = [0, 0], sizes = [8, 192], strides = [1, 1]} : vector<8x256xf32> to vector<8x192xf32>
    %409 = arith.negf %408 : vector<8x192xf32>
    %410 = math.exp %409 : vector<8x192xf32>
    %cst_57 = arith.constant 1.000000e+00 : f32
    %411 = vector.broadcast %cst_57 : f32 to vector<8x192xf32>
    %412 = arith.addf %411, %410 : vector<8x192xf32>
    %413 = arith.divf %411, %412 : vector<8x192xf32>
    %414 = vector.extract_strided_slice %407 {offsets = [0, 192], sizes = [8, 64], strides = [1, 1]} : vector<8x256xf32> to vector<8x64xf32>
    %415 = math.tanh %414 : vector<8x64xf32>
    %416 = vector.extract_strided_slice %413 {offsets = [0, 0], sizes = [8, 64], strides = [1, 1]} : vector<8x192xf32> to vector<8x64xf32>
    %417 = vector.extract_strided_slice %413 {offsets = [0, 64], sizes = [8, 64], strides = [1, 1]} : vector<8x192xf32> to vector<8x64xf32>
    %418 = vector.extract_strided_slice %413 {offsets = [0, 128], sizes = [8, 64], strides = [1, 1]} : vector<8x192xf32> to vector<8x64xf32>
    %419 = arith.mulf %417, %362 : vector<8x64xf32>
    %420 = arith.mulf %416, %415 : vector<8x64xf32>
    %421 = arith.addf %419, %420 : vector<8x64xf32>
    %422 = math.tanh %421 : vector<8x64xf32>
    %423 = arith.mulf %418, %422 : vector<8x64xf32>
    %424 = tpu.concatenate %383, %403 in 1 : vector<8x64xf32>, vector<8x64xf32> -> vector<8x128xf32>
    %cst_58 = arith.constant dense<0.000000e+00> : vector<8x256xf32>
    %425 = tpu.matmul %424, %7, %cst_58 {dimension_numbers = #tpu.dot_dimension_numbers<[1], [0], [0], [1], [0, 0, 1, 1], [], []>} : vector<8x128xf32>, vector<128x256xf32>, vector<8x256xf32> -> vector<8x256xf32>
    %426 = vector.broadcast %8 : vector<1x256xf32> to vector<8x256xf32>
    %427 = arith.addf %425, %426 : vector<8x256xf32>
    %428 = vector.extract_strided_slice %427 {offsets = [0, 0], sizes = [8, 192], strides = [1, 1]} : vector<8x256xf32> to vector<8x192xf32>
    %429 = arith.negf %428 : vector<8x192xf32>
    %430 = math.exp %429 : vector<8x192xf32>
    %cst_59 = arith.constant 1.000000e+00 : f32
    %431 = vector.broadcast %cst_59 : f32 to vector<8x192xf32>
    %432 = arith.addf %431, %430 : vector<8x192xf32>
    %433 = arith.divf %431, %432 : vector<8x192xf32>
    %434 = vector.extract_strided_slice %427 {offsets = [0, 192], sizes = [8, 64], strides = [1, 1]} : vector<8x256xf32> to vector<8x64xf32>
    %435 = math.tanh %434 : vector<8x64xf32>
    %436 = vector.extract_strided_slice %433 {offsets = [0, 0], sizes = [8, 64], strides = [1, 1]} : vector<8x192xf32> to vector<8x64xf32>
    %437 = vector.extract_strided_slice %433 {offsets = [0, 64], sizes = [8, 64], strides = [1, 1]} : vector<8x192xf32> to vector<8x64xf32>
    %438 = vector.extract_strided_slice %433 {offsets = [0, 128], sizes = [8, 64], strides = [1, 1]} : vector<8x192xf32> to vector<8x64xf32>
    %439 = arith.mulf %437, %401 : vector<8x64xf32>
    %440 = arith.mulf %436, %435 : vector<8x64xf32>
    %441 = arith.addf %439, %440 : vector<8x64xf32>
    %442 = math.tanh %441 : vector<8x64xf32>
    %443 = arith.mulf %438, %442 : vector<8x64xf32>
    %444 = tpu.concatenate %403, %423 in 1 : vector<8x64xf32>, vector<8x64xf32> -> vector<8x128xf32>
    %cst_60 = arith.constant dense<0.000000e+00> : vector<8x256xf32>
    %445 = tpu.matmul %444, %9, %cst_60 {dimension_numbers = #tpu.dot_dimension_numbers<[1], [0], [0], [1], [0, 0, 1, 1], [], []>} : vector<8x128xf32>, vector<128x256xf32>, vector<8x256xf32> -> vector<8x256xf32>
    %446 = vector.broadcast %10 : vector<1x256xf32> to vector<8x256xf32>
    %447 = arith.addf %445, %446 : vector<8x256xf32>
    %448 = vector.extract_strided_slice %447 {offsets = [0, 0], sizes = [8, 192], strides = [1, 1]} : vector<8x256xf32> to vector<8x192xf32>
    %449 = arith.negf %448 : vector<8x192xf32>
    %450 = math.exp %449 : vector<8x192xf32>
    %cst_61 = arith.constant 1.000000e+00 : f32
    %451 = vector.broadcast %cst_61 : f32 to vector<8x192xf32>
    %452 = arith.addf %451, %450 : vector<8x192xf32>
    %453 = arith.divf %451, %452 : vector<8x192xf32>
    %454 = vector.extract_strided_slice %447 {offsets = [0, 192], sizes = [8, 64], strides = [1, 1]} : vector<8x256xf32> to vector<8x64xf32>
    %455 = math.tanh %454 : vector<8x64xf32>
    %456 = vector.extract_strided_slice %453 {offsets = [0, 0], sizes = [8, 64], strides = [1, 1]} : vector<8x192xf32> to vector<8x64xf32>
    %457 = vector.extract_strided_slice %453 {offsets = [0, 64], sizes = [8, 64], strides = [1, 1]} : vector<8x192xf32> to vector<8x64xf32>
    %458 = vector.extract_strided_slice %453 {offsets = [0, 128], sizes = [8, 64], strides = [1, 1]} : vector<8x192xf32> to vector<8x64xf32>
    %459 = arith.mulf %457, %421 : vector<8x64xf32>
    %460 = arith.mulf %456, %455 : vector<8x64xf32>
    %461 = arith.addf %459, %460 : vector<8x64xf32>
    %462 = math.tanh %461 : vector<8x64xf32>
    %463 = arith.mulf %458, %462 : vector<8x64xf32>
    %464 = tpu.concatenate %443, %463 in 1 : vector<8x64xf32>, vector<8x64xf32> -> vector<8x128xf32>
    %cst_62 = arith.constant dense<0.000000e+00> : vector<8x256xf32>
    %465 = tpu.matmul %464, %9, %cst_62 {dimension_numbers = #tpu.dot_dimension_numbers<[1], [0], [0], [1], [0, 0, 1, 1], [], []>} : vector<8x128xf32>, vector<128x256xf32>, vector<8x256xf32> -> vector<8x256xf32>
    %466 = vector.broadcast %10 : vector<1x256xf32> to vector<8x256xf32>
    %467 = arith.addf %465, %466 : vector<8x256xf32>
    %468 = vector.extract_strided_slice %467 {offsets = [0, 0], sizes = [8, 192], strides = [1, 1]} : vector<8x256xf32> to vector<8x192xf32>
    %469 = arith.negf %468 : vector<8x192xf32>
    %470 = math.exp %469 : vector<8x192xf32>
    %cst_63 = arith.constant 1.000000e+00 : f32
    %471 = vector.broadcast %cst_63 : f32 to vector<8x192xf32>
    %472 = arith.addf %471, %470 : vector<8x192xf32>
    %473 = arith.divf %471, %472 : vector<8x192xf32>
    %474 = vector.extract_strided_slice %467 {offsets = [0, 192], sizes = [8, 64], strides = [1, 1]} : vector<8x256xf32> to vector<8x64xf32>
    %475 = math.tanh %474 : vector<8x64xf32>
    %476 = vector.extract_strided_slice %473 {offsets = [0, 0], sizes = [8, 64], strides = [1, 1]} : vector<8x192xf32> to vector<8x64xf32>
    %477 = vector.extract_strided_slice %473 {offsets = [0, 64], sizes = [8, 64], strides = [1, 1]} : vector<8x192xf32> to vector<8x64xf32>
    %478 = vector.extract_strided_slice %473 {offsets = [0, 128], sizes = [8, 64], strides = [1, 1]} : vector<8x192xf32> to vector<8x64xf32>
    %479 = arith.mulf %477, %461 : vector<8x64xf32>
    %480 = arith.mulf %476, %475 : vector<8x64xf32>
    %481 = arith.addf %479, %480 : vector<8x64xf32>
    %482 = math.tanh %481 : vector<8x64xf32>
    %483 = arith.mulf %478, %482 : vector<8x64xf32>
    %c0_64 = arith.constant 0 : index
    %c0_65 = arith.constant 0 : index
    %484 = vector.load %arg8[%c0_64, %c0_65] : memref<64x5xf32, #tpu.memory_space<vmem>>, vector<64x5xf32>
    %cst_66 = arith.constant dense<0.000000e+00> : vector<8x5xf32>
    %485 = tpu.matmul %483, %484, %cst_66 {dimension_numbers = #tpu.dot_dimension_numbers<[1], [0], [0], [1], [0, 0, 1, 1], [], []>} : vector<8x64xf32>, vector<64x5xf32>, vector<8x5xf32> -> vector<8x5xf32>
    %c0_67 = arith.constant 0 : index
    %c0_68 = arith.constant 0 : index
    %486 = vector.load %arg9[%c0_67, %c0_68] : memref<1x5xf32, #tpu.memory_space<vmem>>, vector<1x5xf32>
    %487 = vector.broadcast %486 : vector<1x5xf32> to vector<8x5xf32>
    %488 = arith.addf %485, %487 : vector<8x5xf32>
    %c0_69 = arith.constant 0 : index
    %c0_70 = arith.constant 0 : index
    %489 = vector.load %arg10[%c0_69, %c0_70] : memref<8x5xf32, #tpu.memory_space<vmem>>, vector<8x5xf32>
    tpu.vector_store %arg10[%c0_69, %c0_70], %488 {strides = array<i32>} : memref<8x5xf32, #tpu.memory_space<vmem>>, vector<8x5xf32>,
    return
  }
}

</mosaic_0001>

<llo_original>
// kernel: lstm_forward.1
$region0: #{lstm_forward.1}
  #allocation0 [shape = 'u32[]', space=smem, size = 0x4, offset = 0x4, fixed_abs, tag = 'smem constant byte address 0x4 - core index']
  #allocation1 [shape = 'u32[72,128]{1,0:T(1,128)}', space=vmem, size = 0x9000, scoped, tag = 'internal scratch']
  %s0 = inlined_call_operand.vmem [shape: bf16[64,1152], index: 0, kind: input, shape index: {}]
  %s1 = inlined_call_operand.hbm [shape: bf16[1152,256], index: 1, kind: input, shape index: {}]
  %s2 = inlined_call_operand.vmem [shape: f32[64,256], index: 2, kind: input, shape index: {}]
  %s3 = inlined_call_operand.vmem [shape: f32[1,256], index: 3, kind: input, shape index: {}]
  %s4 = inlined_call_operand.vmem [shape: f32[128,256], index: 4, kind: input, shape index: {}]
  %s5 = inlined_call_operand.vmem [shape: f32[1,256], index: 5, kind: input, shape index: {}]
  %s6 = inlined_call_operand.vmem [shape: f32[128,256], index: 6, kind: input, shape index: {}]
  %s7 = inlined_call_operand.vmem [shape: f32[1,256], index: 7, kind: input, shape index: {}]
  %s8 = inlined_call_operand.vmem [shape: f32[64,5], index: 8, kind: input, shape index: {}]
  %s9 = inlined_call_operand.vmem [shape: f32[1,5], index: 9, kind: input, shape index: {}]
  %s10 = inlined_call_operand.vmem [shape: f32[8,5], index: 10, kind: output, shape index: {}]
  %s11 = sld [smem:[#allocation0]]
  $region54: #{lstm_forward.1} parent=0
    _
  %s13 = ssub.s32 1, %s11
  %s14 = scalar_select 0, %s13, %s11
  $region1: #{lstm_forward.1} parent=0
    #allocation2 [shape = 'u8[589824]{0}', space=vmem, size = 0x90000, scoped, tag = 'input window, operand 1, single buffered']
    #allocation3 [shape = 's32[1]{0}', space=sflag, size = 0x4, scoped, tag = 'scoped memory for lstm_forward.1']
    %15 = vsyncpa [#allocation3], 0
    // Predicated region
    $region2: #{lstm_forward.1} parent=1 // pred_check
      _
    $region3: #{lstm_forward.1} parent=1 // pred_check_branch
      %17 = sbr.rel (0) target = $region5
    $region4: #{lstm_forward.1} parent=1 // pred_region
      _
    $region5: #{lstm_forward.1} parent=1 // pred_fallthru
      _
    // Predicated region
    $region6: #{lstm_forward.1} parent=1 // pred_check
      _
    $region7: #{lstm_forward.1} parent=1 // pred_check_branch
      %19 = sbr.rel (0) target = $region9
    $region8: #{lstm_forward.1} parent=1 // pred_region
      %21 = vsyncadd [#allocation3], 0
      %s22 = sshll.u32 %s1, 4
      %s23 = int_to_ptr.hbm [resolvable:$true] %s22
      %s24 = sshll.u32 [#allocation2], 4
      %s25 = int_to_ptr.vmem [resolvable:$true] %s24
      %30 = dma.hbm_to_vmem [thread:$0]  %s23, 18432, %s25, [#allocation3], 128, 128, 8
    $region9: #{lstm_forward.1} parent=1 // pred_fallthru
      _
    // Predicated region
    $region10: #{lstm_forward.1} parent=1 // pred_check
      _
    $region11: #{lstm_forward.1} parent=1 // pred_check_branch
      %32 = sbr.rel (0) target = $region13
    $region12: #{lstm_forward.1} parent=1 // pred_region
      _
    $region13: #{lstm_forward.1} parent=1 // pred_fallthru
      _
    // Predicated region
    $region14: #{lstm_forward.1} parent=1 // pred_check
      _
    $region15: #{lstm_forward.1} parent=1 // pred_check_branch
      %34 = sbr.rel (0) target = $region17
    $region16: #{lstm_forward.1} parent=1 // pred_region
      _
    $region17: #{lstm_forward.1} parent=1 // pred_fallthru
      _
    // Predicated region
    $region18: #{lstm_forward.1} parent=1 // pred_check
      _
    $region19: #{lstm_forward.1} parent=1 // pred_check_branch
      %36 = sbr.rel (0) target = $region21
    $region20: #{lstm_forward.1} parent=1 // pred_region
      _
    $region21: #{lstm_forward.1} parent=1 // pred_fallthru
      _
    // Predicated region
    $region22: #{lstm_forward.1} parent=1 // pred_check
      _
    $region23: #{lstm_forward.1} parent=1 // pred_check_branch
      %38 = sbr.rel (0) target = $region25
    $region24: #{lstm_forward.1} parent=1 // pred_region
      _
    $region25: #{lstm_forward.1} parent=1 // pred_fallthru
      _
    // Predicated region
    $region26: #{lstm_forward.1} parent=1 // pred_check
      _
    $region27: #{lstm_forward.1} parent=1 // pred_check_branch
      %40 = sbr.rel (0) target = $region29
    $region28: #{lstm_forward.1} parent=1 // pred_region
      _
    $region29: #{lstm_forward.1} parent=1 // pred_fallthru
      _
    // Predicated region
    $region30: #{lstm_forward.1} parent=1 // pred_check
      _
    $region31: #{lstm_forward.1} parent=1 // pred_check_branch
      %42 = sbr.rel (0) target = $region33
    $region32: #{lstm_forward.1} parent=1 // pred_region
      _
    $region33: #{lstm_forward.1} parent=1 // pred_fallthru
      _
    // Predicated region
    $region34: #{lstm_forward.1} parent=1 // pred_check
      _
    $region35: #{lstm_forward.1} parent=1 // pred_check_branch
      %44 = sbr.rel (0) target = $region37
    $region36: #{lstm_forward.1} parent=1 // pred_region
      _
    $region37: #{lstm_forward.1} parent=1 // pred_fallthru
      _
    // Predicated region
    $region38: #{lstm_forward.1} parent=1 // pred_check
      _
    $region39: #{lstm_forward.1} parent=1 // pred_check_branch
      %46 = sbr.rel (0) target = $region41
    $region40: #{lstm_forward.1} parent=1 // pred_region
      _
    $region41: #{lstm_forward.1} parent=1 // pred_fallthru
      _
    // Predicated region
    $region42: #{lstm_forward.1} parent=1 // pred_check
      _
    $region43: #{lstm_forward.1} parent=1 // pred_check_branch
      %48 = sbr.rel (0) target = $region45
    $region44: #{lstm_forward.1} parent=1 // pred_region
      %50 = dma.done [#allocation3], 18432
    $region45: #{lstm_forward.1} parent=1 // pred_fallthru
      _
    %v51 = vld [vmem:[%s0] sm:$0xff]
    %v52 = vld [vmem:[%s0 + $0x8] sm:$0xff]
    %v53 = vld [vmem:[%s0 + $0x10] sm:$0xff]
    %v54 = vld [vmem:[%s0 + $0x18] sm:$0xff]
    %v55 = vld [vmem:[%s0 + $0x20] sm:$0xf]
    %v56 = vld [vmem:[%s0 + $0x24] sm:$0xff]
    %v57 = vld [vmem:[%s0 + $0x2c] sm:$0xff]
    %v58 = vld [vmem:[%s0 + $0x34] sm:$0xff]
    %v59 = vld [vmem:[%s0 + $0x3c] sm:$0xff]
    %v60 = vld [vmem:[%s0 + $0x44] sm:$0xf]
    %v61 = vld [vmem:[%s0 + $0x48] sm:$0xff]
    %v62 = vld [vmem:[%s0 + $0x50] sm:$0xff]
    %v63 = vld [vmem:[%s0 + $0x58] sm:$0xff]
    %v64 = vld [vmem:[%s0 + $0x60] sm:$0xff]
    %v65 = vld [vmem:[%s0 + $0x68] sm:$0xf]
    %v66 = vld [vmem:[%s0 + $0x6c] sm:$0xff]
    %v67 = vld [vmem:[%s0 + $0x74] sm:$0xff]
    %v68 = vld [vmem:[%s0 + $0x7c] sm:$0xff]
    %v69 = vld [vmem:[%s0 + $0x84] sm:$0xff]
    %v70 = vld [vmem:[%s0 + $0x8c] sm:$0xf]
    %v71 = vld [vmem:[%s0 + $0x90] sm:$0xff]
    %v72 = vld [vmem:[%s0 + $0x98] sm:$0xff]
    %v73 = vld [vmem:[%s0 + $0xa0] sm:$0xff]
    %v74 = vld [vmem:[%s0 + $0xa8] sm:$0xff]
    %v75 = vld [vmem:[%s0 + $0xb0] sm:$0xf]
    %v76 = vld [vmem:[%s0 + $0xb4] sm:$0xff]
    %v77 = vld [vmem:[%s0 + $0xbc] sm:$0xff]
    %v78 = vld [vmem:[%s0 + $0xc4] sm:$0xff]
    %v79 = vld [vmem:[%s0 + $0xcc] sm:$0xff]
    %v80 = vld [vmem:[%s0 + $0xd4] sm:$0xf]
    %v81 = vld [vmem:[%s0 + $0xd8] sm:$0xff]
    %v82 = vld [vmem:[%s0 + $0xe0] sm:$0xff]
    %v83 = vld [vmem:[%s0 + $0xe8] sm:$0xff]
    %v84 = vld [vmem:[%s0 + $0xf0] sm:$0xff]
    %v85 = vld [vmem:[%s0 + $0xf8] sm:$0xf]
    %v86 = vld [vmem:[%s0 + $0xfc] sm:$0xff]
    %v87 = vld [vmem:[%s0 + $0x104] sm:$0xff]
    %v88 = vld [vmem:[%s0 + $0x10c] sm:$0xff]
    %v89 = vld [vmem:[%s0 + $0x114] sm:$0xff]
    %v90 = vld [vmem:[%s0 + $0x11c] sm:$0xf]
    %v91 = vld [vmem:[#allocation2] sm:$0xff]
    %v92 = vld [vmem:[#allocation2 + $0x8] sm:$0xff]
    %v93 = vld [vmem:[#allocation2 + $0x10] sm:$0xff]
    %v94 = vld [vmem:[#allocation2 + $0x18] sm:$0xff]
    %v95 = vld [vmem:[#allocation2 + $0x20] sm:$0xff]
    %v96 = vld [vmem:[#allocation2 + $0x28] sm:$0xff]
    %v97 = vld [vmem:[#allocation2 + $0x30] sm:$0xff]
    %v98 = vld [vmem:[#allocation2 + $0x38] sm:$0xff]
    %v99 = vld [vmem:[#allocation2 + $0x40] sm:$0xff]
    %v100 = vld [vmem:[#allocation2 + $0x48] sm:$0xff]
    %v101 = vld [vmem:[#allocation2 + $0x50] sm:$0xff]
    %v102 = vld [vmem:[#allocation2 + $0x58] sm:$0xff]
    %v103 = vld [vmem:[#allocation2 + $0x60] sm:$0xff]
    %v104 = vld [vmem:[#allocation2 + $0x68] sm:$0xff]
    %v105 = vld [vmem:[#allocation2 + $0x70] sm:$0xff]
    %v106 = vld [vmem:[#allocation2 + $0x78] sm:$0xff]
    %v107 = vld [vmem:[#allocation2 + $0x80] sm:$0xff]
    %v108 = vld [vmem:[#allocation2 + $0x88] sm:$0xff]
    %v109 = vld [vmem:[#allocation2 + $0x90] sm:$0xff]
    %v110 = vld [vmem:[#allocation2 + $0x98] sm:$0xff]
    %v111 = vld [vmem:[#allocation2 + $0xa0] sm:$0xff]
    %v112 = vld [vmem:[#allocation2 + $0xa8] sm:$0xff]
    %v113 = vld [vmem:[#allocation2 + $0xb0] sm:$0xff]
    %v114 = vld [vmem:[#allocation2 + $0xb8] sm:$0xff]
    %v115 = vld [vmem:[#allocation2 + $0xc0] sm:$0xff]
    %v116 = vld [vmem:[#allocation2 + $0xc8] sm:$0xff]
    %v117 = vld [vmem:[#allocation2 + $0xd0] sm:$0xff]
    %v118 = vld [vmem:[#allocation2 + $0xd8] sm:$0xff]
    %v119 = vld [vmem:[#allocation2 + $0xe0] sm:$0xff]
    %v120 = vld [vmem:[#allocation2 + $0xe8] sm:$0xff]
    %v121 = vld [vmem:[#allocation2 + $0xf0] sm:$0xff]
    %v122 = vld [vmem:[#allocation2 + $0xf8] sm:$0xff]
    %v123 = vld [vmem:[#allocation2 + $0x100] sm:$0xff]
    %v124 = vld [vmem:[#allocation2 + $0x108] sm:$0xff]
    %v125 = vld [vmem:[#allocation2 + $0x110] sm:$0xff]
    %v126 = vld [vmem:[#allocation2 + $0x118] sm:$0xff]
    %v127 = vld [vmem:[#allocation2 + $0x120] sm:$0xff]
    %v128 = vld [vmem:[#allocation2 + $0x128] sm:$0xff]
    %v129 = vld [vmem:[#allocation2 + $0x130] sm:$0xff]
    %v130 = vld [vmem:[#allocation2 + $0x138] sm:$0xff]
    %v131 = vld [vmem:[#allocation2 + $0x140] sm:$0xff]
    %v132 = vld [vmem:[#allocation2 + $0x148] sm:$0xff]
    %v133 = vld [vmem:[#allocation2 + $0x150] sm:$0xff]
    %v134 = vld [vmem:[#allocation2 + $0x158] sm:$0xff]
    %v135 = vld [vmem:[#allocation2 + $0x160] sm:$0xff]
    %v136 = vld [vmem:[#allocation2 + $0x168] sm:$0xff]
    %v137 = vld [vmem:[#allocation2 + $0x170] sm:$0xff]
    %v138 = vld [vmem:[#allocation2 + $0x178] sm:$0xff]
    %v139 = vld [vmem:[#allocation2 + $0x180] sm:$0xff]
    %v140 = vld [vmem:[#allocation2 + $0x188] sm:$0xff]
    %v141 = vld [vmem:[#allocation2 + $0x190] sm:$0xff]
    %v142 = vld [vmem:[#allocation2 + $0x198] sm:$0xff]
    %v143 = vld [vmem:[#allocation2 + $0x1a0] sm:$0xff]
    %v144 = vld [vmem:[#allocation2 + $0x1a8] sm:$0xff]
    %v145 = vld [vmem:[#allocation2 + $0x1b0] sm:$0xff]
    %v146 = vld [vmem:[#allocation2 + $0x1b8] sm:$0xff]
    %v147 = vld [vmem:[#allocation2 + $0x1c0] sm:$0xff]
    %v148 = vld [vmem:[#allocation2 + $0x1c8] sm:$0xff]
    %v149 = vld [vmem:[#allocation2 + $0x1d0] sm:$0xff]
    %v150 = vld [vmem:[#allocation2 + $0x1d8] sm:$0xff]
    %v151 = vld [vmem:[#allocation2 + $0x1e0] sm:$0xff]
    %v152 = vld [vmem:[#allocation2 + $0x1e8] sm:$0xff]
    %v153 = vld [vmem:[#allocation2 + $0x1f0] sm:$0xff]
    %v154 = vld [vmem:[#allocation2 + $0x1f8] sm:$0xff]
    %v155 = vld [vmem:[#allocation2 + $0x200] sm:$0xff]
    %v156 = vld [vmem:[#allocation2 + $0x208] sm:$0xff]
    %v157 = vld [vmem:[#allocation2 + $0x210] sm:$0xff]
    %v158 = vld [vmem:[#allocation2 + $0x218] sm:$0xff]
    %v159 = vld [vmem:[#allocation2 + $0x220] sm:$0xff]
    %v160 = vld [vmem:[#allocation2 + $0x228] sm:$0xff]
    %v161 = vld [vmem:[#allocation2 + $0x230] sm:$0xff]
    %v162 = vld [vmem:[#allocation2 + $0x238] sm:$0xff]
    %v163 = vld [vmem:[#allocation2 + $0x240] sm:$0xff]
    %v164 = vld [vmem:[#allocation2 + $0x248] sm:$0xff]
    %v165 = vld [vmem:[#allocation2 + $0x250] sm:$0xff]
    %v166 = vld [vmem:[#allocation2 + $0x258] sm:$0xff]
    %v167 = vld [vmem:[#allocation2 + $0x260] sm:$0xff]
    %v168 = vld [vmem:[#allocation2 + $0x268] sm:$0xff]
    %v169 = vld [vmem:[#allocation2 + $0x270] sm:$0xff]
    %v170 = vld [vmem:[#allocation2 + $0x278] sm:$0xff]
    %v171 = vld [vmem:[#allocation2 + $0x280] sm:$0xff]
    %v172 = vld [vmem:[#allocation2 + $0x288] sm:$0xff]
    %v173 = vld [vmem:[#allocation2 + $0x290] sm:$0xff]
    %v174 = vld [vmem:[#allocation2 + $0x298] sm:$0xff]
    %v175 = vld [vmem:[#allocation2 + $0x2a0] sm:$0xff]
    %v176 = vld [vmem:[#allocation2 + $0x2a8] sm:$0xff]
    %v177 = vld [vmem:[#allocation2 + $0x2b0] sm:$0xff]
    %v178 = vld [vmem:[#allocation2 + $0x2b8] sm:$0xff]
    %v179 = vld [vmem:[#allocation2 + $0x2c0] sm:$0xff]
    %v180 = vld [vmem:[#allocation2 + $0x2c8] sm:$0xff]
    %v181 = vld [vmem:[#allocation2 + $0x2d0] sm:$0xff]
    %v182 = vld [vmem:[#allocation2 + $0x2d8] sm:$0xff]
    %v183 = vld [vmem:[#allocation2 + $0x2e0] sm:$0xff]
    %v184 = vld [vmem:[#allocation2 + $0x2e8] sm:$0xff]
    %v185 = vld [vmem:[#allocation2 + $0x2f0] sm:$0xff]
    %v186 = vld [vmem:[#allocation2 + $0x2f8] sm:$0xff]
    %v187 = vld [vmem:[#allocation2 + $0x300] sm:$0xff]
    %v188 = vld [vmem:[#allocation2 + $0x308] sm:$0xff]
    %v189 = vld [vmem:[#allocation2 + $0x310] sm:$0xff]
    %v190 = vld [vmem:[#allocation2 + $0x318] sm:$0xff]
    %v191 = vld [vmem:[#allocation2 + $0x320] sm:$0xff]
    %v192 = vld [vmem:[#allocation2 + $0x328] sm:$0xff]
    %v193 = vld [vmem:[#allocation2 + $0x330] sm:$0xff]
    %v194 = vld [vmem:[#allocation2 + $0x338] sm:$0xff]
    %v195 = vld [vmem:[#allocation2 + $0x340] sm:$0xff]
    %v196 = vld [vmem:[#allocation2 + $0x348] sm:$0xff]
    %v197 = vld [vmem:[#allocation2 + $0x350] sm:$0xff]
    %v198 = vld [vmem:[#allocation2 + $0x358] sm:$0xff]
    %v199 = vld [vmem:[#allocation2 + $0x360] sm:$0xff]
    %v200 = vld [vmem:[#allocation2 + $0x368] sm:$0xff]
    %v201 = vld [vmem:[#allocation2 + $0x370] sm:$0xff]
    %v202 = vld [vmem:[#allocation2 + $0x378] sm:$0xff]
    %v203 = vld [vmem:[#allocation2 + $0x380] sm:$0xff]
    %v204 = vld [vmem:[#allocation2 + $0x388] sm:$0xff]
    %v205 = vld [vmem:[#allocation2 + $0x390] sm:$0xff]
    %v206 = vld [vmem:[#allocation2 + $0x398] sm:$0xff]
    %v207 = vld [vmem:[#allocation2 + $0x3a0] sm:$0xff]
    %v208 = vld [vmem:[#allocation2 + $0x3a8] sm:$0xff]
    %v209 = vld [vmem:[#allocation2 + $0x3b0] sm:$0xff]
    %v210 = vld [vmem:[#allocation2 + $0x3b8] sm:$0xff]
    %v211 = vld [vmem:[#allocation2 + $0x3c0] sm:$0xff]
    %v212 = vld [vmem:[#allocation2 + $0x3c8] sm:$0xff]
    %v213 = vld [vmem:[#allocation2 + $0x3d0] sm:$0xff]
    %v214 = vld [vmem:[#allocation2 + $0x3d8] sm:$0xff]
    %v215 = vld [vmem:[#allocation2 + $0x3e0] sm:$0xff]
    %v216 = vld [vmem:[#allocation2 + $0x3e8] sm:$0xff]
    %v217 = vld [vmem:[#allocation2 + $0x3f0] sm:$0xff]
    %v218 = vld [vmem:[#allocation2 + $0x3f8] sm:$0xff]
    %v219 = vld [vmem:[#allocation2 + $0x400] sm:$0xff]
    %v220 = vld [vmem:[#allocation2 + $0x408] sm:$0xff]
    %v221 = vld [vmem:[#allocation2 + $0x410] sm:$0xff]
    %v222 = vld [vmem:[#allocation2 + $0x418] sm:$0xff]
    %v223 = vld [vmem:[#allocation2 + $0x420] sm:$0xff]
    %v224 = vld [vmem:[#allocation2 + $0x428] sm:$0xff]
    %v225 = vld [vmem:[#allocation2 + $0x430] sm:$0xff]
    %v226 = vld [vmem:[#allocation2 + $0x438] sm:$0xff]
    %v227 = vld [vmem:[#allocation2 + $0x440] sm:$0xff]
    %v228 = vld [vmem:[#allocation2 + $0x448] sm:$0xff]
    %v229 = vld [vmem:[#allocation2 + $0x450] sm:$0xff]
    %v230 = vld [vmem:[#allocation2 + $0x458] sm:$0xff]
    %v231 = vld [vmem:[#allocation2 + $0x460] sm:$0xff]
    %v232 = vld [vmem:[#allocation2 + $0x468] sm:$0xff]
    %v233 = vld [vmem:[#allocation2 + $0x470] sm:$0xff]
    %v234 = vld [vmem:[#allocation2 + $0x478] sm:$0xff]
    %v235 = vld [vmem:[%s3] sm:$0x3]
    %v237 = vperm.slane %v235, 0
    %v238 = vperm.slane %v235, 1
    %v281 = vunpack.c.l.b16 %v51
    %v282 = vunpack.c.h.b16 %v51
    %v283 = vunpack.c.l.b16 %v52
    %v284 = vunpack.c.h.b16 %v52
    %v285 = vunpack.c.l.b16 %v53
    %v286 = vunpack.c.h.b16 %v53
    %v287 = vunpack.c.l.b16 %v54
    %v288 = vunpack.c.h.b16 %v54
    %v289 = vunpack.c.l.b16 %v55
    %v290 = vunpack.c.l.b16 %v56
    %v291 = vunpack.c.h.b16 %v56
    %v292 = vunpack.c.l.b16 %v57
    %v293 = vunpack.c.h.b16 %v57
    %v294 = vunpack.c.l.b16 %v58
    %v295 = vunpack.c.h.b16 %v58
    %v296 = vunpack.c.l.b16 %v59
    %v297 = vunpack.c.h.b16 %v59
    %v298 = vunpack.c.l.b16 %v60
    %v299 = vunpack.c.l.b16 %v61
    %v300 = vunpack.c.h.b16 %v61
    %v301 = vunpack.c.l.b16 %v62
    %v302 = vunpack.c.h.b16 %v62
    %v303 = vunpack.c.l.b16 %v63
    %v304 = vunpack.c.h.b16 %v63
    %v305 = vunpack.c.l.b16 %v64
    %v306 = vunpack.c.h.b16 %v64
    %v307 = vunpack.c.l.b16 %v65
    %v308 = vunpack.c.l.b16 %v66
    %v309 = vunpack.c.h.b16 %v66
    %v310 = vunpack.c.l.b16 %v67
    %v311 = vunpack.c.h.b16 %v67
    %v312 = vunpack.c.l.b16 %v68
    %v313 = vunpack.c.h.b16 %v68
    %v314 = vunpack.c.l.b16 %v69
    %v315 = vunpack.c.h.b16 %v69
    %v316 = vunpack.c.l.b16 %v70
    %v317 = vunpack.c.l.b16 %v71
    %v318 = vunpack.c.h.b16 %v71
    %v319 = vunpack.c.l.b16 %v72
    %v320 = vunpack.c.h.b16 %v72
    %v321 = vunpack.c.l.b16 %v73
    %v322 = vunpack.c.h.b16 %v73
    %v323 = vunpack.c.l.b16 %v74
    %v324 = vunpack.c.h.b16 %v74
    %v325 = vunpack.c.l.b16 %v75
    %v326 = vunpack.c.l.b16 %v76
    %v327 = vunpack.c.h.b16 %v76
    %v328 = vunpack.c.l.b16 %v77
    %v329 = vunpack.c.h.b16 %v77
    %v330 = vunpack.c.l.b16 %v78
    %v331 = vunpack.c.h.b16 %v78
    %v332 = vunpack.c.l.b16 %v79
    %v333 = vunpack.c.h.b16 %v79
    %v334 = vunpack.c.l.b16 %v80
    %v335 = vunpack.c.l.b16 %v81
    %v336 = vunpack.c.h.b16 %v81
    %v337 = vunpack.c.l.b16 %v82
    %v338 = vunpack.c.h.b16 %v82
    %v339 = vunpack.c.l.b16 %v83
    %v340 = vunpack.c.h.b16 %v83
    %v341 = vunpack.c.l.b16 %v84
    %v342 = vunpack.c.h.b16 %v84
    %v343 = vunpack.c.l.b16 %v85
    %v344 = vunpack.c.l.b16 %v86
    %v345 = vunpack.c.h.b16 %v86
    %v346 = vunpack.c.l.b16 %v87
    %v347 = vunpack.c.h.b16 %v87
    %v348 = vunpack.c.l.b16 %v88
    %v349 = vunpack.c.h.b16 %v88
    %v350 = vunpack.c.l.b16 %v89
    %v351 = vunpack.c.h.b16 %v89
    %v352 = vunpack.c.l.b16 %v90
    %v353 = vpack.c.b16 %v290, %v281
    %v354 = vpack.c.b16 %v291, %v282
    %v355 = vpack.c.b16 %v292, %v283
    %v356 = vpack.c.b16 %v293, %v284
    %v357 = vpack.c.b16 %v294, %v285
    %v358 = vpack.c.b16 %v295, %v286
    %v359 = vpack.c.b16 %v296, %v287
    %v360 = vpack.c.b16 %v297, %v288
    %v361 = vpack.c.b16 %v298, %v289
    %v362 = vpack.c.b16 %v308, %v299
    %v363 = vpack.c.b16 %v309, %v300
    %v364 = vpack.c.b16 %v310, %v301
    %v365 = vpack.c.b16 %v311, %v302
    %v366 = vpack.c.b16 %v312, %v303
    %v367 = vpack.c.b16 %v313, %v304
    %v368 = vpack.c.b16 %v314, %v305
    %v369 = vpack.c.b16 %v315, %v306
    %v370 = vpack.c.b16 %v316, %v307
    %v371 = vpack.c.b16 %v326, %v317
    %v372 = vpack.c.b16 %v327, %v318
    %v373 = vpack.c.b16 %v328, %v319
    %v374 = vpack.c.b16 %v329, %v320
    %v375 = vpack.c.b16 %v330, %v321
    %v376 = vpack.c.b16 %v331, %v322
    %v377 = vpack.c.b16 %v332, %v323
    %v378 = vpack.c.b16 %v333, %v324
    %v379 = vpack.c.b16 %v334, %v325
    %v380 = vpack.c.b16 %v344, %v335
    %v381 = vpack.c.b16 %v345, %v336
    %v382 = vpack.c.b16 %v346, %v337
    %v383 = vpack.c.b16 %v347, %v338
    %v384 = vpack.c.b16 %v348, %v339
    %v385 = vpack.c.b16 %v349, %v340
    %v386 = vpack.c.b16 %v350, %v341
    %v387 = vpack.c.b16 %v351, %v342
    %v388 = vpack.c.b16 %v352, %v343
    %v569 = vunpack.c.l.b16 %v91
    %v570 = vunpack.c.h.b16 %v91
    %v571 = vunpack.c.l.b16 %v92
    %v572 = vunpack.c.h.b16 %v92
    %v573 = vunpack.c.l.b16 %v93
    %v574 = vunpack.c.h.b16 %v93
    %v575 = vunpack.c.l.b16 %v94
    %v576 = vunpack.c.h.b16 %v94
    %v577 = vunpack.c.l.b16 %v95
    %v578 = vunpack.c.h.b16 %v95
    %v579 = vunpack.c.l.b16 %v96
    %v580 = vunpack.c.h.b16 %v96
    %v581 = vunpack.c.l.b16 %v97
    %v582 = vunpack.c.h.b16 %v97
    %v583 = vunpack.c.l.b16 %v98
    %v584 = vunpack.c.h.b16 %v98
    %v585 = vunpack.c.l.b16 %v99
    %v586 = vunpack.c.h.b16 %v99
    %v587 = vunpack.c.l.b16 %v100
    %v588 = vunpack.c.h.b16 %v100
    %v589 = vunpack.c.l.b16 %v101
    %v590 = vunpack.c.h.b16 %v101
    %v591 = vunpack.c.l.b16 %v102
    %v592 = vunpack.c.h.b16 %v102
    %v593 = vunpack.c.l.b16 %v103
    %v594 = vunpack.c.h.b16 %v103
    %v595 = vunpack.c.l.b16 %v104
    %v596 = vunpack.c.h.b16 %v104
    %v597 = vunpack.c.l.b16 %v105
    %v598 = vunpack.c.h.b16 %v105
    %v599 = vunpack.c.l.b16 %v106
    %v600 = vunpack.c.h.b16 %v106
    %v601 = vunpack.c.l.b16 %v107
    %v602 = vunpack.c.h.b16 %v107
    %v603 = vunpack.c.l.b16 %v108
    %v604 = vunpack.c.h.b16 %v108
    %v605 = vunpack.c.l.b16 %v109
    %v606 = vunpack.c.h.b16 %v109
    %v607 = vunpack.c.l.b16 %v110
    %v608 = vunpack.c.h.b16 %v110
    %v609 = vunpack.c.l.b16 %v111
    %v610 = vunpack.c.h.b16 %v111
    %v611 = vunpack.c.l.b16 %v112
    %v612 = vunpack.c.h.b16 %v112
    %v613 = vunpack.c.l.b16 %v113
    %v614 = vunpack.c.h.b16 %v113
    %v615 = vunpack.c.l.b16 %v114
    %v616 = vunpack.c.h.b16 %v114
    %v617 = vunpack.c.l.b16 %v115
    %v618 = vunpack.c.h.b16 %v115
    %v619 = vunpack.c.l.b16 %v116
    %v620 = vunpack.c.h.b16 %v116
    %v621 = vunpack.c.l.b16 %v117
    %v622 = vunpack.c.h.b16 %v117
    %v623 = vunpack.c.l.b16 %v118
    %v624 = vunpack.c.h.b16 %v118
    %v625 = vunpack.c.l.b16 %v119
    %v626 = vunpack.c.h.b16 %v119
    %v627 = vunpack.c.l.b16 %v120
    %v628 = vunpack.c.h.b16 %v120
    %v629 = vunpack.c.l.b16 %v121
    %v630 = vunpack.c.h.b16 %v121
    %v631 = vunpack.c.l.b16 %v122
    %v632 = vunpack.c.h.b16 %v122
    %v633 = vunpack.c.l.b16 %v123
    %v634 = vunpack.c.h.b16 %v123
    %v635 = vunpack.c.l.b16 %v124
    %v636 = vunpack.c.h.b16 %v124
    %v637 = vunpack.c.l.b16 %v125
    %v638 = vunpack.c.h.b16 %v125
    %v639 = vunpack.c.l.b16 %v126
    %v640 = vunpack.c.h.b16 %v126
    %v641 = vunpack.c.l.b16 %v127
    %v642 = vunpack.c.h.b16 %v127
    %v643 = vunpack.c.l.b16 %v128
    %v644 = vunpack.c.h.b16 %v128
    %v645 = vunpack.c.l.b16 %v129
    %v646 = vunpack.c.h.b16 %v129
    %v647 = vunpack.c.l.b16 %v130
    %v648 = vunpack.c.h.b16 %v130
    %v649 = vunpack.c.l.b16 %v131
    %v650 = vunpack.c.h.b16 %v131
    %v651 = vunpack.c.l.b16 %v132
    %v652 = vunpack.c.h.b16 %v132
    %v653 = vunpack.c.l.b16 %v133
    %v654 = vunpack.c.h.b16 %v133
    %v655 = vunpack.c.l.b16 %v134
    %v656 = vunpack.c.h.b16 %v134
    %v657 = vunpack.c.l.b16 %v135
    %v658 = vunpack.c.h.b16 %v135
    %v659 = vunpack.c.l.b16 %v136
    %v660 = vunpack.c.h.b16 %v136
    %v661 = vunpack.c.l.b16 %v137
    %v662 = vunpack.c.h.b16 %v137
    %v663 = vunpack.c.l.b16 %v138
    %v664 = vunpack.c.h.b16 %v138
    %v665 = vunpack.c.l.b16 %v139
    %v666 = vunpack.c.h.b16 %v139
    %v667 = vunpack.c.l.b16 %v140
    %v668 = vunpack.c.h.b16 %v140
    %v669 = vunpack.c.l.b16 %v141
    %v670 = vunpack.c.h.b16 %v141
    %v671 = vunpack.c.l.b16 %v142
    %v672 = vunpack.c.h.b16 %v142
    %v673 = vunpack.c.l.b16 %v143
    %v674 = vunpack.c.h.b16 %v143
    %v675 = vunpack.c.l.b16 %v144
    %v676 = vunpack.c.h.b16 %v144
    %v677 = vunpack.c.l.b16 %v145
    %v678 = vunpack.c.h.b16 %v145
    %v679 = vunpack.c.l.b16 %v146
    %v680 = vunpack.c.h.b16 %v146
    %v681 = vunpack.c.l.b16 %v147
    %v682 = vunpack.c.h.b16 %v147
    %v683 = vunpack.c.l.b16 %v148
    %v684 = vunpack.c.h.b16 %v148
    %v685 = vunpack.c.l.b16 %v149
    %v686 = vunpack.c.h.b16 %v149
    %v687 = vunpack.c.l.b16 %v150
    %v688 = vunpack.c.h.b16 %v150
    %v689 = vunpack.c.l.b16 %v151
    %v690 = vunpack.c.h.b16 %v151
    %v691 = vunpack.c.l.b16 %v152
    %v692 = vunpack.c.h.b16 %v152
    %v693 = vunpack.c.l.b16 %v153
    %v694 = vunpack.c.h.b16 %v153
    %v695 = vunpack.c.l.b16 %v154
    %v696 = vunpack.c.h.b16 %v154
    %v697 = vunpack.c.l.b16 %v155
    %v698 = vunpack.c.h.b16 %v155
    %v699 = vunpack.c.l.b16 %v156
    %v700 = vunpack.c.h.b16 %v156
    %v701 = vunpack.c.l.b16 %v157
    %v702 = vunpack.c.h.b16 %v157
    %v703 = vunpack.c.l.b16 %v158
    %v704 = vunpack.c.h.b16 %v158
    %v705 = vunpack.c.l.b16 %v159
    %v706 = vunpack.c.h.b16 %v159
    %v707 = vunpack.c.l.b16 %v160
    %v708 = vunpack.c.h.b16 %v160
    %v709 = vunpack.c.l.b16 %v161
    %v710 = vunpack.c.h.b16 %v161
    %v711 = vunpack.c.l.b16 %v162
    %v712 = vunpack.c.h.b16 %v162
    %v713 = vunpack.c.l.b16 %v163
    %v714 = vunpack.c.h.b16 %v163
    %v715 = vunpack.c.l.b16 %v164
    %v716 = vunpack.c.h.b16 %v164
    %v717 = vunpack.c.l.b16 %v165
    %v718 = vunpack.c.h.b16 %v165
    %v719 = vunpack.c.l.b16 %v166
    %v720 = vunpack.c.h.b16 %v166
    %v721 = vunpack.c.l.b16 %v167
    %v722 = vunpack.c.h.b16 %v167
    %v723 = vunpack.c.l.b16 %v168
    %v724 = vunpack.c.h.b16 %v168
    %v725 = vunpack.c.l.b16 %v169
    %v726 = vunpack.c.h.b16 %v169
    %v727 = vunpack.c.l.b16 %v170
    %v728 = vunpack.c.h.b16 %v170
    %v729 = vunpack.c.l.b16 %v171
    %v730 = vunpack.c.h.b16 %v171
    %v731 = vunpack.c.l.b16 %v172
    %v732 = vunpack.c.h.b16 %v172
    %v733 = vunpack.c.l.b16 %v173
    %v734 = vunpack.c.h.b16 %v173
    %v735 = vunpack.c.l.b16 %v174
    %v736 = vunpack.c.h.b16 %v174
    %v737 = vunpack.c.l.b16 %v175
    %v738 = vunpack.c.h.b16 %v175
    %v739 = vunpack.c.l.b16 %v176
    %v740 = vunpack.c.h.b16 %v176
    %v741 = vunpack.c.l.b16 %v177
    %v742 = vunpack.c.h.b16 %v177
    %v743 = vunpack.c.l.b16 %v178
    %v744 = vunpack.c.h.b16 %v178
    %v745 = vunpack.c.l.b16 %v179
    %v746 = vunpack.c.h.b16 %v179
    %v747 = vunpack.c.l.b16 %v180
    %v748 = vunpack.c.h.b16 %v180
    %v749 = vunpack.c.l.b16 %v181
    %v750 = vunpack.c.h.b16 %v181
    %v751 = vunpack.c.l.b16 %v182
    %v752 = vunpack.c.h.b16 %v182
    %v753 = vunpack.c.l.b16 %v183
    %v754 = vunpack.c.h.b16 %v183
    %v755 = vunpack.c.l.b16 %v184
    %v756 = vunpack.c.h.b16 %v184
    %v757 = vunpack.c.l.b16 %v185
    %v758 = vunpack.c.h.b16 %v185
    %v759 = vunpack.c.l.b16 %v186
    %v760 = vunpack.c.h.b16 %v186
    %v761 = vunpack.c.l.b16 %v187
    %v762 = vunpack.c.h.b16 %v187
    %v763 = vunpack.c.l.b16 %v188
    %v764 = vunpack.c.h.b16 %v188
    %v765 = vunpack.c.l.b16 %v189
    %v766 = vunpack.c.h.b16 %v189
    %v767 = vunpack.c.l.b16 %v190
    %v768 = vunpack.c.h.b16 %v190
    %v769 = vunpack.c.l.b16 %v191
    %v770 = vunpack.c.h.b16 %v191
    %v771 = vunpack.c.l.b16 %v192
    %v772 = vunpack.c.h.b16 %v192
    %v773 = vunpack.c.l.b16 %v193
    %v774 = vunpack.c.h.b16 %v193
    %v775 = vunpack.c.l.b16 %v194
    %v776 = vunpack.c.h.b16 %v194
    %v777 = vunpack.c.l.b16 %v195
    %v778 = vunpack.c.h.b16 %v195
    %v779 = vunpack.c.l.b16 %v196
    %v780 = vunpack.c.h.b16 %v196
    %v781 = vunpack.c.l.b16 %v197
    %v782 = vunpack.c.h.b16 %v197
    %v783 = vunpack.c.l.b16 %v198
    %v784 = vunpack.c.h.b16 %v198
    %v785 = vunpack.c.l.b16 %v199
    %v786 = vunpack.c.h.b16 %v199
    %v787 = vunpack.c.l.b16 %v200
    %v788 = vunpack.c.h.b16 %v200
    %v789 = vunpack.c.l.b16 %v201
    %v790 = vunpack.c.h.b16 %v201
    %v791 = vunpack.c.l.b16 %v202
    %v792 = vunpack.c.h.b16 %v202
    %v793 = vunpack.c.l.b16 %v203
    %v794 = vunpack.c.h.b16 %v203
    %v795 = vunpack.c.l.b16 %v204
    %v796 = vunpack.c.h.b16 %v204
    %v797 = vunpack.c.l.b16 %v205
    %v798 = vunpack.c.h.b16 %v205
    %v799 = vunpack.c.l.b16 %v206
    %v800 = vunpack.c.h.b16 %v206
    %v801 = vunpack.c.l.b16 %v207
    %v802 = vunpack.c.h.b16 %v207
    %v803 = vunpack.c.l.b16 %v208
    %v804 = vunpack.c.h.b16 %v208
    %v805 = vunpack.c.l.b16 %v209
    %v806 = vunpack.c.h.b16 %v209
    %v807 = vunpack.c.l.b16 %v210
    %v808 = vunpack.c.h.b16 %v210
    %v809 = vunpack.c.l.b16 %v211
    %v810 = vunpack.c.h.b16 %v211
    %v811 = vunpack.c.l.b16 %v212
    %v812 = vunpack.c.h.b16 %v212
    %v813 = vunpack.c.l.b16 %v213
    %v814 = vunpack.c.h.b16 %v213
    %v815 = vunpack.c.l.b16 %v214
    %v816 = vunpack.c.h.b16 %v214
    %v817 = vunpack.c.l.b16 %v215
    %v818 = vunpack.c.h.b16 %v215
    %v819 = vunpack.c.l.b16 %v216
    %v820 = vunpack.c.h.b16 %v216
    %v821 = vunpack.c.l.b16 %v217
    %v822 = vunpack.c.h.b16 %v217
    %v823 = vunpack.c.l.b16 %v218
    %v824 = vunpack.c.h.b16 %v218
    %v825 = vunpack.c.l.b16 %v219
    %v826 = vunpack.c.h.b16 %v219
    %v827 = vunpack.c.l.b16 %v220
    %v828 = vunpack.c.h.b16 %v220
    %v829 = vunpack.c.l.b16 %v221
    %v830 = vunpack.c.h.b16 %v221
    %v831 = vunpack.c.l.b16 %v222
    %v832 = vunpack.c.h.b16 %v222
    %v833 = vunpack.c.l.b16 %v223
    %v834 = vunpack.c.h.b16 %v223
    %v835 = vunpack.c.l.b16 %v224
    %v836 = vunpack.c.h.b16 %v224
    %v837 = vunpack.c.l.b16 %v225
    %v838 = vunpack.c.h.b16 %v225
    %v839 = vunpack.c.l.b16 %v226
    %v840 = vunpack.c.h.b16 %v226
    %v841 = vunpack.c.l.b16 %v227
    %v842 = vunpack.c.h.b16 %v227
    %v843 = vunpack.c.l.b16 %v228
    %v844 = vunpack.c.h.b16 %v228
    %v845 = vunpack.c.l.b16 %v229
    %v846 = vunpack.c.h.b16 %v229
    %v847 = vunpack.c.l.b16 %v230
    %v848 = vunpack.c.h.b16 %v230
    %v849 = vunpack.c.l.b16 %v231
    %v850 = vunpack.c.h.b16 %v231
    %v851 = vunpack.c.l.b16 %v232
    %v852 = vunpack.c.h.b16 %v232
    %v853 = vunpack.c.l.b16 %v233
    %v854 = vunpack.c.h.b16 %v233
    %v855 = vunpack.c.l.b16 %v234
    %v856 = vunpack.c.h.b16 %v234
    %v857 = vpack.c.b16 %v571, %v569
    %v858 = vpack.c.b16 %v572, %v570
    %v859 = vpack.c.b16 %v575, %v573
    %v860 = vpack.c.b16 %v576, %v574
    %v861 = vpack.c.b16 %v579, %v577
    %v862 = vpack.c.b16 %v580, %v578
    %v863 = vpack.c.b16 %v583, %v581
    %v864 = vpack.c.b16 %v584, %v582
    %v865 = vpack.c.b16 %v587, %v585
    %v866 = vpack.c.b16 %v588, %v586
    %v867 = vpack.c.b16 %v591, %v589
    %v868 = vpack.c.b16 %v592, %v590
    %v869 = vpack.c.b16 %v595, %v593
    %v870 = vpack.c.b16 %v596, %v594
    %v871 = vpack.c.b16 %v599, %v597
    %v872 = vpack.c.b16 %v600, %v598
    %v873 = vpack.c.b16 %v603, %v601
    %v874 = vpack.c.b16 %v604, %v602
    %v875 = vpack.c.b16 %v607, %v605
    %v876 = vpack.c.b16 %v608, %v606
    %v877 = vpack.c.b16 %v611, %v609
    %v878 = vpack.c.b16 %v612, %v610
    %v879 = vpack.c.b16 %v615, %v613
    %v880 = vpack.c.b16 %v616, %v614
    %v881 = vpack.c.b16 %v619, %v617
    %v882 = vpack.c.b16 %v620, %v618
    %v883 = vpack.c.b16 %v623, %v621
    %v884 = vpack.c.b16 %v624, %v622
    %v885 = vpack.c.b16 %v627, %v625
    %v886 = vpack.c.b16 %v628, %v626
    %v887 = vpack.c.b16 %v631, %v629
    %v888 = vpack.c.b16 %v632, %v630
    %v889 = vpack.c.b16 %v635, %v633
    %v890 = vpack.c.b16 %v636, %v634
    %v891 = vpack.c.b16 %v639, %v637
    %v892 = vpack.c.b16 %v640, %v638
    %v893 = vpack.c.b16 %v643, %v641
    %v894 = vpack.c.b16 %v644, %v642
    %v895 = vpack.c.b16 %v647, %v645
    %v896 = vpack.c.b16 %v648, %v646
    %v897 = vpack.c.b16 %v651, %v649
    %v898 = vpack.c.b16 %v652, %v650
    %v899 = vpack.c.b16 %v655, %v653
    %v900 = vpack.c.b16 %v656, %v654
    %v901 = vpack.c.b16 %v659, %v657
    %v902 = vpack.c.b16 %v660, %v658
    %v903 = vpack.c.b16 %v663, %v661
    %v904 = vpack.c.b16 %v664, %v662
    %v905 = vpack.c.b16 %v667, %v665
    %v906 = vpack.c.b16 %v668, %v666
    %v907 = vpack.c.b16 %v671, %v669
    %v908 = vpack.c.b16 %v672, %v670
    %v909 = vpack.c.b16 %v675, %v673
    %v910 = vpack.c.b16 %v676, %v674
    %v911 = vpack.c.b16 %v679, %v677
    %v912 = vpack.c.b16 %v680, %v678
    %v913 = vpack.c.b16 %v683, %v681
    %v914 = vpack.c.b16 %v684, %v682
    %v915 = vpack.c.b16 %v687, %v685
    %v916 = vpack.c.b16 %v688, %v686
    %v917 = vpack.c.b16 %v691, %v689
    %v918 = vpack.c.b16 %v692, %v690
    %v919 = vpack.c.b16 %v695, %v693
    %v920 = vpack.c.b16 %v696, %v694
    %v921 = vpack.c.b16 %v699, %v697
    %v922 = vpack.c.b16 %v700, %v698
    %v923 = vpack.c.b16 %v703, %v701
    %v924 = vpack.c.b16 %v704, %v702
    %v925 = vpack.c.b16 %v707, %v705
    %v926 = vpack.c.b16 %v708, %v706
    %v927 = vpack.c.b16 %v711, %v709
    %v928 = vpack.c.b16 %v712, %v710
    %v929 = vpack.c.b16 %v715, %v713
    %v930 = vpack.c.b16 %v716, %v714
    %v931 = vpack.c.b16 %v719, %v717
    %v932 = vpack.c.b16 %v720, %v718
    %v933 = vpack.c.b16 %v723, %v721
    %v934 = vpack.c.b16 %v724, %v722
    %v935 = vpack.c.b16 %v727, %v725
    %v936 = vpack.c.b16 %v728, %v726
    %v937 = vpack.c.b16 %v731, %v729
    %v938 = vpack.c.b16 %v732, %v730
    %v939 = vpack.c.b16 %v735, %v733
    %v940 = vpack.c.b16 %v736, %v734
    %v941 = vpack.c.b16 %v739, %v737
    %v942 = vpack.c.b16 %v740, %v738
    %v943 = vpack.c.b16 %v743, %v741
    %v944 = vpack.c.b16 %v744, %v742
    %v945 = vpack.c.b16 %v747, %v745
    %v946 = vpack.c.b16 %v748, %v746
    %v947 = vpack.c.b16 %v751, %v749
    %v948 = vpack.c.b16 %v752, %v750
    %v949 = vpack.c.b16 %v755, %v753
    %v950 = vpack.c.b16 %v756, %v754
    %v951 = vpack.c.b16 %v759, %v757
    %v952 = vpack.c.b16 %v760, %v758
    %v953 = vpack.c.b16 %v763, %v761
    %v954 = vpack.c.b16 %v764, %v762
    %v955 = vpack.c.b16 %v767, %v765
    %v956 = vpack.c.b16 %v768, %v766
    %v957 = vpack.c.b16 %v771, %v769
    %v958 = vpack.c.b16 %v772, %v770
    %v959 = vpack.c.b16 %v775, %v773
    %v960 = vpack.c.b16 %v776, %v774
    %v961 = vpack.c.b16 %v779, %v777
    %v962 = vpack.c.b16 %v780, %v778
    %v963 = vpack.c.b16 %v783, %v781
    %v964 = vpack.c.b16 %v784, %v782
    %v965 = vpack.c.b16 %v787, %v785
    %v966 = vpack.c.b16 %v788, %v786
    %v967 = vpack.c.b16 %v791, %v789
    %v968 = vpack.c.b16 %v792, %v790
    %v969 = vpack.c.b16 %v795, %v793
    %v970 = vpack.c.b16 %v796, %v794
    %v971 = vpack.c.b16 %v799, %v797
    %v972 = vpack.c.b16 %v800, %v798
    %v973 = vpack.c.b16 %v803, %v801
    %v974 = vpack.c.b16 %v804, %v802
    %v975 = vpack.c.b16 %v807, %v805
    %v976 = vpack.c.b16 %v808, %v806
    %v977 = vpack.c.b16 %v811, %v809
    %v978 = vpack.c.b16 %v812, %v810
    %v979 = vpack.c.b16 %v815, %v813
    %v980 = vpack.c.b16 %v816, %v814
    %v981 = vpack.c.b16 %v819, %v817
    %v982 = vpack.c.b16 %v820, %v818
    %v983 = vpack.c.b16 %v823, %v821
    %v984 = vpack.c.b16 %v824, %v822
    %v985 = vpack.c.b16 %v827, %v825
    %v986 = vpack.c.b16 %v828, %v826
    %v987 = vpack.c.b16 %v831, %v829
    %v988 = vpack.c.b16 %v832, %v830
    %v989 = vpack.c.b16 %v835, %v833
    %v990 = vpack.c.b16 %v836, %v834
    %v991 = vpack.c.b16 %v839, %v837
    %v992 = vpack.c.b16 %v840, %v838
    %v993 = vpack.c.b16 %v843, %v841
    %v994 = vpack.c.b16 %v844, %v842
    %v995 = vpack.c.b16 %v847, %v845
    %v996 = vpack.c.b16 %v848, %v846
    %v997 = vpack.c.b16 %v851, %v849
    %v998 = vpack.c.b16 %v852, %v850
    %v999 = vpack.c.b16 %v855, %v853
    %v1000 = vpack.c.b16 %v856, %v854
    %1145 = vmatpush.bf16.msra.mxu0 %v871
    %1146 = vmatpush.bf16.msra.mxu0 %v869
    %1147 = vmatpush.bf16.msra.mxu0 %v867
    %1148 = vmatpush.bf16.msra.mxu0 %v865
    %1149 = vmatpush.bf16.msra.mxu0 %v863
    %1150 = vmatpush.bf16.msra.mxu0 %v861
    %1151 = vmatpush.bf16.msra.mxu0 %v859
    %1152 = vmatpush.bf16.msra.mxu0 %v857
    %1153 = vmatmul.bf16.gmra.mxu0 %v353
    %v1154 = vpop.f32.mrf.mxu0
    %v1155 = vadd.f32 %v237, %v1154
    %v1156 = vpop.f32.mrf.mxu0
    %v1157 = vadd.f32 %v237, %v1156
    %1158 = vmatmul.bf16.gmra.mxu0 %v362
    %v1159 = vpop.f32.mrf.mxu0
    %v1160 = vadd.f32 %v237, %v1159
    %v1161 = vpop.f32.mrf.mxu0
    %v1162 = vadd.f32 %v237, %v1161
    %1163 = vmatmul.bf16.gmra.mxu0 %v371
    %v1164 = vpop.f32.mrf.mxu0
    %v1165 = vadd.f32 %v237, %v1164
    %v1166 = vpop.f32.mrf.mxu0
    %v1167 = vadd.f32 %v237, %v1166
    %1168 = vmatmul.bf16.gmra.mxu0 %v380
    %v1169 = vpop.f32.mrf.mxu0
    %v1170 = vadd.f32 %v237, %v1169
    %v1171 = vpop.f32.mrf.mxu0
    %v1172 = vadd.f32 %v237, %v1171
    %1173 = vdwg.mxu0
    %1174 = vmatpush.bf16.msra.mxu0 %v887
    %1175 = vmatpush.bf16.msra.mxu0 %v885
    %1176 = vmatpush.bf16.msra.mxu0 %v883
    %1177 = vmatpush.bf16.msra.mxu0 %v881
    %1178 = vmatpush.bf16.msra.mxu0 %v879
    %1179 = vmatpush.bf16.msra.mxu0 %v877
    %1180 = vmatpush.bf16.msra.mxu0 %v875
    %1181 = vmatpush.bf16.msra.mxu0 %v873
    %1182 = vmatmul.bf16.gmra.mxu0 %v354
    %v1183 = vpop.f32.mrf.mxu0
    %v1184 = vadd.f32 %v1155, %v1183
    %v1185 = vpop.f32.mrf.mxu0
    %v1186 = vadd.f32 %v1157, %v1185
    %1187 = vmatmul.bf16.gmra.mxu0 %v363
    %v1188 = vpop.f32.mrf.mxu0
    %v1189 = vadd.f32 %v1160, %v1188
    %v1190 = vpop.f32.mrf.mxu0
    %v1191 = vadd.f32 %v1162, %v1190
    %1192 = vmatmul.bf16.gmra.mxu0 %v372
    %v1193 = vpop.f32.mrf.mxu0
    %v1194 = vadd.f32 %v1165, %v1193
    %v1195 = vpop.f32.mrf.mxu0
    %v1196 = vadd.f32 %v1167, %v1195
    %1197 = vmatmul.bf16.gmra.mxu0 %v381
    %v1198 = vpop.f32.mrf.mxu0
    %v1199 = vadd.f32 %v1170, %v1198
    %v1200 = vpop.f32.mrf.mxu0
    %v1201 = vadd.f32 %v1172, %v1200
    %1202 = vdwg.mxu0
    %1203 = vmatpush.bf16.msra.mxu0 %v903
    %1204 = vmatpush.bf16.msra.mxu0 %v901
    %1205 = vmatpush.bf16.msra.mxu0 %v899
    %1206 = vmatpush.bf16.msra.mxu0 %v897
    %1207 = vmatpush.bf16.msra.mxu0 %v895
    %1208 = vmatpush.bf16.msra.mxu0 %v893
    %1209 = vmatpush.bf16.msra.mxu0 %v891
    %1210 = vmatpush.bf16.msra.mxu0 %v889
    %1211 = vmatmul.bf16.gmra.mxu0 %v355
    %v1212 = vpop.f32.mrf.mxu0
    %v1213 = vadd.f32 %v1184, %v1212
    %v1214 = vpop.f32.mrf.mxu0
    %v1215 = vadd.f32 %v1186, %v1214
    %1216 = vmatmul.bf16.gmra.mxu0 %v364
    %v1217 = vpop.f32.mrf.mxu0
    %v1218 = vadd.f32 %v1189, %v1217
    %v1219 = vpop.f32.mrf.mxu0
    %v1220 = vadd.f32 %v1191, %v1219
    %1221 = vmatmul.bf16.gmra.mxu0 %v373
    %v1222 = vpop.f32.mrf.mxu0
    %v1223 = vadd.f32 %v1194, %v1222
    %v1224 = vpop.f32.mrf.mxu0
    %v1225 = vadd.f32 %v1196, %v1224
    %1226 = vmatmul.bf16.gmra.mxu0 %v382
    %v1227 = vpop.f32.mrf.mxu0
    %v1228 = vadd.f32 %v1199, %v1227
    %v1229 = vpop.f32.mrf.mxu0
    %v1230 = vadd.f32 %v1201, %v1229
    %1231 = vdwg.mxu0
    %1232 = vmatpush.bf16.msra.mxu0 %v919
    %1233 = vmatpush.bf16.msra.mxu0 %v917
    %1234 = vmatpush.bf16.msra.mxu0 %v915
    %1235 = vmatpush.bf16.msra.mxu0 %v913
    %1236 = vmatpush.bf16.msra.mxu0 %v911
    %1237 = vmatpush.bf16.msra.mxu0 %v909
    %1238 = vmatpush.bf16.msra.mxu0 %v907
    %1239 = vmatpush.bf16.msra.mxu0 %v905
    %1240 = vmatmul.bf16.gmra.mxu0 %v356
    %v1241 = vpop.f32.mrf.mxu0
    %v1242 = vadd.f32 %v1213, %v1241
    %v1243 = vpop.f32.mrf.mxu0
    %v1244 = vadd.f32 %v1215, %v1243
    %1245 = vmatmul.bf16.gmra.mxu0 %v365
    %v1246 = vpop.f32.mrf.mxu0
    %v1247 = vadd.f32 %v1218, %v1246
    %v1248 = vpop.f32.mrf.mxu0
    %v1249 = vadd.f32 %v1220, %v1248
    %1250 = vmatmul.bf16.gmra.mxu0 %v374
    %v1251 = vpop.f32.mrf.mxu0
    %v1252 = vadd.f32 %v1223, %v1251
    %v1253 = vpop.f32.mrf.mxu0
    %v1254 = vadd.f32 %v1225, %v1253
    %1255 = vmatmul.bf16.gmra.mxu0 %v383
    %v1256 = vpop.f32.mrf.mxu0
    %v1257 = vadd.f32 %v1228, %v1256
    %v1258 = vpop.f32.mrf.mxu0
    %v1259 = vadd.f32 %v1230, %v1258
    %1260 = vdwg.mxu0
    %1261 = vmatpush.bf16.msra.mxu0 %v935
    %1262 = vmatpush.bf16.msra.mxu0 %v933
    %1263 = vmatpush.bf16.msra.mxu0 %v931
    %1264 = vmatpush.bf16.msra.mxu0 %v929
    %1265 = vmatpush.bf16.msra.mxu0 %v927
    %1266 = vmatpush.bf16.msra.mxu0 %v925
    %1267 = vmatpush.bf16.msra.mxu0 %v923
    %1268 = vmatpush.bf16.msra.mxu0 %v921
    %1269 = vmatmul.bf16.gmra.mxu0 %v357
    %v1270 = vpop.f32.mrf.mxu0
    %v1271 = vadd.f32 %v1242, %v1270
    %v1272 = vpop.f32.mrf.mxu0
    %v1273 = vadd.f32 %v1244, %v1272
    %1274 = vmatmul.bf16.gmra.mxu0 %v366
    %v1275 = vpop.f32.mrf.mxu0
    %v1276 = vadd.f32 %v1247, %v1275
    %v1277 = vpop.f32.mrf.mxu0
    %v1278 = vadd.f32 %v1249, %v1277
    %1279 = vmatmul.bf16.gmra.mxu0 %v375
    %v1280 = vpop.f32.mrf.mxu0
    %v1281 = vadd.f32 %v1252, %v1280
    %v1282 = vpop.f32.mrf.mxu0
    %v1283 = vadd.f32 %v1254, %v1282
    %1284 = vmatmul.bf16.gmra.mxu0 %v384
    %v1285 = vpop.f32.mrf.mxu0
    %v1286 = vadd.f32 %v1257, %v1285
    %v1287 = vpop.f32.mrf.mxu0
    %v1288 = vadd.f32 %v1259, %v1287
    %1289 = vdwg.mxu0
    %1290 = vmatpush.bf16.msra.mxu0 %v951
    %1291 = vmatpush.bf16.msra.mxu0 %v949
    %1292 = vmatpush.bf16.msra.mxu0 %v947
    %1293 = vmatpush.bf16.msra.mxu0 %v945
    %1294 = vmatpush.bf16.msra.mxu0 %v943
    %1295 = vmatpush.bf16.msra.mxu0 %v941
    %1296 = vmatpush.bf16.msra.mxu0 %v939
    %1297 = vmatpush.bf16.msra.mxu0 %v937
    %1298 = vmatmul.bf16.gmra.mxu0 %v358
    %v1299 = vpop.f32.mrf.mxu0
    %v1300 = vadd.f32 %v1271, %v1299
    %v1301 = vpop.f32.mrf.mxu0
    %v1302 = vadd.f32 %v1273, %v1301
    %1303 = vmatmul.bf16.gmra.mxu0 %v367
    %v1304 = vpop.f32.mrf.mxu0
    %v1305 = vadd.f32 %v1276, %v1304
    %v1306 = vpop.f32.mrf.mxu0
    %v1307 = vadd.f32 %v1278, %v1306
    %1308 = vmatmul.bf16.gmra.mxu0 %v376
    %v1309 = vpop.f32.mrf.mxu0
    %v1310 = vadd.f32 %v1281, %v1309
    %v1311 = vpop.f32.mrf.mxu0
    %v1312 = vadd.f32 %v1283, %v1311
    %1313 = vmatmul.bf16.gmra.mxu0 %v385
    %v1314 = vpop.f32.mrf.mxu0
    %v1315 = vadd.f32 %v1286, %v1314
    %v1316 = vpop.f32.mrf.mxu0
    %v1317 = vadd.f32 %v1288, %v1316
    %1318 = vdwg.mxu0
    %1319 = vmatpush.bf16.msra.mxu0 %v967
    %1320 = vmatpush.bf16.msra.mxu0 %v965
    %1321 = vmatpush.bf16.msra.mxu0 %v963
    %1322 = vmatpush.bf16.msra.mxu0 %v961
    %1323 = vmatpush.bf16.msra.mxu0 %v959
    %1324 = vmatpush.bf16.msra.mxu0 %v957
    %1325 = vmatpush.bf16.msra.mxu0 %v955
    %1326 = vmatpush.bf16.msra.mxu0 %v953
    %1327 = vmatmul.bf16.gmra.mxu0 %v359
    %v1328 = vpop.f32.mrf.mxu0
    %v1329 = vadd.f32 %v1300, %v1328
    %v1330 = vpop.f32.mrf.mxu0
    %v1331 = vadd.f32 %v1302, %v1330
    %1332 = vmatmul.bf16.gmra.mxu0 %v368
    %v1333 = vpop.f32.mrf.mxu0
    %v1334 = vadd.f32 %v1305, %v1333
    %v1335 = vpop.f32.mrf.mxu0
    %v1336 = vadd.f32 %v1307, %v1335
    %1337 = vmatmul.bf16.gmra.mxu0 %v377
    %v1338 = vpop.f32.mrf.mxu0
    %v1339 = vadd.f32 %v1310, %v1338
    %v1340 = vpop.f32.mrf.mxu0
    %v1341 = vadd.f32 %v1312, %v1340
    %1342 = vmatmul.bf16.gmra.mxu0 %v386
    %v1343 = vpop.f32.mrf.mxu0
    %v1344 = vadd.f32 %v1315, %v1343
    %v1345 = vpop.f32.mrf.mxu0
    %v1346 = vadd.f32 %v1317, %v1345
    %1347 = vdwg.mxu0
    %1348 = vmatpush.bf16.msra.mxu0 %v983
    %1349 = vmatpush.bf16.msra.mxu0 %v981
    %1350 = vmatpush.bf16.msra.mxu0 %v979
    %1351 = vmatpush.bf16.msra.mxu0 %v977
    %1352 = vmatpush.bf16.msra.mxu0 %v975
    %1353 = vmatpush.bf16.msra.mxu0 %v973
    %1354 = vmatpush.bf16.msra.mxu0 %v971
    %1355 = vmatpush.bf16.msra.mxu0 %v969
    %1356 = vmatmul.bf16.gmra.mxu0 %v360
    %v1357 = vpop.f32.mrf.mxu0
    %v1358 = vadd.f32 %v1329, %v1357
    %v1359 = vpop.f32.mrf.mxu0
    %v1360 = vadd.f32 %v1331, %v1359
    %1361 = vmatmul.bf16.gmra.mxu0 %v369
    %v1362 = vpop.f32.mrf.mxu0
    %v1363 = vadd.f32 %v1334, %v1362
    %v1364 = vpop.f32.mrf.mxu0
    %v1365 = vadd.f32 %v1336, %v1364
    %1366 = vmatmul.bf16.gmra.mxu0 %v378
    %v1367 = vpop.f32.mrf.mxu0
    %v1368 = vadd.f32 %v1339, %v1367
    %v1369 = vpop.f32.mrf.mxu0
    %v1370 = vadd.f32 %v1341, %v1369
    %1371 = vmatmul.bf16.gmra.mxu0 %v387
    %v1372 = vpop.f32.mrf.mxu0
    %v1373 = vadd.f32 %v1344, %v1372
    %v1374 = vpop.f32.mrf.mxu0
    %v1375 = vadd.f32 %v1346, %v1374
    %1376 = vdwg.mxu0
    %1377 = vmatpush.bf16.msra.mxu0 %v999
    %1378 = vmatpush.bf16.msra.mxu0 %v997
    %1379 = vmatpush.bf16.msra.mxu0 %v995
    %1380 = vmatpush.bf16.msra.mxu0 %v993
    %1381 = vmatpush.bf16.msra.mxu0 %v991
    %1382 = vmatpush.bf16.msra.mxu0 %v989
    %1383 = vmatpush.bf16.msra.mxu0 %v987
    %1384 = vmatpush.bf16.msra.mxu0 %v985
    %1385 = vmatmul.bf16.gmra.mxu0 %v361
    %v1386 = vpop.f32.mrf.mxu0
    %v1387 = vadd.f32 %v1358, %v1386
    %v1388 = vpop.f32.mrf.mxu0
    %v1389 = vadd.f32 %v1360, %v1388
    %1390 = vmatmul.bf16.gmra.mxu0 %v370
    %v1391 = vpop.f32.mrf.mxu0
    %v1392 = vadd.f32 %v1363, %v1391
    %v1393 = vpop.f32.mrf.mxu0
    %v1394 = vadd.f32 %v1365, %v1393
    %1395 = vmatmul.bf16.gmra.mxu0 %v379
    %v1396 = vpop.f32.mrf.mxu0
    %v1397 = vadd.f32 %v1368, %v1396
    %v1398 = vpop.f32.mrf.mxu0
    %v1399 = vadd.f32 %v1370, %v1398
    %1400 = vmatmul.bf16.gmra.mxu0 %v388
    %v1401 = vpop.f32.mrf.mxu0
    %v1402 = vadd.f32 %v1373, %v1401
    %v1403 = vpop.f32.mrf.mxu0
    %v1404 = vadd.f32 %v1375, %v1403
    %1405 = vdwg.mxu0
    %1406 = vmatpush.bf16.msra.mxu0 %v872
    %1407 = vmatpush.bf16.msra.mxu0 %v870
    %1408 = vmatpush.bf16.msra.mxu0 %v868
    %1409 = vmatpush.bf16.msra.mxu0 %v866
    %1410 = vmatpush.bf16.msra.mxu0 %v864
    %1411 = vmatpush.bf16.msra.mxu0 %v862
    %1412 = vmatpush.bf16.msra.mxu0 %v860
    %1413 = vmatpush.bf16.msra.mxu0 %v858
    %1414 = vmatmul.bf16.gmra.mxu0 %v353
    %v1415 = vpop.f32.mrf.mxu0
    %v1416 = vadd.f32 %v238, %v1415
    %v1417 = vpop.f32.mrf.mxu0
    %v1418 = vadd.f32 %v238, %v1417
    %1419 = vmatmul.bf16.gmra.mxu0 %v362
    %v1420 = vpop.f32.mrf.mxu0
    %v1421 = vadd.f32 %v238, %v1420
    %v1422 = vpop.f32.mrf.mxu0
    %v1423 = vadd.f32 %v238, %v1422
    %1424 = vmatmul.bf16.gmra.mxu0 %v371
    %v1425 = vpop.f32.mrf.mxu0
    %v1426 = vadd.f32 %v238, %v1425
    %v1427 = vpop.f32.mrf.mxu0
    %v1428 = vadd.f32 %v238, %v1427
    %1429 = vmatmul.bf16.gmra.mxu0 %v380
    %v1430 = vpop.f32.mrf.mxu0
    %v1431 = vadd.f32 %v238, %v1430
    %v1432 = vpop.f32.mrf.mxu0
    %v1433 = vadd.f32 %v238, %v1432
    %1434 = vdwg.mxu0
    %1435 = vmatpush.bf16.msra.mxu0 %v888
    %1436 = vmatpush.bf16.msra.mxu0 %v886
    %1437 = vmatpush.bf16.msra.mxu0 %v884
    %1438 = vmatpush.bf16.msra.mxu0 %v882
    %1439 = vmatpush.bf16.msra.mxu0 %v880
    %1440 = vmatpush.bf16.msra.mxu0 %v878
    %1441 = vmatpush.bf16.msra.mxu0 %v876
    %1442 = vmatpush.bf16.msra.mxu0 %v874
    %1443 = vmatmul.bf16.gmra.mxu0 %v354
    %v1444 = vpop.f32.mrf.mxu0
    %v1445 = vadd.f32 %v1416, %v1444
    %v1446 = vpop.f32.mrf.mxu0
    %v1447 = vadd.f32 %v1418, %v1446
    %1448 = vmatmul.bf16.gmra.mxu0 %v363
    %v1449 = vpop.f32.mrf.mxu0
    %v1450 = vadd.f32 %v1421, %v1449
    %v1451 = vpop.f32.mrf.mxu0
    %v1452 = vadd.f32 %v1423, %v1451
    %1453 = vmatmul.bf16.gmra.mxu0 %v372
    %v1454 = vpop.f32.mrf.mxu0
    %v1455 = vadd.f32 %v1426, %v1454
    %v1456 = vpop.f32.mrf.mxu0
    %v1457 = vadd.f32 %v1428, %v1456
    %1458 = vmatmul.bf16.gmra.mxu0 %v381
    %v1459 = vpop.f32.mrf.mxu0
    %v1460 = vadd.f32 %v1431, %v1459
    %v1461 = vpop.f32.mrf.mxu0
    %v1462 = vadd.f32 %v1433, %v1461
    %1463 = vdwg.mxu0
    %1464 = vmatpush.bf16.msra.mxu0 %v904
    %1465 = vmatpush.bf16.msra.mxu0 %v902
    %1466 = vmatpush.bf16.msra.mxu0 %v900
    %1467 = vmatpush.bf16.msra.mxu0 %v898
    %1468 = vmatpush.bf16.msra.mxu0 %v896
    %1469 = vmatpush.bf16.msra.mxu0 %v894
    %1470 = vmatpush.bf16.msra.mxu0 %v892
    %1471 = vmatpush.bf16.msra.mxu0 %v890
    %1472 = vmatmul.bf16.gmra.mxu0 %v355
    %v1473 = vpop.f32.mrf.mxu0
    %v1474 = vadd.f32 %v1445, %v1473
    %v1475 = vpop.f32.mrf.mxu0
    %v1476 = vadd.f32 %v1447, %v1475
    %1477 = vmatmul.bf16.gmra.mxu0 %v364
    %v1478 = vpop.f32.mrf.mxu0
    %v1479 = vadd.f32 %v1450, %v1478
    %v1480 = vpop.f32.mrf.mxu0
    %v1481 = vadd.f32 %v1452, %v1480
    %1482 = vmatmul.bf16.gmra.mxu0 %v373
    %v1483 = vpop.f32.mrf.mxu0
    %v1484 = vadd.f32 %v1455, %v1483
    %v1485 = vpop.f32.mrf.mxu0
    %v1486 = vadd.f32 %v1457, %v1485
    %1487 = vmatmul.bf16.gmra.mxu0 %v382
    %v1488 = vpop.f32.mrf.mxu0
    %v1489 = vadd.f32 %v1460, %v1488
    %v1490 = vpop.f32.mrf.mxu0
    %v1491 = vadd.f32 %v1462, %v1490
    %1492 = vdwg.mxu0
    %1493 = vmatpush.bf16.msra.mxu0 %v920
    %1494 = vmatpush.bf16.msra.mxu0 %v918
    %1495 = vmatpush.bf16.msra.mxu0 %v916
    %1496 = vmatpush.bf16.msra.mxu0 %v914
    %1497 = vmatpush.bf16.msra.mxu0 %v912
    %1498 = vmatpush.bf16.msra.mxu0 %v910
    %1499 = vmatpush.bf16.msra.mxu0 %v908
    %1500 = vmatpush.bf16.msra.mxu0 %v906
    %1501 = vmatmul.bf16.gmra.mxu0 %v356
    %v1502 = vpop.f32.mrf.mxu0
    %v1503 = vadd.f32 %v1474, %v1502
    %v1504 = vpop.f32.mrf.mxu0
    %v1505 = vadd.f32 %v1476, %v1504
    %1506 = vmatmul.bf16.gmra.mxu0 %v365
    %v1507 = vpop.f32.mrf.mxu0
    %v1508 = vadd.f32 %v1479, %v1507
    %v1509 = vpop.f32.mrf.mxu0
    %v1510 = vadd.f32 %v1481, %v1509
    %1511 = vmatmul.bf16.gmra.mxu0 %v374
    %v1512 = vpop.f32.mrf.mxu0
    %v1513 = vadd.f32 %v1484, %v1512
    %v1514 = vpop.f32.mrf.mxu0
    %v1515 = vadd.f32 %v1486, %v1514
    %1516 = vmatmul.bf16.gmra.mxu0 %v383
    %v1517 = vpop.f32.mrf.mxu0
    %v1518 = vadd.f32 %v1489, %v1517
    %v1519 = vpop.f32.mrf.mxu0
    %v1520 = vadd.f32 %v1491, %v1519
    %1521 = vdwg.mxu0
    %1522 = vmatpush.bf16.msra.mxu0 %v936
    %1523 = vmatpush.bf16.msra.mxu0 %v934
    %1524 = vmatpush.bf16.msra.mxu0 %v932
    %1525 = vmatpush.bf16.msra.mxu0 %v930
    %1526 = vmatpush.bf16.msra.mxu0 %v928
    %1527 = vmatpush.bf16.msra.mxu0 %v926
    %1528 = vmatpush.bf16.msra.mxu0 %v924
    %1529 = vmatpush.bf16.msra.mxu0 %v922
    %1530 = vmatmul.bf16.gmra.mxu0 %v357
    %v1531 = vpop.f32.mrf.mxu0
    %v1532 = vadd.f32 %v1503, %v1531
    %v1533 = vpop.f32.mrf.mxu0
    %v1534 = vadd.f32 %v1505, %v1533
    %1535 = vmatmul.bf16.gmra.mxu0 %v366
    %v1536 = vpop.f32.mrf.mxu0
    %v1537 = vadd.f32 %v1508, %v1536
    %v1538 = vpop.f32.mrf.mxu0
    %v1539 = vadd.f32 %v1510, %v1538
    %1540 = vmatmul.bf16.gmra.mxu0 %v375
    %v1541 = vpop.f32.mrf.mxu0
    %v1542 = vadd.f32 %v1513, %v1541
    %v1543 = vpop.f32.mrf.mxu0
    %v1544 = vadd.f32 %v1515, %v1543
    %1545 = vmatmul.bf16.gmra.mxu0 %v384
    %v1546 = vpop.f32.mrf.mxu0
    %v1547 = vadd.f32 %v1518, %v1546
    %v1548 = vpop.f32.mrf.mxu0
    %v1549 = vadd.f32 %v1520, %v1548
    %1550 = vdwg.mxu0
    %1551 = vmatpush.bf16.msra.mxu0 %v952
    %1552 = vmatpush.bf16.msra.mxu0 %v950
    %1553 = vmatpush.bf16.msra.mxu0 %v948
    %1554 = vmatpush.bf16.msra.mxu0 %v946
    %1555 = vmatpush.bf16.msra.mxu0 %v944
    %1556 = vmatpush.bf16.msra.mxu0 %v942
    %1557 = vmatpush.bf16.msra.mxu0 %v940
    %1558 = vmatpush.bf16.msra.mxu0 %v938
    %1559 = vmatmul.bf16.gmra.mxu0 %v358
    %v1560 = vpop.f32.mrf.mxu0
    %v1561 = vadd.f32 %v1532, %v1560
    %v1562 = vpop.f32.mrf.mxu0
    %v1563 = vadd.f32 %v1534, %v1562
    %1564 = vmatmul.bf16.gmra.mxu0 %v367
    %v1565 = vpop.f32.mrf.mxu0
    %v1566 = vadd.f32 %v1537, %v1565
    %v1567 = vpop.f32.mrf.mxu0
    %v1568 = vadd.f32 %v1539, %v1567
    %1569 = vmatmul.bf16.gmra.mxu0 %v376
    %v1570 = vpop.f32.mrf.mxu0
    %v1571 = vadd.f32 %v1542, %v1570
    %v1572 = vpop.f32.mrf.mxu0
    %v1573 = vadd.f32 %v1544, %v1572
    %1574 = vmatmul.bf16.gmra.mxu0 %v385
    %v1575 = vpop.f32.mrf.mxu0
    %v1576 = vadd.f32 %v1547, %v1575
    %v1577 = vpop.f32.mrf.mxu0
    %v1578 = vadd.f32 %v1549, %v1577
    %1579 = vdwg.mxu0
    %1580 = vmatpush.bf16.msra.mxu0 %v968
    %1581 = vmatpush.bf16.msra.mxu0 %v966
    %1582 = vmatpush.bf16.msra.mxu0 %v964
    %1583 = vmatpush.bf16.msra.mxu0 %v962
    %1584 = vmatpush.bf16.msra.mxu0 %v960
    %1585 = vmatpush.bf16.msra.mxu0 %v958
    %1586 = vmatpush.bf16.msra.mxu0 %v956
    %1587 = vmatpush.bf16.msra.mxu0 %v954
    %1588 = vmatmul.bf16.gmra.mxu0 %v359
    %v1589 = vpop.f32.mrf.mxu0
    %v1590 = vadd.f32 %v1561, %v1589
    %v1591 = vpop.f32.mrf.mxu0
    %v1592 = vadd.f32 %v1563, %v1591
    %1593 = vmatmul.bf16.gmra.mxu0 %v368
    %v1594 = vpop.f32.mrf.mxu0
    %v1595 = vadd.f32 %v1566, %v1594
    %v1596 = vpop.f32.mrf.mxu0
    %v1597 = vadd.f32 %v1568, %v1596
    %1598 = vmatmul.bf16.gmra.mxu0 %v377
    %v1599 = vpop.f32.mrf.mxu0
    %v1600 = vadd.f32 %v1571, %v1599
    %v1601 = vpop.f32.mrf.mxu0
    %v1602 = vadd.f32 %v1573, %v1601
    %1603 = vmatmul.bf16.gmra.mxu0 %v386
    %v1604 = vpop.f32.mrf.mxu0
    %v1605 = vadd.f32 %v1576, %v1604
    %v1606 = vpop.f32.mrf.mxu0
    %v1607 = vadd.f32 %v1578, %v1606
    %1608 = vdwg.mxu0
    %1609 = vmatpush.bf16.msra.mxu0 %v984
    %1610 = vmatpush.bf16.msra.mxu0 %v982
    %1611 = vmatpush.bf16.msra.mxu0 %v980
    %1612 = vmatpush.bf16.msra.mxu0 %v978
    %1613 = vmatpush.bf16.msra.mxu0 %v976
    %1614 = vmatpush.bf16.msra.mxu0 %v974
    %1615 = vmatpush.bf16.msra.mxu0 %v972
    %1616 = vmatpush.bf16.msra.mxu0 %v970
    %1617 = vmatmul.bf16.gmra.mxu0 %v360
    %v1618 = vpop.f32.mrf.mxu0
    %v1619 = vadd.f32 %v1590, %v1618
    %v1620 = vpop.f32.mrf.mxu0
    %v1621 = vadd.f32 %v1592, %v1620
    %1622 = vmatmul.bf16.gmra.mxu0 %v369
    %v1623 = vpop.f32.mrf.mxu0
    %v1624 = vadd.f32 %v1595, %v1623
    %v1625 = vpop.f32.mrf.mxu0
    %v1626 = vadd.f32 %v1597, %v1625
    %1627 = vmatmul.bf16.gmra.mxu0 %v378
    %v1628 = vpop.f32.mrf.mxu0
    %v1629 = vadd.f32 %v1600, %v1628
    %v1630 = vpop.f32.mrf.mxu0
    %v1631 = vadd.f32 %v1602, %v1630
    %1632 = vmatmul.bf16.gmra.mxu0 %v387
    %v1633 = vpop.f32.mrf.mxu0
    %v1634 = vadd.f32 %v1605, %v1633
    %v1635 = vpop.f32.mrf.mxu0
    %v1636 = vadd.f32 %v1607, %v1635
    %1637 = vdwg.mxu0
    %1638 = vmatpush.bf16.msra.mxu0 %v1000
    %1639 = vmatpush.bf16.msra.mxu0 %v998
    %1640 = vmatpush.bf16.msra.mxu0 %v996
    %1641 = vmatpush.bf16.msra.mxu0 %v994
    %1642 = vmatpush.bf16.msra.mxu0 %v992
    %1643 = vmatpush.bf16.msra.mxu0 %v990
    %1644 = vmatpush.bf16.msra.mxu0 %v988
    %1645 = vmatpush.bf16.msra.mxu0 %v986
    %1646 = vmatmul.bf16.gmra.mxu0 %v361
    %v1647 = vpop.f32.mrf.mxu0
    %v1648 = vadd.f32 %v1619, %v1647
    %v1649 = vpop.f32.mrf.mxu0
    %v1650 = vadd.f32 %v1621, %v1649
    %1651 = vmatmul.bf16.gmra.mxu0 %v370
    %v1652 = vpop.f32.mrf.mxu0
    %v1653 = vadd.f32 %v1624, %v1652
    %v1654 = vpop.f32.mrf.mxu0
    %v1655 = vadd.f32 %v1626, %v1654
    %1656 = vmatmul.bf16.gmra.mxu0 %v379
    %v1657 = vpop.f32.mrf.mxu0
    %v1658 = vadd.f32 %v1629, %v1657
    %v1659 = vpop.f32.mrf.mxu0
    %v1660 = vadd.f32 %v1631, %v1659
    %1661 = vmatmul.bf16.gmra.mxu0 %v388
    %v1662 = vpop.f32.mrf.mxu0
    %v1663 = vadd.f32 %v1634, %v1662
    %v1664 = vpop.f32.mrf.mxu0
    %v1665 = vadd.f32 %v1636, %v1664
    %1666 = vdwg.mxu0
    %v1667 = vld [vmem:[%s2] sm:$0xff]
    %v1668 = vld [vmem:[%s2 + $0x8] sm:$0xff]
    %v1669 = vld [vmem:[%s2 + $0x10] sm:$0xff]
    %v1670 = vld [vmem:[%s2 + $0x18] sm:$0xff]
    %v1671 = vld [vmem:[%s2 + $0x20] sm:$0xff]
    %v1672 = vld [vmem:[%s2 + $0x28] sm:$0xff]
    %v1673 = vld [vmem:[%s2 + $0x30] sm:$0xff]
    %v1674 = vld [vmem:[%s2 + $0x38] sm:$0xff]
    %v1675 = vld [vmem:[%s2 + $0x40] sm:$0xff]
    %v1676 = vld [vmem:[%s2 + $0x48] sm:$0xff]
    %v1677 = vld [vmem:[%s2 + $0x50] sm:$0xff]
    %v1678 = vld [vmem:[%s2 + $0x58] sm:$0xff]
    %v1679 = vld [vmem:[%s2 + $0x60] sm:$0xff]
    %v1680 = vld [vmem:[%s2 + $0x68] sm:$0xff]
    %v1681 = vld [vmem:[%s2 + $0x70] sm:$0xff]
    %v1682 = vld [vmem:[%s2 + $0x78] sm:$0xff]
    %v1683 = vld [vmem:[%s4] sm:$0xff]
    %v1684 = vld [vmem:[%s4 + $0x8] sm:$0xff]
    %v1685 = vld [vmem:[%s4 + $0x10] sm:$0xff]
    %v1686 = vld [vmem:[%s4 + $0x18] sm:$0xff]
    %v1687 = vld [vmem:[%s4 + $0x20] sm:$0xff]
    %v1688 = vld [vmem:[%s4 + $0x28] sm:$0xff]
    %v1689 = vld [vmem:[%s4 + $0x30] sm:$0xff]
    %v1690 = vld [vmem:[%s4 + $0x38] sm:$0xff]
    %v1691 = vld [vmem:[%s4 + $0x40] sm:$0xff]
    %v1692 = vld [vmem:[%s4 + $0x48] sm:$0xff]
    %v1693 = vld [vmem:[%s4 + $0x50] sm:$0xff]
    %v1694 = vld [vmem:[%s4 + $0x58] sm:$0xff]
    %v1695 = vld [vmem:[%s4 + $0x60] sm:$0xff]
    %v1696 = vld [vmem:[%s4 + $0x68] sm:$0xff]
    %v1697 = vld [vmem:[%s4 + $0x70] sm:$0xff]
    %v1698 = vld [vmem:[%s4 + $0x78] sm:$0xff]
    %v1699 = vld [vmem:[%s4 + $0x80] sm:$0xff]
    %v1700 = vld [vmem:[%s4 + $0x88] sm:$0xff]
    %v1701 = vld [vmem:[%s4 + $0x90] sm:$0xff]
    %v1702 = vld [vmem:[%s4 + $0x98] sm:$0xff]
    %v1703 = vld [vmem:[%s4 + $0xa0] sm:$0xff]
    %v1704 = vld [vmem:[%s4 + $0xa8] sm:$0xff]
    %v1705 = vld [vmem:[%s4 + $0xb0] sm:$0xff]
    %v1706 = vld [vmem:[%s4 + $0xb8] sm:$0xff]
    %v1707 = vld [vmem:[%s4 + $0xc0] sm:$0xff]
    %v1708 = vld [vmem:[%s4 + $0xc8] sm:$0xff]
    %v1709 = vld [vmem:[%s4 + $0xd0] sm:$0xff]
    %v1710 = vld [vmem:[%s4 + $0xd8] sm:$0xff]
    %v1711 = vld [vmem:[%s4 + $0xe0] sm:$0xff]
    %v1712 = vld [vmem:[%s4 + $0xe8] sm:$0xff]
    %v1713 = vld [vmem:[%s4 + $0xf0] sm:$0xff]
    %v1714 = vld [vmem:[%s4 + $0xf8] sm:$0xff]
    %v1715 = vld [vmem:[%s5] sm:$0x3]
    %v1716 = vld [vmem:[%s6] sm:$0xff]
    %v1717 = vld [vmem:[%s6 + $0x8] sm:$0xff]
    %v1718 = vld [vmem:[%s6 + $0x10] sm:$0xff]
    %v1719 = vld [vmem:[%s6 + $0x18] sm:$0xff]
    %v1720 = vld [vmem:[%s6 + $0x20] sm:$0xff]
    %v1721 = vld [vmem:[%s6 + $0x28] sm:$0xff]
    %v1722 = vld [vmem:[%s6 + $0x30] sm:$0xff]
    %v1723 = vld [vmem:[%s6 + $0x38] sm:$0xff]
    %v1724 = vld [vmem:[%s6 + $0x40] sm:$0xff]
    %v1725 = vld [vmem:[%s6 + $0x48] sm:$0xff]
    %v1726 = vld [vmem:[%s6 + $0x50] sm:$0xff]
    %v1727 = vld [vmem:[%s6 + $0x58] sm:$0xff]
    %v1728 = vld [vmem:[%s6 + $0x60] sm:$0xff]
    %v1729 = vld [vmem:[%s6 + $0x68] sm:$0xff]
    %v1730 = vld [vmem:[%s6 + $0x70] sm:$0xff]
    %v1731 = vld [vmem:[%s6 + $0x78] sm:$0xff]
    %v1732 = vld [vmem:[%s6 + $0x80] sm:$0xff]
    %v1733 = vld [vmem:[%s6 + $0x88] sm:$0xff]
    %v1734 = vld [vmem:[%s6 + $0x90] sm:$0xff]
    %v1735 = vld [vmem:[%s6 + $0x98] sm:$0xff]
    %v1736 = vld [vmem:[%s6 + $0xa0] sm:$0xff]
    %v1737 = vld [vmem:[%s6 + $0xa8] sm:$0xff]
    %v1738 = vld [vmem:[%s6 + $0xb0] sm:$0xff]
    %v1739 = vld [vmem:[%s6 + $0xb8] sm:$0xff]
    %v1740 = vld [vmem:[%s6 + $0xc0] sm:$0xff]
    %v1741 = vld [vmem:[%s6 + $0xc8] sm:$0xff]
    %v1742 = vld [vmem:[%s6 + $0xd0] sm:$0xff]
    %v1743 = vld [vmem:[%s6 + $0xd8] sm:$0xff]
    %v1744 = vld [vmem:[%s6 + $0xe0] sm:$0xff]
    %v1745 = vld [vmem:[%s6 + $0xe8] sm:$0xff]
    %v1746 = vld [vmem:[%s6 + $0xf0] sm:$0xff]
    %v1747 = vld [vmem:[%s6 + $0xf8] sm:$0xff]
    %v1748 = vld [vmem:[%s7] sm:$0x3]
    %vm1749 = vcmask 523264
    %v1751 = vsel %vm1749, 0.0, 0
    %1753 = vmatpush.msra.mxu0 0.0
    %1754 = vmatpush.msra.mxu0 0.0
    %1755 = vmatpush.msra.mxu0 0.0
    %1756 = vmatpush.msra.mxu0 0.0
    %1757 = vmatpush.msra.mxu0 0.0
    %1758 = vmatpush.msra.mxu0 0.0
    %1759 = vmatpush.msra.mxu0 0.0
    %1760 = vmatpush.msra.mxu0 0.0
    %1761 = vmatpush.msra.mxu0 %v1681
    %1762 = vmatpush.msra.mxu0 %v1679
    %1763 = vmatpush.msra.mxu0 %v1677
    %1764 = vmatpush.msra.mxu0 %v1675
    %1765 = vmatpush.msra.mxu0 %v1673
    %1766 = vmatpush.msra.mxu0 %v1671
    %1767 = vmatpush.msra.mxu0 %v1669
    %1768 = vmatpush.msra.mxu0 %v1667
    %1769 = vmatmul.f32.gmra.mxu0 %v1751
    %v1770 = vpop.f32.mrf.mxu0
    %v1771 = vadd.f32 0.0, %v1770
    %1772 = vdwg.mxu0
    %1773 = vmatpush.msra.mxu0 0.0
    %1774 = vmatpush.msra.mxu0 0.0
    %1775 = vmatpush.msra.mxu0 0.0
    %1776 = vmatpush.msra.mxu0 0.0
    %1777 = vmatpush.msra.mxu0 0.0
    %1778 = vmatpush.msra.mxu0 0.0
    %1779 = vmatpush.msra.mxu0 0.0
    %1780 = vmatpush.msra.mxu0 0.0
    %1781 = vmatpush.msra.mxu0 %v1682
    %1782 = vmatpush.msra.mxu0 %v1680
    %1783 = vmatpush.msra.mxu0 %v1678
    %1784 = vmatpush.msra.mxu0 %v1676
    %1785 = vmatpush.msra.mxu0 %v1674
    %1786 = vmatpush.msra.mxu0 %v1672
    %1787 = vmatpush.msra.mxu0 %v1670
    %1788 = vmatpush.msra.mxu0 %v1668
    %1789 = vmatmul.f32.gmra.mxu0 %v1751
    %v1790 = vpop.f32.mrf.mxu0
    %v1791 = vadd.f32 0.0, %v1790
    %1792 = vdwg.mxu0
    %v1793 = vadd.f32 %v1387, %v1771
    %v1794 = vadd.f32 %v1648, %v1791
    %v1795 = vxor.u32 %v1793, 2147483648
    %v1796 = vxor.u32 %v1794, 2147483648
    %v1797 = vmul.f32 %v1795, 1.442695
    %v1798 = vpow.pop %v1797
    %v1799 = vmul.f32 %v1796, 1.442695
    %v1800 = vpow.pop %v1799
    %v1801 = vadd.f32 %v1798, 1.0
    %v1802 = vadd.f32 %v1800, 1.0
    %v1803 = vrcp.pop %v1801
    %v1804 = vmul.f32 %v1801, %v1803
    %v1805 = vsub.f32 1.0, %v1804
    %v1806 = vmul.f32 %v1803, %v1805
    %v1807 = vadd.f32 %v1803, %v1806
    %vm1808 = vweird.f32 %v1801
    %vm1809 = vweird.f32 %v1803
    %vm1810 = vmor %vm1808, %vm1809
    %v1811 = vsel %vm1810, %v1803, %v1807
    %v1812 = vand.u32 2147483647, %v1801
    %vm1813 = vcmp.eq.f32.partialorder %v1812, 8.507059e+37
    %v1814 = vand.u32 %v1801, 2147483648
    %v1815 = vor.u32 1.1754944e-38, %v1814
    %v1816 = vsel %vm1813, %v1815, %v1811
    %v1817 = vmul.f32 1.0, %v1816
    %v1818 = vrcp.pop %v1802
    %v1819 = vmul.f32 %v1802, %v1818
    %v1820 = vsub.f32 1.0, %v1819
    %v1821 = vmul.f32 %v1818, %v1820
    %v1822 = vadd.f32 %v1818, %v1821
    %vm1823 = vweird.f32 %v1802
    %vm1824 = vweird.f32 %v1818
    %vm1825 = vmor %vm1823, %vm1824
    %v1826 = vsel %vm1825, %v1818, %v1822
    %v1827 = vand.u32 2147483647, %v1802
    %vm1828 = vcmp.eq.f32.partialorder %v1827, 8.507059e+37
    %v1829 = vand.u32 %v1802, 2147483648
    %v1830 = vor.u32 1.1754944e-38, %v1829
    %v1831 = vsel %vm1828, %v1830, %v1826
    %v1832 = vmul.f32 1.0, %v1831
    %v1833 = vtanh.pop %v1794
    %v1834 = vmul.f32 %v1817, 0.0
    %1836 = vrot.lane.b32.xlu0 %v1833, 64
    %v1837 = vpop.permute.xlu0 %1836
    %v1839 = vmul.f32 %v1817, %v1837
    %1841 = vrot.lane.b32.xlu0 %v1839, 64
    %v1842 = vpop.permute.xlu0 %1841
    %v1844 = vadd.f32 %v1834, %v1842
    %v1845 = vtanh.pop %v1844
    %1847 = vrot.lane.b32.xlu0 %v1845, 64
    %v1848 = vpop.permute.xlu0 %1847
    %v1850 = vmul.f32 %v1832, %v1848
    %v1852 = vsel %vm1749, %v1850, 0
    %1854 = vmatpush.msra.mxu0 0.0
    %1855 = vmatpush.msra.mxu0 0.0
    %1856 = vmatpush.msra.mxu0 0.0
    %1857 = vmatpush.msra.mxu0 0.0
    %1858 = vmatpush.msra.mxu0 0.0
    %1859 = vmatpush.msra.mxu0 0.0
    %1860 = vmatpush.msra.mxu0 0.0
    %1861 = vmatpush.msra.mxu0 0.0
    %1862 = vmatpush.msra.mxu0 %v1681
    %1863 = vmatpush.msra.mxu0 %v1679
    %1864 = vmatpush.msra.mxu0 %v1677
    %1865 = vmatpush.msra.mxu0 %v1675
    %1866 = vmatpush.msra.mxu0 %v1673
    %1867 = vmatpush.msra.mxu0 %v1671
    %1868 = vmatpush.msra.mxu0 %v1669
    %1869 = vmatpush.msra.mxu0 %v1667
    %1870 = vmatmul.f32.gmra.mxu0 %v1852
    %v1871 = vpop.f32.mrf.mxu0
    %v1872 = vadd.f32 0.0, %v1871
    %1873 = vdwg.mxu0
    %1874 = vmatpush.msra.mxu0 0.0
    %1875 = vmatpush.msra.mxu0 0.0
    %1876 = vmatpush.msra.mxu0 0.0
    %1877 = vmatpush.msra.mxu0 0.0
    %1878 = vmatpush.msra.mxu0 0.0
    %1879 = vmatpush.msra.mxu0 0.0
    %1880 = vmatpush.msra.mxu0 0.0
    %1881 = vmatpush.msra.mxu0 0.0
    %1882 = vmatpush.msra.mxu0 %v1682
    %1883 = vmatpush.msra.mxu0 %v1680
    %1884 = vmatpush.msra.mxu0 %v1678
    %1885 = vmatpush.msra.mxu0 %v1676
    %1886 = vmatpush.msra.mxu0 %v1674
    %1887 = vmatpush.msra.mxu0 %v1672
    %1888 = vmatpush.msra.mxu0 %v1670
    %1889 = vmatpush.msra.mxu0 %v1668
    %1890 = vmatmul.f32.gmra.mxu0 %v1852
    %v1891 = vpop.f32.mrf.mxu0
    %v1892 = vadd.f32 0.0, %v1891
    %1893 = vdwg.mxu0
    %v1894 = vadd.f32 %v1389, %v1872
    %v1895 = vadd.f32 %v1650, %v1892
    %v1896 = vxor.u32 %v1894, 2147483648
    %v1897 = vxor.u32 %v1895, 2147483648
    %v1898 = vmul.f32 %v1896, 1.442695
    %v1899 = vpow.pop %v1898
    %v1900 = vmul.f32 %v1897, 1.442695
    %v1901 = vpow.pop %v1900
    %v1902 = vadd.f32 %v1899, 1.0
    %v1903 = vadd.f32 %v1901, 1.0
    %v1904 = vrcp.pop %v1902
    %v1905 = vmul.f32 %v1902, %v1904
    %v1906 = vsub.f32 1.0, %v1905
    %v1907 = vmul.f32 %v1904, %v1906
    %v1908 = vadd.f32 %v1904, %v1907
    %vm1909 = vweird.f32 %v1902
    %vm1910 = vweird.f32 %v1904
    %vm1911 = vmor %vm1909, %vm1910
    %v1912 = vsel %vm1911, %v1904, %v1908
    %v1913 = vand.u32 2147483647, %v1902
    %vm1914 = vcmp.eq.f32.partialorder %v1913, 8.507059e+37
    %v1915 = vand.u32 %v1902, 2147483648
    %v1916 = vor.u32 1.1754944e-38, %v1915
    %v1917 = vsel %vm1914, %v1916, %v1912
    %v1918 = vmul.f32 1.0, %v1917
    %v1919 = vrcp.pop %v1903
    %v1920 = vmul.f32 %v1903, %v1919
    %v1921 = vsub.f32 1.0, %v1920
    %v1922 = vmul.f32 %v1919, %v1921
    %v1923 = vadd.f32 %v1919, %v1922
    %vm1924 = vweird.f32 %v1903
    %vm1925 = vweird.f32 %v1919
    %vm1926 = vmor %vm1924, %vm1925
    %v1927 = vsel %vm1926, %v1919, %v1923
    %v1928 = vand.u32 2147483647, %v1903
    %vm1929 = vcmp.eq.f32.partialorder %v1928, 8.507059e+37
    %v1930 = vand.u32 %v1903, 2147483648
    %v1931 = vor.u32 1.1754944e-38, %v1930
    %v1932 = vsel %vm1929, %v1931, %v1927
    %v1933 = vmul.f32 1.0, %v1932
    %v1934 = vtanh.pop %v1895
    %v1935 = vmul.f32 %v1918, %v1844
    %1937 = vrot.lane.b32.xlu0 %v1934, 64
    %v1938 = vpop.permute.xlu0 %1937
    %v1940 = vmul.f32 %v1918, %v1938
    %1942 = vrot.lane.b32.xlu0 %v1940, 64
    %v1943 = vpop.permute.xlu0 %1942
    %v1945 = vadd.f32 %v1935, %v1943
    %v1946 = vtanh.pop %v1945
    %1948 = vrot.lane.b32.xlu0 %v1946, 64
    %v1949 = vpop.permute.xlu0 %1948
    %v1951 = vmul.f32 %v1933, %v1949
    %v1952 = vsel %vm1749, %v1850, 0.0
    %v1954 = vperm.slane %v1715, 0
    %v1955 = vperm.slane %v1715, 1
    %1958 = vmatpush.msra.mxu0 %v1713
    %1959 = vmatpush.msra.mxu0 %v1711
    %1960 = vmatpush.msra.mxu0 %v1709
    %1961 = vmatpush.msra.mxu0 %v1707
    %1962 = vmatpush.msra.mxu0 %v1705
    %1963 = vmatpush.msra.mxu0 %v1703
    %1964 = vmatpush.msra.mxu0 %v1701
    %1965 = vmatpush.msra.mxu0 %v1699
    %1966 = vmatpush.msra.mxu0 %v1697
    %1967 = vmatpush.msra.mxu0 %v1695
    %1968 = vmatpush.msra.mxu0 %v1693
    %1969 = vmatpush.msra.mxu0 %v1691
    %1970 = vmatpush.msra.mxu0 %v1689
    %1971 = vmatpush.msra.mxu0 %v1687
    %1972 = vmatpush.msra.mxu0 %v1685
    %1973 = vmatpush.msra.mxu0 %v1683
    %1974 = vmatmul.f32.gmra.mxu0 %v1952
    %v1975 = vpop.f32.mrf.mxu0
    %v1976 = vadd.f32 %v1954, %v1975
    %1977 = vdwg.mxu0
    %1978 = vmatpush.msra.mxu0 %v1714
    %1979 = vmatpush.msra.mxu0 %v1712
    %1980 = vmatpush.msra.mxu0 %v1710
    %1981 = vmatpush.msra.mxu0 %v1708
    %1982 = vmatpush.msra.mxu0 %v1706
    %1983 = vmatpush.msra.mxu0 %v1704
    %1984 = vmatpush.msra.mxu0 %v1702
    %1985 = vmatpush.msra.mxu0 %v1700
    %1986 = vmatpush.msra.mxu0 %v1698
    %1987 = vmatpush.msra.mxu0 %v1696
    %1988 = vmatpush.msra.mxu0 %v1694
    %1989 = vmatpush.msra.mxu0 %v1692
    %1990 = vmatpush.msra.mxu0 %v1690
    %1991 = vmatpush.msra.mxu0 %v1688
    %1992 = vmatpush.msra.mxu0 %v1686
    %1993 = vmatpush.msra.mxu0 %v1684
    %1994 = vmatmul.f32.gmra.mxu0 %v1952
    %v1995 = vpop.f32.mrf.mxu0
    %v1996 = vadd.f32 %v1955, %v1995
    %1997 = vdwg.mxu0
    %v1998 = vxor.u32 %v1976, 2147483648
    %v1999 = vxor.u32 %v1996, 2147483648
    %v2000 = vmul.f32 %v1998, 1.442695
    %v2001 = vpow.pop %v2000
    %v2002 = vmul.f32 %v1999, 1.442695
    %v2003 = vpow.pop %v2002
    %v2004 = vadd.f32 %v2001, 1.0
    %v2005 = vadd.f32 %v2003, 1.0
    %v2006 = vrcp.pop %v2004
    %v2007 = vmul.f32 %v2004, %v2006
    %v2008 = vsub.f32 1.0, %v2007
    %v2009 = vmul.f32 %v2006, %v2008
    %v2010 = vadd.f32 %v2006, %v2009
    %vm2011 = vweird.f32 %v2004
    %vm2012 = vweird.f32 %v2006
    %vm2013 = vmor %vm2011, %vm2012
    %v2014 = vsel %vm2013, %v2006, %v2010
    %v2015 = vand.u32 2147483647, %v2004
    %vm2016 = vcmp.eq.f32.partialorder %v2015, 8.507059e+37
    %v2017 = vand.u32 %v2004, 2147483648
    %v2018 = vor.u32 1.1754944e-38, %v2017
    %v2019 = vsel %vm2016, %v2018, %v2014
    %v2020 = vmul.f32 1.0, %v2019
    %v2021 = vrcp.pop %v2005
    %v2022 = vmul.f32 %v2005, %v2021
    %v2023 = vsub.f32 1.0, %v2022
    %v2024 = vmul.f32 %v2021, %v2023
    %v2025 = vadd.f32 %v2021, %v2024
    %vm2026 = vweird.f32 %v2005
    %vm2027 = vweird.f32 %v2021
    %vm2028 = vmor %vm2026, %vm2027
    %v2029 = vsel %vm2028, %v2021, %v2025
    %v2030 = vand.u32 2147483647, %v2005
    %vm2031 = vcmp.eq.f32.partialorder %v2030, 8.507059e+37
    %v2032 = vand.u32 %v2005, 2147483648
    %v2033 = vor.u32 1.1754944e-38, %v2032
    %v2034 = vsel %vm2031, %v2033, %v2029
    %v2035 = vmul.f32 1.0, %v2034
    %v2036 = vtanh.pop %v1996
    %v2037 = vmul.f32 %v2020, 0.0
    %2039 = vrot.lane.b32.xlu0 %v2036, 64
    %v2040 = vpop.permute.xlu0 %2039
    %v2042 = vmul.f32 %v2020, %v2040
    %2044 = vrot.lane.b32.xlu0 %v2042, 64
    %v2045 = vpop.permute.xlu0 %2044
    %v2047 = vadd.f32 %v2037, %v2045
    %v2048 = vtanh.pop %v2047
    %2050 = vrot.lane.b32.xlu0 %v2048, 64
    %v2051 = vpop.permute.xlu0 %2050
    %v2053 = vmul.f32 %v2035, %v2051
    %v2055 = vsel %vm1749, %v1951, 0
    %2057 = vmatpush.msra.mxu0 0.0
    %2058 = vmatpush.msra.mxu0 0.0
    %2059 = vmatpush.msra.mxu0 0.0
    %2060 = vmatpush.msra.mxu0 0.0
    %2061 = vmatpush.msra.mxu0 0.0
    %2062 = vmatpush.msra.mxu0 0.0
    %2063 = vmatpush.msra.mxu0 0.0
    %2064 = vmatpush.msra.mxu0 0.0
    %2065 = vmatpush.msra.mxu0 %v1681
    %2066 = vmatpush.msra.mxu0 %v1679
    %2067 = vmatpush.msra.mxu0 %v1677
    %2068 = vmatpush.msra.mxu0 %v1675
    %2069 = vmatpush.msra.mxu0 %v1673
    %2070 = vmatpush.msra.mxu0 %v1671
    %2071 = vmatpush.msra.mxu0 %v1669
    %2072 = vmatpush.msra.mxu0 %v1667
    %2073 = vmatmul.f32.gmra.mxu0 %v2055
    %v2074 = vpop.f32.mrf.mxu0
    %v2075 = vadd.f32 0.0, %v2074
    %2076 = vdwg.mxu0
    %2077 = vmatpush.msra.mxu0 0.0
    %2078 = vmatpush.msra.mxu0 0.0
    %2079 = vmatpush.msra.mxu0 0.0
    %2080 = vmatpush.msra.mxu0 0.0
    %2081 = vmatpush.msra.mxu0 0.0
    %2082 = vmatpush.msra.mxu0 0.0
    %2083 = vmatpush.msra.mxu0 0.0
    %2084 = vmatpush.msra.mxu0 0.0
    %2085 = vmatpush.msra.mxu0 %v1682
    %2086 = vmatpush.msra.mxu0 %v1680
    %2087 = vmatpush.msra.mxu0 %v1678
    %2088 = vmatpush.msra.mxu0 %v1676
    %2089 = vmatpush.msra.mxu0 %v1674
    %2090 = vmatpush.msra.mxu0 %v1672
    %2091 = vmatpush.msra.mxu0 %v1670
    %2092 = vmatpush.msra.mxu0 %v1668
    %2093 = vmatmul.f32.gmra.mxu0 %v2055
    %v2094 = vpop.f32.mrf.mxu0
    %v2095 = vadd.f32 0.0, %v2094
    %2096 = vdwg.mxu0
    %v2097 = vadd.f32 %v1392, %v2075
    %v2098 = vadd.f32 %v1653, %v2095
    %v2099 = vxor.u32 %v2097, 2147483648
    %v2100 = vxor.u32 %v2098, 2147483648
    %v2101 = vmul.f32 %v2099, 1.442695
    %v2102 = vpow.pop %v2101
    %v2103 = vmul.f32 %v2100, 1.442695
    %v2104 = vpow.pop %v2103
    %v2105 = vadd.f32 %v2102, 1.0
    %v2106 = vadd.f32 %v2104, 1.0
    %v2107 = vrcp.pop %v2105
    %v2108 = vmul.f32 %v2105, %v2107
    %v2109 = vsub.f32 1.0, %v2108
    %v2110 = vmul.f32 %v2107, %v2109
    %v2111 = vadd.f32 %v2107, %v2110
    %vm2112 = vweird.f32 %v2105
    %vm2113 = vweird.f32 %v2107
    %vm2114 = vmor %vm2112, %vm2113
    %v2115 = vsel %vm2114, %v2107, %v2111
    %v2116 = vand.u32 2147483647, %v2105
    %vm2117 = vcmp.eq.f32.partialorder %v2116, 8.507059e+37
    %v2118 = vand.u32 %v2105, 2147483648
    %v2119 = vor.u32 1.1754944e-38, %v2118
    %v2120 = vsel %vm2117, %v2119, %v2115
    %v2121 = vmul.f32 1.0, %v2120
    %v2122 = vrcp.pop %v2106
    %v2123 = vmul.f32 %v2106, %v2122
    %v2124 = vsub.f32 1.0, %v2123
    %v2125 = vmul.f32 %v2122, %v2124
    %v2126 = vadd.f32 %v2122, %v2125
    %vm2127 = vweird.f32 %v2106
    %vm2128 = vweird.f32 %v2122
    %vm2129 = vmor %vm2127, %vm2128
    %v2130 = vsel %vm2129, %v2122, %v2126
    %v2131 = vand.u32 2147483647, %v2106
    %vm2132 = vcmp.eq.f32.partialorder %v2131, 8.507059e+37
    %v2133 = vand.u32 %v2106, 2147483648
    %v2134 = vor.u32 1.1754944e-38, %v2133
    %v2135 = vsel %vm2132, %v2134, %v2130
    %v2136 = vmul.f32 1.0, %v2135
    %v2137 = vtanh.pop %v2098
    %v2138 = vmul.f32 %v2121, %v1945
    %2140 = vrot.lane.b32.xlu0 %v2137, 64
    %v2141 = vpop.permute.xlu0 %2140
    %v2143 = vmul.f32 %v2121, %v2141
    %2145 = vrot.lane.b32.xlu0 %v2143, 64
    %v2146 = vpop.permute.xlu0 %2145
    %v2148 = vadd.f32 %v2138, %v2146
    %v2149 = vtanh.pop %v2148
    %2151 = vrot.lane.b32.xlu0 %v2149, 64
    %v2152 = vpop.permute.xlu0 %2151
    %v2154 = vmul.f32 %v2136, %v2152
    %2156 = vrot.lane.b32.xlu0 %v2053, 64
    %v2157 = vpop.permute.xlu0 %2156
    %v2159 = vsel %vm1749, %v1951, %v2157
    %2160 = vmatpush.msra.mxu0 %v1713
    %2161 = vmatpush.msra.mxu0 %v1711
    %2162 = vmatpush.msra.mxu0 %v1709
    %2163 = vmatpush.msra.mxu0 %v1707
    %2164 = vmatpush.msra.mxu0 %v1705
    %2165 = vmatpush.msra.mxu0 %v1703
    %2166 = vmatpush.msra.mxu0 %v1701
    %2167 = vmatpush.msra.mxu0 %v1699
    %2168 = vmatpush.msra.mxu0 %v1697
    %2169 = vmatpush.msra.mxu0 %v1695
    %2170 = vmatpush.msra.mxu0 %v1693
    %2171 = vmatpush.msra.mxu0 %v1691
    %2172 = vmatpush.msra.mxu0 %v1689
    %2173 = vmatpush.msra.mxu0 %v1687
    %2174 = vmatpush.msra.mxu0 %v1685
    %2175 = vmatpush.msra.mxu0 %v1683
    %2176 = vmatmul.f32.gmra.mxu0 %v2159
    %v2177 = vpop.f32.mrf.mxu0
    %v2178 = vadd.f32 %v1954, %v2177
    %2179 = vdwg.mxu0
    %2180 = vmatpush.msra.mxu0 %v1714
    %2181 = vmatpush.msra.mxu0 %v1712
    %2182 = vmatpush.msra.mxu0 %v1710
    %2183 = vmatpush.msra.mxu0 %v1708
    %2184 = vmatpush.msra.mxu0 %v1706
    %2185 = vmatpush.msra.mxu0 %v1704
    %2186 = vmatpush.msra.mxu0 %v1702
    %2187 = vmatpush.msra.mxu0 %v1700
    %2188 = vmatpush.msra.mxu0 %v1698
    %2189 = vmatpush.msra.mxu0 %v1696
    %2190 = vmatpush.msra.mxu0 %v1694
    %2191 = vmatpush.msra.mxu0 %v1692
    %2192 = vmatpush.msra.mxu0 %v1690
    %2193 = vmatpush.msra.mxu0 %v1688
    %2194 = vmatpush.msra.mxu0 %v1686
    %2195 = vmatpush.msra.mxu0 %v1684
    %2196 = vmatmul.f32.gmra.mxu0 %v2159
    %v2197 = vpop.f32.mrf.mxu0
    %v2198 = vadd.f32 %v1955, %v2197
    %2199 = vdwg.mxu0
    %v2200 = vxor.u32 %v2178, 2147483648
    %v2201 = vxor.u32 %v2198, 2147483648
    %v2202 = vmul.f32 %v2200, 1.442695
    %v2203 = vpow.pop %v2202
    %v2204 = vmul.f32 %v2201, 1.442695
    %v2205 = vpow.pop %v2204
    %v2206 = vadd.f32 %v2203, 1.0
    %v2207 = vadd.f32 %v2205, 1.0
    %v2208 = vrcp.pop %v2206
    %v2209 = vmul.f32 %v2206, %v2208
    %v2210 = vsub.f32 1.0, %v2209
    %v2211 = vmul.f32 %v2208, %v2210
    %v2212 = vadd.f32 %v2208, %v2211
    %vm2213 = vweird.f32 %v2206
    %vm2214 = vweird.f32 %v2208
    %vm2215 = vmor %vm2213, %vm2214
    %v2216 = vsel %vm2215, %v2208, %v2212
    %v2217 = vand.u32 2147483647, %v2206
    %vm2218 = vcmp.eq.f32.partialorder %v2217, 8.507059e+37
    %v2219 = vand.u32 %v2206, 2147483648
    %v2220 = vor.u32 1.1754944e-38, %v2219
    %v2221 = vsel %vm2218, %v2220, %v2216
    %v2222 = vmul.f32 1.0, %v2221
    %v2223 = vrcp.pop %v2207
    %v2224 = vmul.f32 %v2207, %v2223
    %v2225 = vsub.f32 1.0, %v2224
    %v2226 = vmul.f32 %v2223, %v2225
    %v2227 = vadd.f32 %v2223, %v2226
    %vm2228 = vweird.f32 %v2207
    %vm2229 = vweird.f32 %v2223
    %vm2230 = vmor %vm2228, %vm2229
    %v2231 = vsel %vm2230, %v2223, %v2227
    %v2232 = vand.u32 2147483647, %v2207
    %vm2233 = vcmp.eq.f32.partialorder %v2232, 8.507059e+37
    %v2234 = vand.u32 %v2207, 2147483648
    %v2235 = vor.u32 1.1754944e-38, %v2234
    %v2236 = vsel %vm2233, %v2235, %v2231
    %v2237 = vmul.f32 1.0, %v2236
    %v2238 = vtanh.pop %v2198
    %v2239 = vmul.f32 %v2222, %v2047
    %2241 = vrot.lane.b32.xlu0 %v2238, 64
    %v2242 = vpop.permute.xlu0 %2241
    %v2244 = vmul.f32 %v2222, %v2242
    %2246 = vrot.lane.b32.xlu0 %v2244, 64
    %v2247 = vpop.permute.xlu0 %2246
    %v2249 = vadd.f32 %v2239, %v2247
    %v2250 = vtanh.pop %v2249
    %2252 = vrot.lane.b32.xlu0 %v2250, 64
    %v2253 = vpop.permute.xlu0 %2252
    %v2255 = vmul.f32 %v2237, %v2253
    %v2256 = vsel %vm1749, %v2053, 0.0
    %v2258 = vperm.slane %v1748, 0
    %v2259 = vperm.slane %v1748, 1
    %2262 = vmatpush.msra.mxu0 %v1746
    %2263 = vmatpush.msra.mxu0 %v1744
    %2264 = vmatpush.msra.mxu0 %v1742
    %2265 = vmatpush.msra.mxu0 %v1740
    %2266 = vmatpush.msra.mxu0 %v1738
    %2267 = vmatpush.msra.mxu0 %v1736
    %2268 = vmatpush.msra.mxu0 %v1734
    %2269 = vmatpush.msra.mxu0 %v1732
    %2270 = vmatpush.msra.mxu0 %v1730
    %2271 = vmatpush.msra.mxu0 %v1728
    %2272 = vmatpush.msra.mxu0 %v1726
    %2273 = vmatpush.msra.mxu0 %v1724
    %2274 = vmatpush.msra.mxu0 %v1722
    %2275 = vmatpush.msra.mxu0 %v1720
    %2276 = vmatpush.msra.mxu0 %v1718
    %2277 = vmatpush.msra.mxu0 %v1716
    %2278 = vmatmul.f32.gmra.mxu0 %v2256
    %v2279 = vpop.f32.mrf.mxu0
    %v2280 = vadd.f32 %v2258, %v2279
    %2281 = vdwg.mxu0
    %2282 = vmatpush.msra.mxu0 %v1747
    %2283 = vmatpush.msra.mxu0 %v1745
    %2284 = vmatpush.msra.mxu0 %v1743
    %2285 = vmatpush.msra.mxu0 %v1741
    %2286 = vmatpush.msra.mxu0 %v1739
    %2287 = vmatpush.msra.mxu0 %v1737
    %2288 = vmatpush.msra.mxu0 %v1735
    %2289 = vmatpush.msra.mxu0 %v1733
    %2290 = vmatpush.msra.mxu0 %v1731
    %2291 = vmatpush.msra.mxu0 %v1729
    %2292 = vmatpush.msra.mxu0 %v1727
    %2293 = vmatpush.msra.mxu0 %v1725
    %2294 = vmatpush.msra.mxu0 %v1723
    %2295 = vmatpush.msra.mxu0 %v1721
    %2296 = vmatpush.msra.mxu0 %v1719
    %2297 = vmatpush.msra.mxu0 %v1717
    %2298 = vmatmul.f32.gmra.mxu0 %v2256
    %v2299 = vpop.f32.mrf.mxu0
    %v2300 = vadd.f32 %v2259, %v2299
    %2301 = vdwg.mxu0
    %v2302 = vxor.u32 %v2280, 2147483648
    %v2303 = vxor.u32 %v2300, 2147483648
    %v2304 = vmul.f32 %v2302, 1.442695
    %v2305 = vpow.pop %v2304
    %v2306 = vmul.f32 %v2303, 1.442695
    %v2307 = vpow.pop %v2306
    %v2308 = vadd.f32 %v2305, 1.0
    %v2309 = vadd.f32 %v2307, 1.0
    %v2310 = vrcp.pop %v2308
    %v2311 = vmul.f32 %v2308, %v2310
    %v2312 = vsub.f32 1.0, %v2311
    %v2313 = vmul.f32 %v2310, %v2312
    %v2314 = vadd.f32 %v2310, %v2313
    %vm2315 = vweird.f32 %v2308
    %vm2316 = vweird.f32 %v2310
    %vm2317 = vmor %vm2315, %vm2316
    %v2318 = vsel %vm2317, %v2310, %v2314
    %v2319 = vand.u32 2147483647, %v2308
    %vm2320 = vcmp.eq.f32.partialorder %v2319, 8.507059e+37
    %v2321 = vand.u32 %v2308, 2147483648
    %v2322 = vor.u32 1.1754944e-38, %v2321
    %v2323 = vsel %vm2320, %v2322, %v2318
    %v2324 = vmul.f32 1.0, %v2323
    %v2325 = vrcp.pop %v2309
    %v2326 = vmul.f32 %v2309, %v2325
    %v2327 = vsub.f32 1.0, %v2326
    %v2328 = vmul.f32 %v2325, %v2327
    %v2329 = vadd.f32 %v2325, %v2328
    %vm2330 = vweird.f32 %v2309
    %vm2331 = vweird.f32 %v2325
    %vm2332 = vmor %vm2330, %vm2331
    %v2333 = vsel %vm2332, %v2325, %v2329
    %v2334 = vand.u32 2147483647, %v2309
    %vm2335 = vcmp.eq.f32.partialorder %v2334, 8.507059e+37
    %v2336 = vand.u32 %v2309, 2147483648
    %v2337 = vor.u32 1.1754944e-38, %v2336
    %v2338 = vsel %vm2335, %v2337, %v2333
    %v2339 = vmul.f32 1.0, %v2338
    %v2340 = vtanh.pop %v2300
    %v2341 = vmul.f32 %v2324, 0.0
    %2343 = vrot.lane.b32.xlu0 %v2340, 64
    %v2344 = vpop.permute.xlu0 %2343
    %v2346 = vmul.f32 %v2324, %v2344
    %2348 = vrot.lane.b32.xlu0 %v2346, 64
    %v2349 = vpop.permute.xlu0 %2348
    %v2351 = vadd.f32 %v2341, %v2349
    %v2352 = vtanh.pop %v2351
    %2354 = vrot.lane.b32.xlu0 %v2352, 64
    %v2355 = vpop.permute.xlu0 %2354
    %v2357 = vmul.f32 %v2339, %v2355
    %v2359 = vsel %vm1749, %v2154, 0
    %2361 = vmatpush.msra.mxu0 0.0
    %2362 = vmatpush.msra.mxu0 0.0
    %2363 = vmatpush.msra.mxu0 0.0
    %2364 = vmatpush.msra.mxu0 0.0
    %2365 = vmatpush.msra.mxu0 0.0
    %2366 = vmatpush.msra.mxu0 0.0
    %2367 = vmatpush.msra.mxu0 0.0
    %2368 = vmatpush.msra.mxu0 0.0
    %2369 = vmatpush.msra.mxu0 %v1681
    %2370 = vmatpush.msra.mxu0 %v1679
    %2371 = vmatpush.msra.mxu0 %v1677
    %2372 = vmatpush.msra.mxu0 %v1675
    %2373 = vmatpush.msra.mxu0 %v1673
    %2374 = vmatpush.msra.mxu0 %v1671
    %2375 = vmatpush.msra.mxu0 %v1669
    %2376 = vmatpush.msra.mxu0 %v1667
    %2377 = vmatmul.f32.gmra.mxu0 %v2359
    %v2378 = vpop.f32.mrf.mxu0
    %v2379 = vadd.f32 0.0, %v2378
    %2380 = vdwg.mxu0
    %2381 = vmatpush.msra.mxu0 0.0
    %2382 = vmatpush.msra.mxu0 0.0
    %2383 = vmatpush.msra.mxu0 0.0
    %2384 = vmatpush.msra.mxu0 0.0
    %2385 = vmatpush.msra.mxu0 0.0
    %2386 = vmatpush.msra.mxu0 0.0
    %2387 = vmatpush.msra.mxu0 0.0
    %2388 = vmatpush.msra.mxu0 0.0
    %2389 = vmatpush.msra.mxu0 %v1682
    %2390 = vmatpush.msra.mxu0 %v1680
    %2391 = vmatpush.msra.mxu0 %v1678
    %2392 = vmatpush.msra.mxu0 %v1676
    %2393 = vmatpush.msra.mxu0 %v1674
    %2394 = vmatpush.msra.mxu0 %v1672
    %2395 = vmatpush.msra.mxu0 %v1670
    %2396 = vmatpush.msra.mxu0 %v1668
    %2397 = vmatmul.f32.gmra.mxu0 %v2359
    %v2398 = vpop.f32.mrf.mxu0
    %v2399 = vadd.f32 0.0, %v2398
    %2400 = vdwg.mxu0
    %v2401 = vadd.f32 %v1394, %v2379
    %v2402 = vadd.f32 %v1655, %v2399
    %v2403 = vxor.u32 %v2401, 2147483648
    %v2404 = vxor.u32 %v2402, 2147483648
    %v2405 = vmul.f32 %v2403, 1.442695
    %v2406 = vpow.pop %v2405
    %v2407 = vmul.f32 %v2404, 1.442695
    %v2408 = vpow.pop %v2407
    %v2409 = vadd.f32 %v2406, 1.0
    %v2410 = vadd.f32 %v2408, 1.0
    %v2411 = vrcp.pop %v2409
    %v2412 = vmul.f32 %v2409, %v2411
    %v2413 = vsub.f32 1.0, %v2412
    %v2414 = vmul.f32 %v2411, %v2413
    %v2415 = vadd.f32 %v2411, %v2414
    %vm2416 = vweird.f32 %v2409
    %vm2417 = vweird.f32 %v2411
    %vm2418 = vmor %vm2416, %vm2417
    %v2419 = vsel %vm2418, %v2411, %v2415
    %v2420 = vand.u32 2147483647, %v2409
    %vm2421 = vcmp.eq.f32.partialorder %v2420, 8.507059e+37
    %v2422 = vand.u32 %v2409, 2147483648
    %v2423 = vor.u32 1.1754944e-38, %v2422
    %v2424 = vsel %vm2421, %v2423, %v2419
    %v2425 = vmul.f32 1.0, %v2424
    %v2426 = vrcp.pop %v2410
    %v2427 = vmul.f32 %v2410, %v2426
    %v2428 = vsub.f32 1.0, %v2427
    %v2429 = vmul.f32 %v2426, %v2428
    %v2430 = vadd.f32 %v2426, %v2429
    %vm2431 = vweird.f32 %v2410
    %vm2432 = vweird.f32 %v2426
    %vm2433 = vmor %vm2431, %vm2432
    %v2434 = vsel %vm2433, %v2426, %v2430
    %v2435 = vand.u32 2147483647, %v2410
    %vm2436 = vcmp.eq.f32.partialorder %v2435, 8.507059e+37
    %v2437 = vand.u32 %v2410, 2147483648
    %v2438 = vor.u32 1.1754944e-38, %v2437
    %v2439 = vsel %vm2436, %v2438, %v2434
    %v2440 = vmul.f32 1.0, %v2439
    %v2441 = vtanh.pop %v2402
    %v2442 = vmul.f32 %v2425, %v2148
    %2444 = vrot.lane.b32.xlu0 %v2441, 64
    %v2445 = vpop.permute.xlu0 %2444
    %v2447 = vmul.f32 %v2425, %v2445
    %2449 = vrot.lane.b32.xlu0 %v2447, 64
    %v2450 = vpop.permute.xlu0 %2449
    %v2452 = vadd.f32 %v2442, %v2450
    %v2453 = vtanh.pop %v2452
    %2455 = vrot.lane.b32.xlu0 %v2453, 64
    %v2456 = vpop.permute.xlu0 %2455
    %v2458 = vmul.f32 %v2440, %v2456
    %2460 = vrot.lane.b32.xlu0 %v2255, 64
    %v2461 = vpop.permute.xlu0 %2460
    %v2463 = vsel %vm1749, %v2154, %v2461
    %2464 = vmatpush.msra.mxu0 %v1713
    %2465 = vmatpush.msra.mxu0 %v1711
    %2466 = vmatpush.msra.mxu0 %v1709
    %2467 = vmatpush.msra.mxu0 %v1707
    %2468 = vmatpush.msra.mxu0 %v1705
    %2469 = vmatpush.msra.mxu0 %v1703
    %2470 = vmatpush.msra.mxu0 %v1701
    %2471 = vmatpush.msra.mxu0 %v1699
    %2472 = vmatpush.msra.mxu0 %v1697
    %2473 = vmatpush.msra.mxu0 %v1695
    %2474 = vmatpush.msra.mxu0 %v1693
    %2475 = vmatpush.msra.mxu0 %v1691
    %2476 = vmatpush.msra.mxu0 %v1689
    %2477 = vmatpush.msra.mxu0 %v1687
    %2478 = vmatpush.msra.mxu0 %v1685
    %2479 = vmatpush.msra.mxu0 %v1683
    %2480 = vmatmul.f32.gmra.mxu0 %v2463
    %v2481 = vpop.f32.mrf.mxu0
    %v2482 = vadd.f32 %v1954, %v2481
    %2483 = vdwg.mxu0
    %2484 = vmatpush.msra.mxu0 %v1714
    %2485 = vmatpush.msra.mxu0 %v1712
    %2486 = vmatpush.msra.mxu0 %v1710
    %2487 = vmatpush.msra.mxu0 %v1708
    %2488 = vmatpush.msra.mxu0 %v1706
    %2489 = vmatpush.msra.mxu0 %v1704
    %2490 = vmatpush.msra.mxu0 %v1702
    %2491 = vmatpush.msra.mxu0 %v1700
    %2492 = vmatpush.msra.mxu0 %v1698
    %2493 = vmatpush.msra.mxu0 %v1696
    %2494 = vmatpush.msra.mxu0 %v1694
    %2495 = vmatpush.msra.mxu0 %v1692
    %2496 = vmatpush.msra.mxu0 %v1690
    %2497 = vmatpush.msra.mxu0 %v1688
    %2498 = vmatpush.msra.mxu0 %v1686
    %2499 = vmatpush.msra.mxu0 %v1684
    %2500 = vmatmul.f32.gmra.mxu0 %v2463
    %v2501 = vpop.f32.mrf.mxu0
    %v2502 = vadd.f32 %v1955, %v2501
    %2503 = vdwg.mxu0
    %v2504 = vxor.u32 %v2482, 2147483648
    %v2505 = vxor.u32 %v2502, 2147483648
    %v2506 = vmul.f32 %v2504, 1.442695
    %v2507 = vpow.pop %v2506
    %v2508 = vmul.f32 %v2505, 1.442695
    %v2509 = vpow.pop %v2508
    %v2510 = vadd.f32 %v2507, 1.0
    %v2511 = vadd.f32 %v2509, 1.0
    %v2512 = vrcp.pop %v2510
    %v2513 = vmul.f32 %v2510, %v2512
    %v2514 = vsub.f32 1.0, %v2513
    %v2515 = vmul.f32 %v2512, %v2514
    %v2516 = vadd.f32 %v2512, %v2515
    %vm2517 = vweird.f32 %v2510
    %vm2518 = vweird.f32 %v2512
    %vm2519 = vmor %vm2517, %vm2518
    %v2520 = vsel %vm2519, %v2512, %v2516
    %v2521 = vand.u32 2147483647, %v2510
    %vm2522 = vcmp.eq.f32.partialorder %v2521, 8.507059e+37
    %v2523 = vand.u32 %v2510, 2147483648
    %v2524 = vor.u32 1.1754944e-38, %v2523
    %v2525 = vsel %vm2522, %v2524, %v2520
    %v2526 = vmul.f32 1.0, %v2525
    %v2527 = vrcp.pop %v2511
    %v2528 = vmul.f32 %v2511, %v2527
    %v2529 = vsub.f32 1.0, %v2528
    %v2530 = vmul.f32 %v2527, %v2529
    %v2531 = vadd.f32 %v2527, %v2530
    %vm2532 = vweird.f32 %v2511
    %vm2533 = vweird.f32 %v2527
    %vm2534 = vmor %vm2532, %vm2533
    %v2535 = vsel %vm2534, %v2527, %v2531
    %v2536 = vand.u32 2147483647, %v2511
    %vm2537 = vcmp.eq.f32.partialorder %v2536, 8.507059e+37
    %v2538 = vand.u32 %v2511, 2147483648
    %v2539 = vor.u32 1.1754944e-38, %v2538
    %v2540 = vsel %vm2537, %v2539, %v2535
    %v2541 = vmul.f32 1.0, %v2540
    %v2542 = vtanh.pop %v2502
    %v2543 = vmul.f32 %v2526, %v2249
    %2545 = vrot.lane.b32.xlu0 %v2542, 64
    %v2546 = vpop.permute.xlu0 %2545
    %v2548 = vmul.f32 %v2526, %v2546
    %2550 = vrot.lane.b32.xlu0 %v2548, 64
    %v2551 = vpop.permute.xlu0 %2550
    %v2553 = vadd.f32 %v2543, %v2551
    %v2554 = vtanh.pop %v2553
    %2556 = vrot.lane.b32.xlu0 %v2554, 64
    %v2557 = vpop.permute.xlu0 %2556
    %v2559 = vmul.f32 %v2541, %v2557
    %2561 = vrot.lane.b32.xlu0 %v2357, 64
    %v2562 = vpop.permute.xlu0 %2561
    %v2564 = vsel %vm1749, %v2255, %v2562
    %2565 = vmatpush.msra.mxu0 %v1746
    %2566 = vmatpush.msra.mxu0 %v1744
    %2567 = vmatpush.msra.mxu0 %v1742
    %2568 = vmatpush.msra.mxu0 %v1740
    %2569 = vmatpush.msra.mxu0 %v1738
    %2570 = vmatpush.msra.mxu0 %v1736
    %2571 = vmatpush.msra.mxu0 %v1734
    %2572 = vmatpush.msra.mxu0 %v1732
    %2573 = vmatpush.msra.mxu0 %v1730
    %2574 = vmatpush.msra.mxu0 %v1728
    %2575 = vmatpush.msra.mxu0 %v1726
    %2576 = vmatpush.msra.mxu0 %v1724
    %2577 = vmatpush.msra.mxu0 %v1722
    %2578 = vmatpush.msra.mxu0 %v1720
    %2579 = vmatpush.msra.mxu0 %v1718
    %2580 = vmatpush.msra.mxu0 %v1716
    %2581 = vmatmul.f32.gmra.mxu0 %v2564
    %v2582 = vpop.f32.mrf.mxu0
    %v2583 = vadd.f32 %v2258, %v2582
    %2584 = vdwg.mxu0
    %2585 = vmatpush.msra.mxu0 %v1747
    %2586 = vmatpush.msra.mxu0 %v1745
    %2587 = vmatpush.msra.mxu0 %v1743
    %2588 = vmatpush.msra.mxu0 %v1741
    %2589 = vmatpush.msra.mxu0 %v1739
    %2590 = vmatpush.msra.mxu0 %v1737
    %2591 = vmatpush.msra.mxu0 %v1735
    %2592 = vmatpush.msra.mxu0 %v1733
    %2593 = vmatpush.msra.mxu0 %v1731
    %2594 = vmatpush.msra.mxu0 %v1729
    %2595 = vmatpush.msra.mxu0 %v1727
    %2596 = vmatpush.msra.mxu0 %v1725
    %2597 = vmatpush.msra.mxu0 %v1723
    %2598 = vmatpush.msra.mxu0 %v1721
    %2599 = vmatpush.msra.mxu0 %v1719
    %2600 = vmatpush.msra.mxu0 %v1717
    %2601 = vmatmul.f32.gmra.mxu0 %v2564
    %v2602 = vpop.f32.mrf.mxu0
    %v2603 = vadd.f32 %v2259, %v2602
    %2604 = vdwg.mxu0
    %v2605 = vxor.u32 %v2583, 2147483648
    %v2606 = vxor.u32 %v2603, 2147483648
    %v2607 = vmul.f32 %v2605, 1.442695
    %v2608 = vpow.pop %v2607
    %v2609 = vmul.f32 %v2606, 1.442695
    %v2610 = vpow.pop %v2609
    %v2611 = vadd.f32 %v2608, 1.0
    %v2612 = vadd.f32 %v2610, 1.0
    %v2613 = vrcp.pop %v2611
    %v2614 = vmul.f32 %v2611, %v2613
    %v2615 = vsub.f32 1.0, %v2614
    %v2616 = vmul.f32 %v2613, %v2615
    %v2617 = vadd.f32 %v2613, %v2616
    %vm2618 = vweird.f32 %v2611
    %vm2619 = vweird.f32 %v2613
    %vm2620 = vmor %vm2618, %vm2619
    %v2621 = vsel %vm2620, %v2613, %v2617
    %v2622 = vand.u32 2147483647, %v2611
    %vm2623 = vcmp.eq.f32.partialorder %v2622, 8.507059e+37
    %v2624 = vand.u32 %v2611, 2147483648
    %v2625 = vor.u32 1.1754944e-38, %v2624
    %v2626 = vsel %vm2623, %v2625, %v2621
    %v2627 = vmul.f32 1.0, %v2626
    %v2628 = vrcp.pop %v2612
    %v2629 = vmul.f32 %v2612, %v2628
    %v2630 = vsub.f32 1.0, %v2629
    %v2631 = vmul.f32 %v2628, %v2630
    %v2632 = vadd.f32 %v2628, %v2631
    %vm2633 = vweird.f32 %v2612
    %vm2634 = vweird.f32 %v2628
    %vm2635 = vmor %vm2633, %vm2634
    %v2636 = vsel %vm2635, %v2628, %v2632
    %v2637 = vand.u32 2147483647, %v2612
    %vm2638 = vcmp.eq.f32.partialorder %v2637, 8.507059e+37
    %v2639 = vand.u32 %v2612, 2147483648
    %v2640 = vor.u32 1.1754944e-38, %v2639
    %v2641 = vsel %vm2638, %v2640, %v2636
    %v2642 = vmul.f32 1.0, %v2641
    %v2643 = vtanh.pop %v2603
    %v2644 = vmul.f32 %v2627, %v2351
    %2646 = vrot.lane.b32.xlu0 %v2643, 64
    %v2647 = vpop.permute.xlu0 %2646
    %v2649 = vmul.f32 %v2627, %v2647
    %2651 = vrot.lane.b32.xlu0 %v2649, 64
    %v2652 = vpop.permute.xlu0 %2651
    %v2654 = vadd.f32 %v2644, %v2652
    %v2655 = vtanh.pop %v2654
    %2657 = vrot.lane.b32.xlu0 %v2655, 64
    %v2658 = vpop.permute.xlu0 %2657
    %v2660 = vmul.f32 %v2642, %v2658
    %v2662 = vsel %vm1749, %v2458, 0
    %2664 = vmatpush.msra.mxu0 0.0
    %2665 = vmatpush.msra.mxu0 0.0
    %2666 = vmatpush.msra.mxu0 0.0
    %2667 = vmatpush.msra.mxu0 0.0
    %2668 = vmatpush.msra.mxu0 0.0
    %2669 = vmatpush.msra.mxu0 0.0
    %2670 = vmatpush.msra.mxu0 0.0
    %2671 = vmatpush.msra.mxu0 0.0
    %2672 = vmatpush.msra.mxu0 %v1681
    %2673 = vmatpush.msra.mxu0 %v1679
    %2674 = vmatpush.msra.mxu0 %v1677
    %2675 = vmatpush.msra.mxu0 %v1675
    %2676 = vmatpush.msra.mxu0 %v1673
    %2677 = vmatpush.msra.mxu0 %v1671
    %2678 = vmatpush.msra.mxu0 %v1669
    %2679 = vmatpush.msra.mxu0 %v1667
    %2680 = vmatmul.f32.gmra.mxu0 %v2662
    %v2681 = vpop.f32.mrf.mxu0
    %v2682 = vadd.f32 0.0, %v2681
    %2683 = vdwg.mxu0
    %2684 = vmatpush.msra.mxu0 0.0
    %2685 = vmatpush.msra.mxu0 0.0
    %2686 = vmatpush.msra.mxu0 0.0
    %2687 = vmatpush.msra.mxu0 0.0
    %2688 = vmatpush.msra.mxu0 0.0
    %2689 = vmatpush.msra.mxu0 0.0
    %2690 = vmatpush.msra.mxu0 0.0
    %2691 = vmatpush.msra.mxu0 0.0
    %2692 = vmatpush.msra.mxu0 %v1682
    %2693 = vmatpush.msra.mxu0 %v1680
    %2694 = vmatpush.msra.mxu0 %v1678
    %2695 = vmatpush.msra.mxu0 %v1676
    %2696 = vmatpush.msra.mxu0 %v1674
    %2697 = vmatpush.msra.mxu0 %v1672
    %2698 = vmatpush.msra.mxu0 %v1670
    %2699 = vmatpush.msra.mxu0 %v1668
    %2700 = vmatmul.f32.gmra.mxu0 %v2662
    %v2701 = vpop.f32.mrf.mxu0
    %v2702 = vadd.f32 0.0, %v2701
    %2703 = vdwg.mxu0
    %v2704 = vadd.f32 %v1397, %v2682
    %v2705 = vadd.f32 %v1658, %v2702
    %v2706 = vxor.u32 %v2704, 2147483648
    %v2707 = vxor.u32 %v2705, 2147483648
    %v2708 = vmul.f32 %v2706, 1.442695
    %v2709 = vpow.pop %v2708
    %v2710 = vmul.f32 %v2707, 1.442695
    %v2711 = vpow.pop %v2710
    %v2712 = vadd.f32 %v2709, 1.0
    %v2713 = vadd.f32 %v2711, 1.0
    %v2714 = vrcp.pop %v2712
    %v2715 = vmul.f32 %v2712, %v2714
    %v2716 = vsub.f32 1.0, %v2715
    %v2717 = vmul.f32 %v2714, %v2716
    %v2718 = vadd.f32 %v2714, %v2717
    %vm2719 = vweird.f32 %v2712
    %vm2720 = vweird.f32 %v2714
    %vm2721 = vmor %vm2719, %vm2720
    %v2722 = vsel %vm2721, %v2714, %v2718
    %v2723 = vand.u32 2147483647, %v2712
    %vm2724 = vcmp.eq.f32.partialorder %v2723, 8.507059e+37
    %v2725 = vand.u32 %v2712, 2147483648
    %v2726 = vor.u32 1.1754944e-38, %v2725
    %v2727 = vsel %vm2724, %v2726, %v2722
    %v2728 = vmul.f32 1.0, %v2727
    %v2729 = vrcp.pop %v2713
    %v2730 = vmul.f32 %v2713, %v2729
    %v2731 = vsub.f32 1.0, %v2730
    %v2732 = vmul.f32 %v2729, %v2731
    %v2733 = vadd.f32 %v2729, %v2732
    %vm2734 = vweird.f32 %v2713
    %vm2735 = vweird.f32 %v2729
    %vm2736 = vmor %vm2734, %vm2735
    %v2737 = vsel %vm2736, %v2729, %v2733
    %v2738 = vand.u32 2147483647, %v2713
    %vm2739 = vcmp.eq.f32.partialorder %v2738, 8.507059e+37
    %v2740 = vand.u32 %v2713, 2147483648
    %v2741 = vor.u32 1.1754944e-38, %v2740
    %v2742 = vsel %vm2739, %v2741, %v2737
    %v2743 = vmul.f32 1.0, %v2742
    %v2744 = vtanh.pop %v2705
    %v2745 = vmul.f32 %v2728, %v2452
    %2747 = vrot.lane.b32.xlu0 %v2744, 64
    %v2748 = vpop.permute.xlu0 %2747
    %v2750 = vmul.f32 %v2728, %v2748
    %2752 = vrot.lane.b32.xlu0 %v2750, 64
    %v2753 = vpop.permute.xlu0 %2752
    %v2755 = vadd.f32 %v2745, %v2753
    %v2756 = vtanh.pop %v2755
    %2758 = vrot.lane.b32.xlu0 %v2756, 64
    %v2759 = vpop.permute.xlu0 %2758
    %v2761 = vmul.f32 %v2743, %v2759
    %2763 = vrot.lane.b32.xlu0 %v2559, 64
    %v2764 = vpop.permute.xlu0 %2763
    %v2766 = vsel %vm1749, %v2458, %v2764
    %2767 = vmatpush.msra.mxu0 %v1713
    %2768 = vmatpush.msra.mxu0 %v1711
    %2769 = vmatpush.msra.mxu0 %v1709
    %2770 = vmatpush.msra.mxu0 %v1707
    %2771 = vmatpush.msra.mxu0 %v1705
    %2772 = vmatpush.msra.mxu0 %v1703
    %2773 = vmatpush.msra.mxu0 %v1701
    %2774 = vmatpush.msra.mxu0 %v1699
    %2775 = vmatpush.msra.mxu0 %v1697
    %2776 = vmatpush.msra.mxu0 %v1695
    %2777 = vmatpush.msra.mxu0 %v1693
    %2778 = vmatpush.msra.mxu0 %v1691
    %2779 = vmatpush.msra.mxu0 %v1689
    %2780 = vmatpush.msra.mxu0 %v1687
    %2781 = vmatpush.msra.mxu0 %v1685
    %2782 = vmatpush.msra.mxu0 %v1683
    %2783 = vmatmul.f32.gmra.mxu0 %v2766
    %v2784 = vpop.f32.mrf.mxu0
    %v2785 = vadd.f32 %v1954, %v2784
    %2786 = vdwg.mxu0
    %2787 = vmatpush.msra.mxu0 %v1714
    %2788 = vmatpush.msra.mxu0 %v1712
    %2789 = vmatpush.msra.mxu0 %v1710
    %2790 = vmatpush.msra.mxu0 %v1708
    %2791 = vmatpush.msra.mxu0 %v1706
    %2792 = vmatpush.msra.mxu0 %v1704
    %2793 = vmatpush.msra.mxu0 %v1702
    %2794 = vmatpush.msra.mxu0 %v1700
    %2795 = vmatpush.msra.mxu0 %v1698
    %2796 = vmatpush.msra.mxu0 %v1696
    %2797 = vmatpush.msra.mxu0 %v1694
    %2798 = vmatpush.msra.mxu0 %v1692
    %2799 = vmatpush.msra.mxu0 %v1690
    %2800 = vmatpush.msra.mxu0 %v1688
    %2801 = vmatpush.msra.mxu0 %v1686
    %2802 = vmatpush.msra.mxu0 %v1684
    %2803 = vmatmul.f32.gmra.mxu0 %v2766
    %v2804 = vpop.f32.mrf.mxu0
    %v2805 = vadd.f32 %v1955, %v2804
    %2806 = vdwg.mxu0
    %v2807 = vxor.u32 %v2785, 2147483648
    %v2808 = vxor.u32 %v2805, 2147483648
    %v2809 = vmul.f32 %v2807, 1.442695
    %v2810 = vpow.pop %v2809
    %v2811 = vmul.f32 %v2808, 1.442695
    %v2812 = vpow.pop %v2811
    %v2813 = vadd.f32 %v2810, 1.0
    %v2814 = vadd.f32 %v2812, 1.0
    %v2815 = vrcp.pop %v2813
    %v2816 = vmul.f32 %v2813, %v2815
    %v2817 = vsub.f32 1.0, %v2816
    %v2818 = vmul.f32 %v2815, %v2817
    %v2819 = vadd.f32 %v2815, %v2818
    %vm2820 = vweird.f32 %v2813
    %vm2821 = vweird.f32 %v2815
    %vm2822 = vmor %vm2820, %vm2821
    %v2823 = vsel %vm2822, %v2815, %v2819
    %v2824 = vand.u32 2147483647, %v2813
    %vm2825 = vcmp.eq.f32.partialorder %v2824, 8.507059e+37
    %v2826 = vand.u32 %v2813, 2147483648
    %v2827 = vor.u32 1.1754944e-38, %v2826
    %v2828 = vsel %vm2825, %v2827, %v2823
    %v2829 = vmul.f32 1.0, %v2828
    %v2830 = vrcp.pop %v2814
    %v2831 = vmul.f32 %v2814, %v2830
    %v2832 = vsub.f32 1.0, %v2831
    %v2833 = vmul.f32 %v2830, %v2832
    %v2834 = vadd.f32 %v2830, %v2833
    %vm2835 = vweird.f32 %v2814
    %vm2836 = vweird.f32 %v2830
    %vm2837 = vmor %vm2835, %vm2836
    %v2838 = vsel %vm2837, %v2830, %v2834
    %v2839 = vand.u32 2147483647, %v2814
    %vm2840 = vcmp.eq.f32.partialorder %v2839, 8.507059e+37
    %v2841 = vand.u32 %v2814, 2147483648
    %v2842 = vor.u32 1.1754944e-38, %v2841
    %v2843 = vsel %vm2840, %v2842, %v2838
    %v2844 = vmul.f32 1.0, %v2843
    %v2845 = vtanh.pop %v2805
    %v2846 = vmul.f32 %v2829, %v2553
    %2848 = vrot.lane.b32.xlu0 %v2845, 64
    %v2849 = vpop.permute.xlu0 %2848
    %v2851 = vmul.f32 %v2829, %v2849
    %2853 = vrot.lane.b32.xlu0 %v2851, 64
    %v2854 = vpop.permute.xlu0 %2853
    %v2856 = vadd.f32 %v2846, %v2854
    %v2857 = vtanh.pop %v2856
    %2859 = vrot.lane.b32.xlu0 %v2857, 64
    %v2860 = vpop.permute.xlu0 %2859
    %v2862 = vmul.f32 %v2844, %v2860
    %2864 = vrot.lane.b32.xlu0 %v2660, 64
    %v2865 = vpop.permute.xlu0 %2864
    %v2867 = vsel %vm1749, %v2559, %v2865
    %2868 = vmatpush.msra.mxu0 %v1746
    %2869 = vmatpush.msra.mxu0 %v1744
    %2870 = vmatpush.msra.mxu0 %v1742
    %2871 = vmatpush.msra.mxu0 %v1740
    %2872 = vmatpush.msra.mxu0 %v1738
    %2873 = vmatpush.msra.mxu0 %v1736
    %2874 = vmatpush.msra.mxu0 %v1734
    %2875 = vmatpush.msra.mxu0 %v1732
    %2876 = vmatpush.msra.mxu0 %v1730
    %2877 = vmatpush.msra.mxu0 %v1728
    %2878 = vmatpush.msra.mxu0 %v1726
    %2879 = vmatpush.msra.mxu0 %v1724
    %2880 = vmatpush.msra.mxu0 %v1722
    %2881 = vmatpush.msra.mxu0 %v1720
    %2882 = vmatpush.msra.mxu0 %v1718
    %2883 = vmatpush.msra.mxu0 %v1716
    %2884 = vmatmul.f32.gmra.mxu0 %v2867
    %v2885 = vpop.f32.mrf.mxu0
    %v2886 = vadd.f32 %v2258, %v2885
    %2887 = vdwg.mxu0
    %2888 = vmatpush.msra.mxu0 %v1747
    %2889 = vmatpush.msra.mxu0 %v1745
    %2890 = vmatpush.msra.mxu0 %v1743
    %2891 = vmatpush.msra.mxu0 %v1741
    %2892 = vmatpush.msra.mxu0 %v1739
    %2893 = vmatpush.msra.mxu0 %v1737
    %2894 = vmatpush.msra.mxu0 %v1735
    %2895 = vmatpush.msra.mxu0 %v1733
    %2896 = vmatpush.msra.mxu0 %v1731
    %2897 = vmatpush.msra.mxu0 %v1729
    %2898 = vmatpush.msra.mxu0 %v1727
    %2899 = vmatpush.msra.mxu0 %v1725
    %2900 = vmatpush.msra.mxu0 %v1723
    %2901 = vmatpush.msra.mxu0 %v1721
    %2902 = vmatpush.msra.mxu0 %v1719
    %2903 = vmatpush.msra.mxu0 %v1717
    %2904 = vmatmul.f32.gmra.mxu0 %v2867
    %v2905 = vpop.f32.mrf.mxu0
    %v2906 = vadd.f32 %v2259, %v2905
    %2907 = vdwg.mxu0
    %v2908 = vxor.u32 %v2886, 2147483648
    %v2909 = vxor.u32 %v2906, 2147483648
    %v2910 = vmul.f32 %v2908, 1.442695
    %v2911 = vpow.pop %v2910
    %v2912 = vmul.f32 %v2909, 1.442695
    %v2913 = vpow.pop %v2912
    %v2914 = vadd.f32 %v2911, 1.0
    %v2915 = vadd.f32 %v2913, 1.0
    %v2916 = vrcp.pop %v2914
    %v2917 = vmul.f32 %v2914, %v2916
    %v2918 = vsub.f32 1.0, %v2917
    %v2919 = vmul.f32 %v2916, %v2918
    %v2920 = vadd.f32 %v2916, %v2919
    %vm2921 = vweird.f32 %v2914
    %vm2922 = vweird.f32 %v2916
    %vm2923 = vmor %vm2921, %vm2922
    %v2924 = vsel %vm2923, %v2916, %v2920
    %v2925 = vand.u32 2147483647, %v2914
    %vm2926 = vcmp.eq.f32.partialorder %v2925, 8.507059e+37
    %v2927 = vand.u32 %v2914, 2147483648
    %v2928 = vor.u32 1.1754944e-38, %v2927
    %v2929 = vsel %vm2926, %v2928, %v2924
    %v2930 = vmul.f32 1.0, %v2929
    %v2931 = vrcp.pop %v2915
    %v2932 = vmul.f32 %v2915, %v2931
    %v2933 = vsub.f32 1.0, %v2932
    %v2934 = vmul.f32 %v2931, %v2933
    %v2935 = vadd.f32 %v2931, %v2934
    %vm2936 = vweird.f32 %v2915
    %vm2937 = vweird.f32 %v2931
    %vm2938 = vmor %vm2936, %vm2937
    %v2939 = vsel %vm2938, %v2931, %v2935
    %v2940 = vand.u32 2147483647, %v2915
    %vm2941 = vcmp.eq.f32.partialorder %v2940, 8.507059e+37
    %v2942 = vand.u32 %v2915, 2147483648
    %v2943 = vor.u32 1.1754944e-38, %v2942
    %v2944 = vsel %vm2941, %v2943, %v2939
    %v2945 = vmul.f32 1.0, %v2944
    %v2946 = vtanh.pop %v2906
    %v2947 = vmul.f32 %v2930, %v2654
    %2949 = vrot.lane.b32.xlu0 %v2946, 64
    %v2950 = vpop.permute.xlu0 %2949
    %v2952 = vmul.f32 %v2930, %v2950
    %2954 = vrot.lane.b32.xlu0 %v2952, 64
    %v2955 = vpop.permute.xlu0 %2954
    %v2957 = vadd.f32 %v2947, %v2955
    %v2958 = vtanh.pop %v2957
    %2960 = vrot.lane.b32.xlu0 %v2958, 64
    %v2961 = vpop.permute.xlu0 %2960
    %v2963 = vmul.f32 %v2945, %v2961
    %v2965 = vsel %vm1749, %v2761, 0
    %2967 = vmatpush.msra.mxu0 0.0
    %2968 = vmatpush.msra.mxu0 0.0
    %2969 = vmatpush.msra.mxu0 0.0
    %2970 = vmatpush.msra.mxu0 0.0
    %2971 = vmatpush.msra.mxu0 0.0
    %2972 = vmatpush.msra.mxu0 0.0
    %2973 = vmatpush.msra.mxu0 0.0
    %2974 = vmatpush.msra.mxu0 0.0
    %2975 = vmatpush.msra.mxu0 %v1681
    %2976 = vmatpush.msra.mxu0 %v1679
    %2977 = vmatpush.msra.mxu0 %v1677
    %2978 = vmatpush.msra.mxu0 %v1675
    %2979 = vmatpush.msra.mxu0 %v1673
    %2980 = vmatpush.msra.mxu0 %v1671
    %2981 = vmatpush.msra.mxu0 %v1669
    %2982 = vmatpush.msra.mxu0 %v1667
    %2983 = vmatmul.f32.gmra.mxu0 %v2965
    %v2984 = vpop.f32.mrf.mxu0
    %v2985 = vadd.f32 0.0, %v2984
    %2986 = vdwg.mxu0
    %2987 = vmatpush.msra.mxu0 0.0
    %2988 = vmatpush.msra.mxu0 0.0
    %2989 = vmatpush.msra.mxu0 0.0
    %2990 = vmatpush.msra.mxu0 0.0
    %2991 = vmatpush.msra.mxu0 0.0
    %2992 = vmatpush.msra.mxu0 0.0
    %2993 = vmatpush.msra.mxu0 0.0
    %2994 = vmatpush.msra.mxu0 0.0
    %2995 = vmatpush.msra.mxu0 %v1682
    %2996 = vmatpush.msra.mxu0 %v1680
    %2997 = vmatpush.msra.mxu0 %v1678
    %2998 = vmatpush.msra.mxu0 %v1676
    %2999 = vmatpush.msra.mxu0 %v1674
    %3000 = vmatpush.msra.mxu0 %v1672
    %3001 = vmatpush.msra.mxu0 %v1670
    %3002 = vmatpush.msra.mxu0 %v1668
    %3003 = vmatmul.f32.gmra.mxu0 %v2965
    %v3004 = vpop.f32.mrf.mxu0
    %v3005 = vadd.f32 0.0, %v3004
    %3006 = vdwg.mxu0
    %v3007 = vadd.f32 %v1399, %v2985
    %v3008 = vadd.f32 %v1660, %v3005
    %v3009 = vxor.u32 %v3007, 2147483648
    %v3010 = vxor.u32 %v3008, 2147483648
    %v3011 = vmul.f32 %v3009, 1.442695
    %v3012 = vpow.pop %v3011
    %v3013 = vmul.f32 %v3010, 1.442695
    %v3014 = vpow.pop %v3013
    %v3015 = vadd.f32 %v3012, 1.0
    %v3016 = vadd.f32 %v3014, 1.0
    %v3017 = vrcp.pop %v3015
    %v3018 = vmul.f32 %v3015, %v3017
    %v3019 = vsub.f32 1.0, %v3018
    %v3020 = vmul.f32 %v3017, %v3019
    %v3021 = vadd.f32 %v3017, %v3020
    %vm3022 = vweird.f32 %v3015
    %vm3023 = vweird.f32 %v3017
    %vm3024 = vmor %vm3022, %vm3023
    %v3025 = vsel %vm3024, %v3017, %v3021
    %v3026 = vand.u32 2147483647, %v3015
    %vm3027 = vcmp.eq.f32.partialorder %v3026, 8.507059e+37
    %v3028 = vand.u32 %v3015, 2147483648
    %v3029 = vor.u32 1.1754944e-38, %v3028
    %v3030 = vsel %vm3027, %v3029, %v3025
    %v3031 = vmul.f32 1.0, %v3030
    %v3032 = vrcp.pop %v3016
    %v3033 = vmul.f32 %v3016, %v3032
    %v3034 = vsub.f32 1.0, %v3033
    %v3035 = vmul.f32 %v3032, %v3034
    %v3036 = vadd.f32 %v3032, %v3035
    %vm3037 = vweird.f32 %v3016
    %vm3038 = vweird.f32 %v3032
    %vm3039 = vmor %vm3037, %vm3038
    %v3040 = vsel %vm3039, %v3032, %v3036
    %v3041 = vand.u32 2147483647, %v3016
    %vm3042 = vcmp.eq.f32.partialorder %v3041, 8.507059e+37
    %v3043 = vand.u32 %v3016, 2147483648
    %v3044 = vor.u32 1.1754944e-38, %v3043
    %v3045 = vsel %vm3042, %v3044, %v3040
    %v3046 = vmul.f32 1.0, %v3045
    %v3047 = vtanh.pop %v3008
    %v3048 = vmul.f32 %v3031, %v2755
    %3050 = vrot.lane.b32.xlu0 %v3047, 64
    %v3051 = vpop.permute.xlu0 %3050
    %v3053 = vmul.f32 %v3031, %v3051
    %3055 = vrot.lane.b32.xlu0 %v3053, 64
    %v3056 = vpop.permute.xlu0 %3055
    %v3058 = vadd.f32 %v3048, %v3056
    %v3059 = vtanh.pop %v3058
    %3061 = vrot.lane.b32.xlu0 %v3059, 64
    %v3062 = vpop.permute.xlu0 %3061
    %v3064 = vmul.f32 %v3046, %v3062
    %3066 = vrot.lane.b32.xlu0 %v2862, 64
    %v3067 = vpop.permute.xlu0 %3066
    %v3069 = vsel %vm1749, %v2761, %v3067
    %3070 = vmatpush.msra.mxu0 %v1713
    %3071 = vmatpush.msra.mxu0 %v1711
    %3072 = vmatpush.msra.mxu0 %v1709
    %3073 = vmatpush.msra.mxu0 %v1707
    %3074 = vmatpush.msra.mxu0 %v1705
    %3075 = vmatpush.msra.mxu0 %v1703
    %3076 = vmatpush.msra.mxu0 %v1701
    %3077 = vmatpush.msra.mxu0 %v1699
    %3078 = vmatpush.msra.mxu0 %v1697
    %3079 = vmatpush.msra.mxu0 %v1695
    %3080 = vmatpush.msra.mxu0 %v1693
    %3081 = vmatpush.msra.mxu0 %v1691
    %3082 = vmatpush.msra.mxu0 %v1689
    %3083 = vmatpush.msra.mxu0 %v1687
    %3084 = vmatpush.msra.mxu0 %v1685
    %3085 = vmatpush.msra.mxu0 %v1683
    %3086 = vmatmul.f32.gmra.mxu0 %v3069
    %v3087 = vpop.f32.mrf.mxu0
    %v3088 = vadd.f32 %v1954, %v3087
    %3089 = vdwg.mxu0
    %3090 = vmatpush.msra.mxu0 %v1714
    %3091 = vmatpush.msra.mxu0 %v1712
    %3092 = vmatpush.msra.mxu0 %v1710
    %3093 = vmatpush.msra.mxu0 %v1708
    %3094 = vmatpush.msra.mxu0 %v1706
    %3095 = vmatpush.msra.mxu0 %v1704
    %3096 = vmatpush.msra.mxu0 %v1702
    %3097 = vmatpush.msra.mxu0 %v1700
    %3098 = vmatpush.msra.mxu0 %v1698
    %3099 = vmatpush.msra.mxu0 %v1696
    %3100 = vmatpush.msra.mxu0 %v1694
    %3101 = vmatpush.msra.mxu0 %v1692
    %3102 = vmatpush.msra.mxu0 %v1690
    %3103 = vmatpush.msra.mxu0 %v1688
    %3104 = vmatpush.msra.mxu0 %v1686
    %3105 = vmatpush.msra.mxu0 %v1684
    %3106 = vmatmul.f32.gmra.mxu0 %v3069
    %v3107 = vpop.f32.mrf.mxu0
    %v3108 = vadd.f32 %v1955, %v3107
    %3109 = vdwg.mxu0
    %v3110 = vxor.u32 %v3088, 2147483648
    %v3111 = vxor.u32 %v3108, 2147483648
    %v3112 = vmul.f32 %v3110, 1.442695
    %v3113 = vpow.pop %v3112
    %v3114 = vmul.f32 %v3111, 1.442695
    %v3115 = vpow.pop %v3114
    %v3116 = vadd.f32 %v3113, 1.0
    %v3117 = vadd.f32 %v3115, 1.0
    %v3118 = vrcp.pop %v3116
    %v3119 = vmul.f32 %v3116, %v3118
    %v3120 = vsub.f32 1.0, %v3119
    %v3121 = vmul.f32 %v3118, %v3120
    %v3122 = vadd.f32 %v3118, %v3121
    %vm3123 = vweird.f32 %v3116
    %vm3124 = vweird.f32 %v3118
    %vm3125 = vmor %vm3123, %vm3124
    %v3126 = vsel %vm3125, %v3118, %v3122
    %v3127 = vand.u32 2147483647, %v3116
    %vm3128 = vcmp.eq.f32.partialorder %v3127, 8.507059e+37
    %v3129 = vand.u32 %v3116, 2147483648
    %v3130 = vor.u32 1.1754944e-38, %v3129
    %v3131 = vsel %vm3128, %v3130, %v3126
    %v3132 = vmul.f32 1.0, %v3131
    %v3133 = vrcp.pop %v3117
    %v3134 = vmul.f32 %v3117, %v3133
    %v3135 = vsub.f32 1.0, %v3134
    %v3136 = vmul.f32 %v3133, %v3135
    %v3137 = vadd.f32 %v3133, %v3136
    %vm3138 = vweird.f32 %v3117
    %vm3139 = vweird.f32 %v3133
    %vm3140 = vmor %vm3138, %vm3139
    %v3141 = vsel %vm3140, %v3133, %v3137
    %v3142 = vand.u32 2147483647, %v3117
    %vm3143 = vcmp.eq.f32.partialorder %v3142, 8.507059e+37
    %v3144 = vand.u32 %v3117, 2147483648
    %v3145 = vor.u32 1.1754944e-38, %v3144
    %v3146 = vsel %vm3143, %v3145, %v3141
    %v3147 = vmul.f32 1.0, %v3146
    %v3148 = vtanh.pop %v3108
    %v3149 = vmul.f32 %v3132, %v2856
    %3151 = vrot.lane.b32.xlu0 %v3148, 64
    %v3152 = vpop.permute.xlu0 %3151
    %v3154 = vmul.f32 %v3132, %v3152
    %3156 = vrot.lane.b32.xlu0 %v3154, 64
    %v3157 = vpop.permute.xlu0 %3156
    %v3159 = vadd.f32 %v3149, %v3157
    %v3160 = vtanh.pop %v3159
    %3162 = vrot.lane.b32.xlu0 %v3160, 64
    %v3163 = vpop.permute.xlu0 %3162
    %v3165 = vmul.f32 %v3147, %v3163
    %3167 = vrot.lane.b32.xlu0 %v2963, 64
    %v3168 = vpop.permute.xlu0 %3167
    %v3170 = vsel %vm1749, %v2862, %v3168
    %3171 = vmatpush.msra.mxu0 %v1746
    %3172 = vmatpush.msra.mxu0 %v1744
    %3173 = vmatpush.msra.mxu0 %v1742
    %3174 = vmatpush.msra.mxu0 %v1740
    %3175 = vmatpush.msra.mxu0 %v1738
    %3176 = vmatpush.msra.mxu0 %v1736
    %3177 = vmatpush.msra.mxu0 %v1734
    %3178 = vmatpush.msra.mxu0 %v1732
    %3179 = vmatpush.msra.mxu0 %v1730
    %3180 = vmatpush.msra.mxu0 %v1728
    %3181 = vmatpush.msra.mxu0 %v1726
    %3182 = vmatpush.msra.mxu0 %v1724
    %3183 = vmatpush.msra.mxu0 %v1722
    %3184 = vmatpush.msra.mxu0 %v1720
    %3185 = vmatpush.msra.mxu0 %v1718
    %3186 = vmatpush.msra.mxu0 %v1716
    %3187 = vmatmul.f32.gmra.mxu0 %v3170
    %v3188 = vpop.f32.mrf.mxu0
    %v3189 = vadd.f32 %v2258, %v3188
    %3190 = vdwg.mxu0
    %3191 = vmatpush.msra.mxu0 %v1747
    %3192 = vmatpush.msra.mxu0 %v1745
    %3193 = vmatpush.msra.mxu0 %v1743
    %3194 = vmatpush.msra.mxu0 %v1741
    %3195 = vmatpush.msra.mxu0 %v1739
    %3196 = vmatpush.msra.mxu0 %v1737
    %3197 = vmatpush.msra.mxu0 %v1735
    %3198 = vmatpush.msra.mxu0 %v1733
    %3199 = vmatpush.msra.mxu0 %v1731
    %3200 = vmatpush.msra.mxu0 %v1729
    %3201 = vmatpush.msra.mxu0 %v1727
    %3202 = vmatpush.msra.mxu0 %v1725
    %3203 = vmatpush.msra.mxu0 %v1723
    %3204 = vmatpush.msra.mxu0 %v1721
    %3205 = vmatpush.msra.mxu0 %v1719
    %3206 = vmatpush.msra.mxu0 %v1717
    %3207 = vmatmul.f32.gmra.mxu0 %v3170
    %v3208 = vpop.f32.mrf.mxu0
    %v3209 = vadd.f32 %v2259, %v3208
    %3210 = vdwg.mxu0
    %v3211 = vxor.u32 %v3189, 2147483648
    %v3212 = vxor.u32 %v3209, 2147483648
    %v3213 = vmul.f32 %v3211, 1.442695
    %v3214 = vpow.pop %v3213
    %v3215 = vmul.f32 %v3212, 1.442695
    %v3216 = vpow.pop %v3215
    %v3217 = vadd.f32 %v3214, 1.0
    %v3218 = vadd.f32 %v3216, 1.0
    %v3219 = vrcp.pop %v3217
    %v3220 = vmul.f32 %v3217, %v3219
    %v3221 = vsub.f32 1.0, %v3220
    %v3222 = vmul.f32 %v3219, %v3221
    %v3223 = vadd.f32 %v3219, %v3222
    %vm3224 = vweird.f32 %v3217
    %vm3225 = vweird.f32 %v3219
    %vm3226 = vmor %vm3224, %vm3225
    %v3227 = vsel %vm3226, %v3219, %v3223
    %v3228 = vand.u32 2147483647, %v3217
    %vm3229 = vcmp.eq.f32.partialorder %v3228, 8.507059e+37
    %v3230 = vand.u32 %v3217, 2147483648
    %v3231 = vor.u32 1.1754944e-38, %v3230
    %v3232 = vsel %vm3229, %v3231, %v3227
    %v3233 = vmul.f32 1.0, %v3232
    %v3234 = vrcp.pop %v3218
    %v3235 = vmul.f32 %v3218, %v3234
    %v3236 = vsub.f32 1.0, %v3235
    %v3237 = vmul.f32 %v3234, %v3236
    %v3238 = vadd.f32 %v3234, %v3237
    %vm3239 = vweird.f32 %v3218
    %vm3240 = vweird.f32 %v3234
    %vm3241 = vmor %vm3239, %vm3240
    %v3242 = vsel %vm3241, %v3234, %v3238
    %v3243 = vand.u32 2147483647, %v3218
    %vm3244 = vcmp.eq.f32.partialorder %v3243, 8.507059e+37
    %v3245 = vand.u32 %v3218, 2147483648
    %v3246 = vor.u32 1.1754944e-38, %v3245
    %v3247 = vsel %vm3244, %v3246, %v3242
    %v3248 = vmul.f32 1.0, %v3247
    %v3249 = vtanh.pop %v3209
    %v3250 = vmul.f32 %v3233, %v2957
    %3252 = vrot.lane.b32.xlu0 %v3249, 64
    %v3253 = vpop.permute.xlu0 %3252
    %v3255 = vmul.f32 %v3233, %v3253
    %3257 = vrot.lane.b32.xlu0 %v3255, 64
    %v3258 = vpop.permute.xlu0 %3257
    %v3260 = vadd.f32 %v3250, %v3258
    %v3261 = vtanh.pop %v3260
    %3263 = vrot.lane.b32.xlu0 %v3261, 64
    %v3264 = vpop.permute.xlu0 %3263
    %v3266 = vmul.f32 %v3248, %v3264
    %v3268 = vsel %vm1749, %v3064, 0
    %3270 = vmatpush.msra.mxu0 0.0
    %3271 = vmatpush.msra.mxu0 0.0
    %3272 = vmatpush.msra.mxu0 0.0
    %3273 = vmatpush.msra.mxu0 0.0
    %3274 = vmatpush.msra.mxu0 0.0
    %3275 = vmatpush.msra.mxu0 0.0
    %3276 = vmatpush.msra.mxu0 0.0
    %3277 = vmatpush.msra.mxu0 0.0
    %3278 = vmatpush.msra.mxu0 %v1681
    %3279 = vmatpush.msra.mxu0 %v1679
    %3280 = vmatpush.msra.mxu0 %v1677
    %3281 = vmatpush.msra.mxu0 %v1675
    %3282 = vmatpush.msra.mxu0 %v1673
    %3283 = vmatpush.msra.mxu0 %v1671
    %3284 = vmatpush.msra.mxu0 %v1669
    %3285 = vmatpush.msra.mxu0 %v1667
    %3286 = vmatmul.f32.gmra.mxu0 %v3268
    %v3287 = vpop.f32.mrf.mxu0
    %v3288 = vadd.f32 0.0, %v3287
    %3289 = vdwg.mxu0
    %3290 = vmatpush.msra.mxu0 0.0
    %3291 = vmatpush.msra.mxu0 0.0
    %3292 = vmatpush.msra.mxu0 0.0
    %3293 = vmatpush.msra.mxu0 0.0
    %3294 = vmatpush.msra.mxu0 0.0
    %3295 = vmatpush.msra.mxu0 0.0
    %3296 = vmatpush.msra.mxu0 0.0
    %3297 = vmatpush.msra.mxu0 0.0
    %3298 = vmatpush.msra.mxu0 %v1682
    %3299 = vmatpush.msra.mxu0 %v1680
    %3300 = vmatpush.msra.mxu0 %v1678
    %3301 = vmatpush.msra.mxu0 %v1676
    %3302 = vmatpush.msra.mxu0 %v1674
    %3303 = vmatpush.msra.mxu0 %v1672
    %3304 = vmatpush.msra.mxu0 %v1670
    %3305 = vmatpush.msra.mxu0 %v1668
    %3306 = vmatmul.f32.gmra.mxu0 %v3268
    %v3307 = vpop.f32.mrf.mxu0
    %v3308 = vadd.f32 0.0, %v3307
    %3309 = vdwg.mxu0
    %v3310 = vadd.f32 %v1402, %v3288
    %v3311 = vadd.f32 %v1663, %v3308
    %v3312 = vxor.u32 %v3310, 2147483648
    %v3313 = vxor.u32 %v3311, 2147483648
    %v3314 = vmul.f32 %v3312, 1.442695
    %v3315 = vpow.pop %v3314
    %v3316 = vmul.f32 %v3313, 1.442695
    %v3317 = vpow.pop %v3316
    %v3318 = vadd.f32 %v3315, 1.0
    %v3319 = vadd.f32 %v3317, 1.0
    %v3320 = vrcp.pop %v3318
    %v3321 = vmul.f32 %v3318, %v3320
    %v3322 = vsub.f32 1.0, %v3321
    %v3323 = vmul.f32 %v3320, %v3322
    %v3324 = vadd.f32 %v3320, %v3323
    %vm3325 = vweird.f32 %v3318
    %vm3326 = vweird.f32 %v3320
    %vm3327 = vmor %vm3325, %vm3326
    %v3328 = vsel %vm3327, %v3320, %v3324
    %v3329 = vand.u32 2147483647, %v3318
    %vm3330 = vcmp.eq.f32.partialorder %v3329, 8.507059e+37
    %v3331 = vand.u32 %v3318, 2147483648
    %v3332 = vor.u32 1.1754944e-38, %v3331
    %v3333 = vsel %vm3330, %v3332, %v3328
    %v3334 = vmul.f32 1.0, %v3333
    %v3335 = vrcp.pop %v3319
    %v3336 = vmul.f32 %v3319, %v3335
    %v3337 = vsub.f32 1.0, %v3336
    %v3338 = vmul.f32 %v3335, %v3337
    %v3339 = vadd.f32 %v3335, %v3338
    %vm3340 = vweird.f32 %v3319
    %vm3341 = vweird.f32 %v3335
    %vm3342 = vmor %vm3340, %vm3341
    %v3343 = vsel %vm3342, %v3335, %v3339
    %v3344 = vand.u32 2147483647, %v3319
    %vm3345 = vcmp.eq.f32.partialorder %v3344, 8.507059e+37
    %v3346 = vand.u32 %v3319, 2147483648
    %v3347 = vor.u32 1.1754944e-38, %v3346
    %v3348 = vsel %vm3345, %v3347, %v3343
    %v3349 = vmul.f32 1.0, %v3348
    %v3350 = vtanh.pop %v3311
    %v3351 = vmul.f32 %v3334, %v3058
    %3353 = vrot.lane.b32.xlu0 %v3350, 64
    %v3354 = vpop.permute.xlu0 %3353
    %v3356 = vmul.f32 %v3334, %v3354
    %3358 = vrot.lane.b32.xlu0 %v3356, 64
    %v3359 = vpop.permute.xlu0 %3358
    %v3361 = vadd.f32 %v3351, %v3359
    %v3362 = vtanh.pop %v3361
    %3364 = vrot.lane.b32.xlu0 %v3362, 64
    %v3365 = vpop.permute.xlu0 %3364
    %v3367 = vmul.f32 %v3349, %v3365
    %3369 = vrot.lane.b32.xlu0 %v3165, 64
    %v3370 = vpop.permute.xlu0 %3369
    %v3372 = vsel %vm1749, %v3064, %v3370
    %3373 = vmatpush.msra.mxu0 %v1713
    %3374 = vmatpush.msra.mxu0 %v1711
    %3375 = vmatpush.msra.mxu0 %v1709
    %3376 = vmatpush.msra.mxu0 %v1707
    %3377 = vmatpush.msra.mxu0 %v1705
    %3378 = vmatpush.msra.mxu0 %v1703
    %3379 = vmatpush.msra.mxu0 %v1701
    %3380 = vmatpush.msra.mxu0 %v1699
    %3381 = vmatpush.msra.mxu0 %v1697
    %3382 = vmatpush.msra.mxu0 %v1695
    %3383 = vmatpush.msra.mxu0 %v1693
    %3384 = vmatpush.msra.mxu0 %v1691
    %3385 = vmatpush.msra.mxu0 %v1689
    %3386 = vmatpush.msra.mxu0 %v1687
    %3387 = vmatpush.msra.mxu0 %v1685
    %3388 = vmatpush.msra.mxu0 %v1683
    %3389 = vmatmul.f32.gmra.mxu0 %v3372
    %v3390 = vpop.f32.mrf.mxu0
    %v3391 = vadd.f32 %v1954, %v3390
    %3392 = vdwg.mxu0
    %3393 = vmatpush.msra.mxu0 %v1714
    %3394 = vmatpush.msra.mxu0 %v1712
    %3395 = vmatpush.msra.mxu0 %v1710
    %3396 = vmatpush.msra.mxu0 %v1708
    %3397 = vmatpush.msra.mxu0 %v1706
    %3398 = vmatpush.msra.mxu0 %v1704
    %3399 = vmatpush.msra.mxu0 %v1702
    %3400 = vmatpush.msra.mxu0 %v1700
    %3401 = vmatpush.msra.mxu0 %v1698
    %3402 = vmatpush.msra.mxu0 %v1696
    %3403 = vmatpush.msra.mxu0 %v1694
    %3404 = vmatpush.msra.mxu0 %v1692
    %3405 = vmatpush.msra.mxu0 %v1690
    %3406 = vmatpush.msra.mxu0 %v1688
    %3407 = vmatpush.msra.mxu0 %v1686
    %3408 = vmatpush.msra.mxu0 %v1684
    %3409 = vmatmul.f32.gmra.mxu0 %v3372
    %v3410 = vpop.f32.mrf.mxu0
    %v3411 = vadd.f32 %v1955, %v3410
    %3412 = vdwg.mxu0
    %v3413 = vxor.u32 %v3391, 2147483648
    %v3414 = vxor.u32 %v3411, 2147483648
    %v3415 = vmul.f32 %v3413, 1.442695
    %v3416 = vpow.pop %v3415
    %v3417 = vmul.f32 %v3414, 1.442695
    %v3418 = vpow.pop %v3417
    %v3419 = vadd.f32 %v3416, 1.0
    %v3420 = vadd.f32 %v3418, 1.0
    %v3421 = vrcp.pop %v3419
    %v3422 = vmul.f32 %v3419, %v3421
    %v3423 = vsub.f32 1.0, %v3422
    %v3424 = vmul.f32 %v3421, %v3423
    %v3425 = vadd.f32 %v3421, %v3424
    %vm3426 = vweird.f32 %v3419
    %vm3427 = vweird.f32 %v3421
    %vm3428 = vmor %vm3426, %vm3427
    %v3429 = vsel %vm3428, %v3421, %v3425
    %v3430 = vand.u32 2147483647, %v3419
    %vm3431 = vcmp.eq.f32.partialorder %v3430, 8.507059e+37
    %v3432 = vand.u32 %v3419, 2147483648
    %v3433 = vor.u32 1.1754944e-38, %v3432
    %v3434 = vsel %vm3431, %v3433, %v3429
    %v3435 = vmul.f32 1.0, %v3434
    %v3436 = vrcp.pop %v3420
    %v3437 = vmul.f32 %v3420, %v3436
    %v3438 = vsub.f32 1.0, %v3437
    %v3439 = vmul.f32 %v3436, %v3438
    %v3440 = vadd.f32 %v3436, %v3439
    %vm3441 = vweird.f32 %v3420
    %vm3442 = vweird.f32 %v3436
    %vm3443 = vmor %vm3441, %vm3442
    %v3444 = vsel %vm3443, %v3436, %v3440
    %v3445 = vand.u32 2147483647, %v3420
    %vm3446 = vcmp.eq.f32.partialorder %v3445, 8.507059e+37
    %v3447 = vand.u32 %v3420, 2147483648
    %v3448 = vor.u32 1.1754944e-38, %v3447
    %v3449 = vsel %vm3446, %v3448, %v3444
    %v3450 = vmul.f32 1.0, %v3449
    %v3451 = vtanh.pop %v3411
    %v3452 = vmul.f32 %v3435, %v3159
    %3454 = vrot.lane.b32.xlu0 %v3451, 64
    %v3455 = vpop.permute.xlu0 %3454
    %v3457 = vmul.f32 %v3435, %v3455
    %3459 = vrot.lane.b32.xlu0 %v3457, 64
    %v3460 = vpop.permute.xlu0 %3459
    %v3462 = vadd.f32 %v3452, %v3460
    %v3463 = vtanh.pop %v3462
    %3465 = vrot.lane.b32.xlu0 %v3463, 64
    %v3466 = vpop.permute.xlu0 %3465
    %v3468 = vmul.f32 %v3450, %v3466
    %3470 = vrot.lane.b32.xlu0 %v3266, 64
    %v3471 = vpop.permute.xlu0 %3470
    %v3473 = vsel %vm1749, %v3165, %v3471
    %3474 = vmatpush.msra.mxu0 %v1746
    %3475 = vmatpush.msra.mxu0 %v1744
    %3476 = vmatpush.msra.mxu0 %v1742
    %3477 = vmatpush.msra.mxu0 %v1740
    %3478 = vmatpush.msra.mxu0 %v1738
    %3479 = vmatpush.msra.mxu0 %v1736
    %3480 = vmatpush.msra.mxu0 %v1734
    %3481 = vmatpush.msra.mxu0 %v1732
    %3482 = vmatpush.msra.mxu0 %v1730
    %3483 = vmatpush.msra.mxu0 %v1728
    %3484 = vmatpush.msra.mxu0 %v1726
    %3485 = vmatpush.msra.mxu0 %v1724
    %3486 = vmatpush.msra.mxu0 %v1722
    %3487 = vmatpush.msra.mxu0 %v1720
    %3488 = vmatpush.msra.mxu0 %v1718
    %3489 = vmatpush.msra.mxu0 %v1716
    %3490 = vmatmul.f32.gmra.mxu0 %v3473
    %v3491 = vpop.f32.mrf.mxu0
    %v3492 = vadd.f32 %v2258, %v3491
    %3493 = vdwg.mxu0
    %3494 = vmatpush.msra.mxu0 %v1747
    %3495 = vmatpush.msra.mxu0 %v1745
    %3496 = vmatpush.msra.mxu0 %v1743
    %3497 = vmatpush.msra.mxu0 %v1741
    %3498 = vmatpush.msra.mxu0 %v1739
    %3499 = vmatpush.msra.mxu0 %v1737
    %3500 = vmatpush.msra.mxu0 %v1735
    %3501 = vmatpush.msra.mxu0 %v1733
    %3502 = vmatpush.msra.mxu0 %v1731
    %3503 = vmatpush.msra.mxu0 %v1729
    %3504 = vmatpush.msra.mxu0 %v1727
    %3505 = vmatpush.msra.mxu0 %v1725
    %3506 = vmatpush.msra.mxu0 %v1723
    %3507 = vmatpush.msra.mxu0 %v1721
    %3508 = vmatpush.msra.mxu0 %v1719
    %3509 = vmatpush.msra.mxu0 %v1717
    %3510 = vmatmul.f32.gmra.mxu0 %v3473
    %v3511 = vpop.f32.mrf.mxu0
    %v3512 = vadd.f32 %v2259, %v3511
    %3513 = vdwg.mxu0
    %v3514 = vxor.u32 %v3492, 2147483648
    %v3515 = vxor.u32 %v3512, 2147483648
    %v3516 = vmul.f32 %v3514, 1.442695
    %v3517 = vpow.pop %v3516
    %v3518 = vmul.f32 %v3515, 1.442695
    %v3519 = vpow.pop %v3518
    %v3520 = vadd.f32 %v3517, 1.0
    %v3521 = vadd.f32 %v3519, 1.0
    %v3522 = vrcp.pop %v3520
    %v3523 = vmul.f32 %v3520, %v3522
    %v3524 = vsub.f32 1.0, %v3523
    %v3525 = vmul.f32 %v3522, %v3524
    %v3526 = vadd.f32 %v3522, %v3525
    %vm3527 = vweird.f32 %v3520
    %vm3528 = vweird.f32 %v3522
    %vm3529 = vmor %vm3527, %vm3528
    %v3530 = vsel %vm3529, %v3522, %v3526
    %v3531 = vand.u32 2147483647, %v3520
    %vm3532 = vcmp.eq.f32.partialorder %v3531, 8.507059e+37
    %v3533 = vand.u32 %v3520, 2147483648
    %v3534 = vor.u32 1.1754944e-38, %v3533
    %v3535 = vsel %vm3532, %v3534, %v3530
    %v3536 = vmul.f32 1.0, %v3535
    %v3537 = vrcp.pop %v3521
    %v3538 = vmul.f32 %v3521, %v3537
    %v3539 = vsub.f32 1.0, %v3538
    %v3540 = vmul.f32 %v3537, %v3539
    %v3541 = vadd.f32 %v3537, %v3540
    %vm3542 = vweird.f32 %v3521
    %vm3543 = vweird.f32 %v3537
    %vm3544 = vmor %vm3542, %vm3543
    %v3545 = vsel %vm3544, %v3537, %v3541
    %v3546 = vand.u32 2147483647, %v3521
    %vm3547 = vcmp.eq.f32.partialorder %v3546, 8.507059e+37
    %v3548 = vand.u32 %v3521, 2147483648
    %v3549 = vor.u32 1.1754944e-38, %v3548
    %v3550 = vsel %vm3547, %v3549, %v3545
    %v3551 = vmul.f32 1.0, %v3550
    %v3552 = vtanh.pop %v3512
    %v3553 = vmul.f32 %v3536, %v3260
    %3555 = vrot.lane.b32.xlu0 %v3552, 64
    %v3556 = vpop.permute.xlu0 %3555
    %v3558 = vmul.f32 %v3536, %v3556
    %3560 = vrot.lane.b32.xlu0 %v3558, 64
    %v3561 = vpop.permute.xlu0 %3560
    %v3563 = vadd.f32 %v3553, %v3561
    %v3564 = vtanh.pop %v3563
    %3566 = vrot.lane.b32.xlu0 %v3564, 64
    %v3567 = vpop.permute.xlu0 %3566
    %v3569 = vmul.f32 %v3551, %v3567
    %v3571 = vsel %vm1749, %v3367, 0
    %3573 = vmatpush.msra.mxu0 0.0
    %3574 = vmatpush.msra.mxu0 0.0
    %3575 = vmatpush.msra.mxu0 0.0
    %3576 = vmatpush.msra.mxu0 0.0
    %3577 = vmatpush.msra.mxu0 0.0
    %3578 = vmatpush.msra.mxu0 0.0
    %3579 = vmatpush.msra.mxu0 0.0
    %3580 = vmatpush.msra.mxu0 0.0
    %3581 = vmatpush.msra.mxu0 %v1681
    %3582 = vmatpush.msra.mxu0 %v1679
    %3583 = vmatpush.msra.mxu0 %v1677
    %3584 = vmatpush.msra.mxu0 %v1675
    %3585 = vmatpush.msra.mxu0 %v1673
    %3586 = vmatpush.msra.mxu0 %v1671
    %3587 = vmatpush.msra.mxu0 %v1669
    %3588 = vmatpush.msra.mxu0 %v1667
    %3589 = vmatmul.f32.gmra.mxu0 %v3571
    %v3590 = vpop.f32.mrf.mxu0
    %v3591 = vadd.f32 0.0, %v3590
    %3592 = vdwg.mxu0
    %3593 = vmatpush.msra.mxu0 0.0
    %3594 = vmatpush.msra.mxu0 0.0
    %3595 = vmatpush.msra.mxu0 0.0
    %3596 = vmatpush.msra.mxu0 0.0
    %3597 = vmatpush.msra.mxu0 0.0
    %3598 = vmatpush.msra.mxu0 0.0
    %3599 = vmatpush.msra.mxu0 0.0
    %3600 = vmatpush.msra.mxu0 0.0
    %3601 = vmatpush.msra.mxu0 %v1682
    %3602 = vmatpush.msra.mxu0 %v1680
    %3603 = vmatpush.msra.mxu0 %v1678
    %3604 = vmatpush.msra.mxu0 %v1676
    %3605 = vmatpush.msra.mxu0 %v1674
    %3606 = vmatpush.msra.mxu0 %v1672
    %3607 = vmatpush.msra.mxu0 %v1670
    %3608 = vmatpush.msra.mxu0 %v1668
    %3609 = vmatmul.f32.gmra.mxu0 %v3571
    %v3610 = vpop.f32.mrf.mxu0
    %v3611 = vadd.f32 0.0, %v3610
    %3612 = vdwg.mxu0
    %v3613 = vadd.f32 %v1404, %v3591
    %v3614 = vadd.f32 %v1665, %v3611
    %v3615 = vxor.u32 %v3613, 2147483648
    %v3616 = vxor.u32 %v3614, 2147483648
    %v3617 = vmul.f32 %v3615, 1.442695
    %v3618 = vpow.pop %v3617
    %v3619 = vmul.f32 %v3616, 1.442695
    %v3620 = vpow.pop %v3619
    %v3621 = vadd.f32 %v3618, 1.0
    %v3622 = vadd.f32 %v3620, 1.0
    %v3623 = vrcp.pop %v3621
    %v3624 = vmul.f32 %v3621, %v3623
    %v3625 = vsub.f32 1.0, %v3624
    %v3626 = vmul.f32 %v3623, %v3625
    %v3627 = vadd.f32 %v3623, %v3626
    %vm3628 = vweird.f32 %v3621
    %vm3629 = vweird.f32 %v3623
    %vm3630 = vmor %vm3628, %vm3629
    %v3631 = vsel %vm3630, %v3623, %v3627
    %v3632 = vand.u32 2147483647, %v3621
    %vm3633 = vcmp.eq.f32.partialorder %v3632, 8.507059e+37
    %v3634 = vand.u32 %v3621, 2147483648
    %v3635 = vor.u32 1.1754944e-38, %v3634
    %v3636 = vsel %vm3633, %v3635, %v3631
    %v3637 = vmul.f32 1.0, %v3636
    %v3638 = vrcp.pop %v3622
    %v3639 = vmul.f32 %v3622, %v3638
    %v3640 = vsub.f32 1.0, %v3639
    %v3641 = vmul.f32 %v3638, %v3640
    %v3642 = vadd.f32 %v3638, %v3641
    %vm3643 = vweird.f32 %v3622
    %vm3644 = vweird.f32 %v3638
    %vm3645 = vmor %vm3643, %vm3644
    %v3646 = vsel %vm3645, %v3638, %v3642
    %v3647 = vand.u32 2147483647, %v3622
    %vm3648 = vcmp.eq.f32.partialorder %v3647, 8.507059e+37
    %v3649 = vand.u32 %v3622, 2147483648
    %v3650 = vor.u32 1.1754944e-38, %v3649
    %v3651 = vsel %vm3648, %v3650, %v3646
    %v3652 = vmul.f32 1.0, %v3651
    %v3653 = vtanh.pop %v3614
    %v3654 = vmul.f32 %v3637, %v3361
    %3656 = vrot.lane.b32.xlu0 %v3653, 64
    %v3657 = vpop.permute.xlu0 %3656
    %v3659 = vmul.f32 %v3637, %v3657
    %3661 = vrot.lane.b32.xlu0 %v3659, 64
    %v3662 = vpop.permute.xlu0 %3661
    %v3664 = vadd.f32 %v3654, %v3662
    %v3665 = vtanh.pop %v3664
    %3667 = vrot.lane.b32.xlu0 %v3665, 64
    %v3668 = vpop.permute.xlu0 %3667
    %v3670 = vmul.f32 %v3652, %v3668
    %3672 = vrot.lane.b32.xlu0 %v3468, 64
    %v3673 = vpop.permute.xlu0 %3672
    %v3675 = vsel %vm1749, %v3367, %v3673
    %3676 = vmatpush.msra.mxu0 %v1713
    %3677 = vmatpush.msra.mxu0 %v1711
    %3678 = vmatpush.msra.mxu0 %v1709
    %3679 = vmatpush.msra.mxu0 %v1707
    %3680 = vmatpush.msra.mxu0 %v1705
    %3681 = vmatpush.msra.mxu0 %v1703
    %3682 = vmatpush.msra.mxu0 %v1701
    %3683 = vmatpush.msra.mxu0 %v1699
    %3684 = vmatpush.msra.mxu0 %v1697
    %3685 = vmatpush.msra.mxu0 %v1695
    %3686 = vmatpush.msra.mxu0 %v1693
    %3687 = vmatpush.msra.mxu0 %v1691
    %3688 = vmatpush.msra.mxu0 %v1689
    %3689 = vmatpush.msra.mxu0 %v1687
    %3690 = vmatpush.msra.mxu0 %v1685
    %3691 = vmatpush.msra.mxu0 %v1683
    %3692 = vmatmul.f32.gmra.mxu0 %v3675
    %v3693 = vpop.f32.mrf.mxu0
    %v3694 = vadd.f32 %v1954, %v3693
    %3695 = vdwg.mxu0
    %3696 = vmatpush.msra.mxu0 %v1714
    %3697 = vmatpush.msra.mxu0 %v1712
    %3698 = vmatpush.msra.mxu0 %v1710
    %3699 = vmatpush.msra.mxu0 %v1708
    %3700 = vmatpush.msra.mxu0 %v1706
    %3701 = vmatpush.msra.mxu0 %v1704
    %3702 = vmatpush.msra.mxu0 %v1702
    %3703 = vmatpush.msra.mxu0 %v1700
    %3704 = vmatpush.msra.mxu0 %v1698
    %3705 = vmatpush.msra.mxu0 %v1696
    %3706 = vmatpush.msra.mxu0 %v1694
    %3707 = vmatpush.msra.mxu0 %v1692
    %3708 = vmatpush.msra.mxu0 %v1690
    %3709 = vmatpush.msra.mxu0 %v1688
    %3710 = vmatpush.msra.mxu0 %v1686
    %3711 = vmatpush.msra.mxu0 %v1684
    %3712 = vmatmul.f32.gmra.mxu0 %v3675
    %v3713 = vpop.f32.mrf.mxu0
    %v3714 = vadd.f32 %v1955, %v3713
    %3715 = vdwg.mxu0
    %v3716 = vxor.u32 %v3694, 2147483648
    %v3717 = vxor.u32 %v3714, 2147483648
    %v3718 = vmul.f32 %v3716, 1.442695
    %v3719 = vpow.pop %v3718
    %v3720 = vmul.f32 %v3717, 1.442695
    %v3721 = vpow.pop %v3720
    %v3722 = vadd.f32 %v3719, 1.0
    %v3723 = vadd.f32 %v3721, 1.0
    %v3724 = vrcp.pop %v3722
    %v3725 = vmul.f32 %v3722, %v3724
    %v3726 = vsub.f32 1.0, %v3725
    %v3727 = vmul.f32 %v3724, %v3726
    %v3728 = vadd.f32 %v3724, %v3727
    %vm3729 = vweird.f32 %v3722
    %vm3730 = vweird.f32 %v3724
    %vm3731 = vmor %vm3729, %vm3730
    %v3732 = vsel %vm3731, %v3724, %v3728
    %v3733 = vand.u32 2147483647, %v3722
    %vm3734 = vcmp.eq.f32.partialorder %v3733, 8.507059e+37
    %v3735 = vand.u32 %v3722, 2147483648
    %v3736 = vor.u32 1.1754944e-38, %v3735
    %v3737 = vsel %vm3734, %v3736, %v3732
    %v3738 = vmul.f32 1.0, %v3737
    %v3739 = vrcp.pop %v3723
    %v3740 = vmul.f32 %v3723, %v3739
    %v3741 = vsub.f32 1.0, %v3740
    %v3742 = vmul.f32 %v3739, %v3741
    %v3743 = vadd.f32 %v3739, %v3742
    %vm3744 = vweird.f32 %v3723
    %vm3745 = vweird.f32 %v3739
    %vm3746 = vmor %vm3744, %vm3745
    %v3747 = vsel %vm3746, %v3739, %v3743
    %v3748 = vand.u32 2147483647, %v3723
    %vm3749 = vcmp.eq.f32.partialorder %v3748, 8.507059e+37
    %v3750 = vand.u32 %v3723, 2147483648
    %v3751 = vor.u32 1.1754944e-38, %v3750
    %v3752 = vsel %vm3749, %v3751, %v3747
    %v3753 = vmul.f32 1.0, %v3752
    %v3754 = vtanh.pop %v3714
    %v3755 = vmul.f32 %v3738, %v3462
    %3757 = vrot.lane.b32.xlu0 %v3754, 64
    %v3758 = vpop.permute.xlu0 %3757
    %v3760 = vmul.f32 %v3738, %v3758
    %3762 = vrot.lane.b32.xlu0 %v3760, 64
    %v3763 = vpop.permute.xlu0 %3762
    %v3765 = vadd.f32 %v3755, %v3763
    %v3766 = vtanh.pop %v3765
    %3768 = vrot.lane.b32.xlu0 %v3766, 64
    %v3769 = vpop.permute.xlu0 %3768
    %v3771 = vmul.f32 %v3753, %v3769
    %3773 = vrot.lane.b32.xlu0 %v3569, 64
    %v3774 = vpop.permute.xlu0 %3773
    %v3776 = vsel %vm1749, %v3468, %v3774
    %3777 = vmatpush.msra.mxu0 %v1746
    %3778 = vmatpush.msra.mxu0 %v1744
    %3779 = vmatpush.msra.mxu0 %v1742
    %3780 = vmatpush.msra.mxu0 %v1740
    %3781 = vmatpush.msra.mxu0 %v1738
    %3782 = vmatpush.msra.mxu0 %v1736
    %3783 = vmatpush.msra.mxu0 %v1734
    %3784 = vmatpush.msra.mxu0 %v1732
    %3785 = vmatpush.msra.mxu0 %v1730
    %3786 = vmatpush.msra.mxu0 %v1728
    %3787 = vmatpush.msra.mxu0 %v1726
    %3788 = vmatpush.msra.mxu0 %v1724
    %3789 = vmatpush.msra.mxu0 %v1722
    %3790 = vmatpush.msra.mxu0 %v1720
    %3791 = vmatpush.msra.mxu0 %v1718
    %3792 = vmatpush.msra.mxu0 %v1716
    %3793 = vmatmul.f32.gmra.mxu0 %v3776
    %v3794 = vpop.f32.mrf.mxu0
    %v3795 = vadd.f32 %v2258, %v3794
    %3796 = vdwg.mxu0
    %3797 = vmatpush.msra.mxu0 %v1747
    %3798 = vmatpush.msra.mxu0 %v1745
    %3799 = vmatpush.msra.mxu0 %v1743
    %3800 = vmatpush.msra.mxu0 %v1741
    %3801 = vmatpush.msra.mxu0 %v1739
    %3802 = vmatpush.msra.mxu0 %v1737
    %3803 = vmatpush.msra.mxu0 %v1735
    %3804 = vmatpush.msra.mxu0 %v1733
    %3805 = vmatpush.msra.mxu0 %v1731
    %3806 = vmatpush.msra.mxu0 %v1729
    %3807 = vmatpush.msra.mxu0 %v1727
    %3808 = vmatpush.msra.mxu0 %v1725
    %3809 = vmatpush.msra.mxu0 %v1723
    %3810 = vmatpush.msra.mxu0 %v1721
    %3811 = vmatpush.msra.mxu0 %v1719
    %3812 = vmatpush.msra.mxu0 %v1717
    %3813 = vmatmul.f32.gmra.mxu0 %v3776
    %v3814 = vpop.f32.mrf.mxu0
    %v3815 = vadd.f32 %v2259, %v3814
    %3816 = vdwg.mxu0
    %v3817 = vxor.u32 %v3795, 2147483648
    %v3818 = vxor.u32 %v3815, 2147483648
    %v3819 = vmul.f32 %v3817, 1.442695
    %v3820 = vpow.pop %v3819
    %v3821 = vmul.f32 %v3818, 1.442695
    %v3822 = vpow.pop %v3821
    %v3823 = vadd.f32 %v3820, 1.0
    %v3824 = vadd.f32 %v3822, 1.0
    %v3825 = vrcp.pop %v3823
    %v3826 = vmul.f32 %v3823, %v3825
    %v3827 = vsub.f32 1.0, %v3826
    %v3828 = vmul.f32 %v3825, %v3827
    %v3829 = vadd.f32 %v3825, %v3828
    %vm3830 = vweird.f32 %v3823
    %vm3831 = vweird.f32 %v3825
    %vm3832 = vmor %vm3830, %vm3831
    %v3833 = vsel %vm3832, %v3825, %v3829
    %v3834 = vand.u32 2147483647, %v3823
    %vm3835 = vcmp.eq.f32.partialorder %v3834, 8.507059e+37
    %v3836 = vand.u32 %v3823, 2147483648
    %v3837 = vor.u32 1.1754944e-38, %v3836
    %v3838 = vsel %vm3835, %v3837, %v3833
    %v3839 = vmul.f32 1.0, %v3838
    %v3840 = vrcp.pop %v3824
    %v3841 = vmul.f32 %v3824, %v3840
    %v3842 = vsub.f32 1.0, %v3841
    %v3843 = vmul.f32 %v3840, %v3842
    %v3844 = vadd.f32 %v3840, %v3843
    %vm3845 = vweird.f32 %v3824
    %vm3846 = vweird.f32 %v3840
    %vm3847 = vmor %vm3845, %vm3846
    %v3848 = vsel %vm3847, %v3840, %v3844
    %v3849 = vand.u32 2147483647, %v3824
    %vm3850 = vcmp.eq.f32.partialorder %v3849, 8.507059e+37
    %v3851 = vand.u32 %v3824, 2147483648
    %v3852 = vor.u32 1.1754944e-38, %v3851
    %v3853 = vsel %vm3850, %v3852, %v3848
    %v3854 = vmul.f32 1.0, %v3853
    %v3855 = vtanh.pop %v3815
    %v3856 = vmul.f32 %v3839, %v3563
    %3858 = vrot.lane.b32.xlu0 %v3855, 64
    %v3859 = vpop.permute.xlu0 %3858
    %v3861 = vmul.f32 %v3839, %v3859
    %3863 = vrot.lane.b32.xlu0 %v3861, 64
    %v3864 = vpop.permute.xlu0 %3863
    %v3866 = vadd.f32 %v3856, %v3864
    %v3867 = vtanh.pop %v3866
    %3869 = vrot.lane.b32.xlu0 %v3867, 64
    %v3870 = vpop.permute.xlu0 %3869
    %v3872 = vmul.f32 %v3854, %v3870
    %3874 = vrot.lane.b32.xlu0 %v3771, 64
    %v3875 = vpop.permute.xlu0 %3874
    %v3877 = vsel %vm1749, %v3670, %v3875
    %3878 = vmatpush.msra.mxu0 %v1713
    %3879 = vmatpush.msra.mxu0 %v1711
    %3880 = vmatpush.msra.mxu0 %v1709
    %3881 = vmatpush.msra.mxu0 %v1707
    %3882 = vmatpush.msra.mxu0 %v1705
    %3883 = vmatpush.msra.mxu0 %v1703
    %3884 = vmatpush.msra.mxu0 %v1701
    %3885 = vmatpush.msra.mxu0 %v1699
    %3886 = vmatpush.msra.mxu0 %v1697
    %3887 = vmatpush.msra.mxu0 %v1695
    %3888 = vmatpush.msra.mxu0 %v1693
    %3889 = vmatpush.msra.mxu0 %v1691
    %3890 = vmatpush.msra.mxu0 %v1689
    %3891 = vmatpush.msra.mxu0 %v1687
    %3892 = vmatpush.msra.mxu0 %v1685
    %3893 = vmatpush.msra.mxu0 %v1683
    %3894 = vmatmul.f32.gmra.mxu0 %v3877
    %v3895 = vpop.f32.mrf.mxu0
    %v3896 = vadd.f32 %v1954, %v3895
    %3897 = vdwg.mxu0
    %3898 = vmatpush.msra.mxu0 %v1714
    %3899 = vmatpush.msra.mxu0 %v1712
    %3900 = vmatpush.msra.mxu0 %v1710
    %3901 = vmatpush.msra.mxu0 %v1708
    %3902 = vmatpush.msra.mxu0 %v1706
    %3903 = vmatpush.msra.mxu0 %v1704
    %3904 = vmatpush.msra.mxu0 %v1702
    %3905 = vmatpush.msra.mxu0 %v1700
    %3906 = vmatpush.msra.mxu0 %v1698
    %3907 = vmatpush.msra.mxu0 %v1696
    %3908 = vmatpush.msra.mxu0 %v1694
    %3909 = vmatpush.msra.mxu0 %v1692
    %3910 = vmatpush.msra.mxu0 %v1690
    %3911 = vmatpush.msra.mxu0 %v1688
    %3912 = vmatpush.msra.mxu0 %v1686
    %3913 = vmatpush.msra.mxu0 %v1684
    %3914 = vmatmul.f32.gmra.mxu0 %v3877
    %v3915 = vpop.f32.mrf.mxu0
    %v3916 = vadd.f32 %v1955, %v3915
    %3917 = vdwg.mxu0
    %v3918 = vxor.u32 %v3896, 2147483648
    %v3919 = vxor.u32 %v3916, 2147483648
    %v3920 = vmul.f32 %v3918, 1.442695
    %v3921 = vpow.pop %v3920
    %v3922 = vmul.f32 %v3919, 1.442695
    %v3923 = vpow.pop %v3922
    %v3924 = vadd.f32 %v3921, 1.0
    %v3925 = vadd.f32 %v3923, 1.0
    %v3926 = vrcp.pop %v3924
    %v3927 = vmul.f32 %v3924, %v3926
    %v3928 = vsub.f32 1.0, %v3927
    %v3929 = vmul.f32 %v3926, %v3928
    %v3930 = vadd.f32 %v3926, %v3929
    %vm3931 = vweird.f32 %v3924
    %vm3932 = vweird.f32 %v3926
    %vm3933 = vmor %vm3931, %vm3932
    %v3934 = vsel %vm3933, %v3926, %v3930
    %v3935 = vand.u32 2147483647, %v3924
    %vm3936 = vcmp.eq.f32.partialorder %v3935, 8.507059e+37
    %v3937 = vand.u32 %v3924, 2147483648
    %v3938 = vor.u32 1.1754944e-38, %v3937
    %v3939 = vsel %vm3936, %v3938, %v3934
    %v3940 = vmul.f32 1.0, %v3939
    %v3941 = vrcp.pop %v3925
    %v3942 = vmul.f32 %v3925, %v3941
    %v3943 = vsub.f32 1.0, %v3942
    %v3944 = vmul.f32 %v3941, %v3943
    %v3945 = vadd.f32 %v3941, %v3944
    %vm3946 = vweird.f32 %v3925
    %vm3947 = vweird.f32 %v3941
    %vm3948 = vmor %vm3946, %vm3947
    %v3949 = vsel %vm3948, %v3941, %v3945
    %v3950 = vand.u32 2147483647, %v3925
    %vm3951 = vcmp.eq.f32.partialorder %v3950, 8.507059e+37
    %v3952 = vand.u32 %v3925, 2147483648
    %v3953 = vor.u32 1.1754944e-38, %v3952
    %v3954 = vsel %vm3951, %v3953, %v3949
    %v3955 = vmul.f32 1.0, %v3954
    %v3956 = vtanh.pop %v3916
    %v3957 = vmul.f32 %v3940, %v3765
    %3959 = vrot.lane.b32.xlu0 %v3956, 64
    %v3960 = vpop.permute.xlu0 %3959
    %v3962 = vmul.f32 %v3940, %v3960
    %3964 = vrot.lane.b32.xlu0 %v3962, 64
    %v3965 = vpop.permute.xlu0 %3964
    %v3967 = vadd.f32 %v3957, %v3965
    %v3968 = vtanh.pop %v3967
    %3970 = vrot.lane.b32.xlu0 %v3968, 64
    %v3971 = vpop.permute.xlu0 %3970
    %v3973 = vmul.f32 %v3955, %v3971
    %3975 = vrot.lane.b32.xlu0 %v3872, 64
    %v3976 = vpop.permute.xlu0 %3975
    %v3978 = vsel %vm1749, %v3771, %v3976
    %3979 = vmatpush.msra.mxu0 %v1746
    %3980 = vmatpush.msra.mxu0 %v1744
    %3981 = vmatpush.msra.mxu0 %v1742
    %3982 = vmatpush.msra.mxu0 %v1740
    %3983 = vmatpush.msra.mxu0 %v1738
    %3984 = vmatpush.msra.mxu0 %v1736
    %3985 = vmatpush.msra.mxu0 %v1734
    %3986 = vmatpush.msra.mxu0 %v1732
    %3987 = vmatpush.msra.mxu0 %v1730
    %3988 = vmatpush.msra.mxu0 %v1728
    %3989 = vmatpush.msra.mxu0 %v1726
    %3990 = vmatpush.msra.mxu0 %v1724
    %3991 = vmatpush.msra.mxu0 %v1722
    %3992 = vmatpush.msra.mxu0 %v1720
    %3993 = vmatpush.msra.mxu0 %v1718
    %3994 = vmatpush.msra.mxu0 %v1716
    %3995 = vmatmul.f32.gmra.mxu0 %v3978
    %v3996 = vpop.f32.mrf.mxu0
    %v3997 = vadd.f32 %v2258, %v3996
    %3998 = vdwg.mxu0
    %3999 = vmatpush.msra.mxu0 %v1747
    %4000 = vmatpush.msra.mxu0 %v1745
    %4001 = vmatpush.msra.mxu0 %v1743
    %4002 = vmatpush.msra.mxu0 %v1741
    %4003 = vmatpush.msra.mxu0 %v1739
    %4004 = vmatpush.msra.mxu0 %v1737
    %4005 = vmatpush.msra.mxu0 %v1735
    %4006 = vmatpush.msra.mxu0 %v1733
    %4007 = vmatpush.msra.mxu0 %v1731
    %4008 = vmatpush.msra.mxu0 %v1729
    %4009 = vmatpush.msra.mxu0 %v1727
    %4010 = vmatpush.msra.mxu0 %v1725
    %4011 = vmatpush.msra.mxu0 %v1723
    %4012 = vmatpush.msra.mxu0 %v1721
    %4013 = vmatpush.msra.mxu0 %v1719
    %4014 = vmatpush.msra.mxu0 %v1717
    %4015 = vmatmul.f32.gmra.mxu0 %v3978
    %v4016 = vpop.f32.mrf.mxu0
    %v4017 = vadd.f32 %v2259, %v4016
    %4018 = vdwg.mxu0
    %v4019 = vxor.u32 %v3997, 2147483648
    %v4020 = vxor.u32 %v4017, 2147483648
    %v4021 = vmul.f32 %v4019, 1.442695
    %v4022 = vpow.pop %v4021
    %v4023 = vmul.f32 %v4020, 1.442695
    %v4024 = vpow.pop %v4023
    %v4025 = vadd.f32 %v4022, 1.0
    %v4026 = vadd.f32 %v4024, 1.0
    %v4027 = vrcp.pop %v4025
    %v4028 = vmul.f32 %v4025, %v4027
    %v4029 = vsub.f32 1.0, %v4028
    %v4030 = vmul.f32 %v4027, %v4029
    %v4031 = vadd.f32 %v4027, %v4030
    %vm4032 = vweird.f32 %v4025
    %vm4033 = vweird.f32 %v4027
    %vm4034 = vmor %vm4032, %vm4033
    %v4035 = vsel %vm4034, %v4027, %v4031
    %v4036 = vand.u32 2147483647, %v4025
    %vm4037 = vcmp.eq.f32.partialorder %v4036, 8.507059e+37
    %v4038 = vand.u32 %v4025, 2147483648
    %v4039 = vor.u32 1.1754944e-38, %v4038
    %v4040 = vsel %vm4037, %v4039, %v4035
    %v4041 = vmul.f32 1.0, %v4040
    %v4042 = vrcp.pop %v4026
    %v4043 = vmul.f32 %v4026, %v4042
    %v4044 = vsub.f32 1.0, %v4043
    %v4045 = vmul.f32 %v4042, %v4044
    %v4046 = vadd.f32 %v4042, %v4045
    %vm4047 = vweird.f32 %v4026
    %vm4048 = vweird.f32 %v4042
    %vm4049 = vmor %vm4047, %vm4048
    %v4050 = vsel %vm4049, %v4042, %v4046
    %v4051 = vand.u32 2147483647, %v4026
    %vm4052 = vcmp.eq.f32.partialorder %v4051, 8.507059e+37
    %v4053 = vand.u32 %v4026, 2147483648
    %v4054 = vor.u32 1.1754944e-38, %v4053
    %v4055 = vsel %vm4052, %v4054, %v4050
    %v4056 = vmul.f32 1.0, %v4055
    %v4057 = vtanh.pop %v4017
    %v4058 = vmul.f32 %v4041, %v3866
    %4060 = vrot.lane.b32.xlu0 %v4057, 64
    %v4061 = vpop.permute.xlu0 %4060
    %v4063 = vmul.f32 %v4041, %v4061
    %4065 = vrot.lane.b32.xlu0 %v4063, 64
    %v4066 = vpop.permute.xlu0 %4065
    %v4068 = vadd.f32 %v4058, %v4066
    %v4069 = vtanh.pop %v4068
    %4071 = vrot.lane.b32.xlu0 %v4069, 64
    %v4072 = vpop.permute.xlu0 %4071
    %v4074 = vmul.f32 %v4056, %v4072
    %4076 = vrot.lane.b32.xlu0 %v4074, 64
    %v4077 = vpop.permute.xlu0 %4076
    %v4079 = vsel %vm1749, %v3973, %v4077
    %4080 = vmatpush.msra.mxu0 %v1746
    %4081 = vmatpush.msra.mxu0 %v1744
    %4082 = vmatpush.msra.mxu0 %v1742
    %4083 = vmatpush.msra.mxu0 %v1740
    %4084 = vmatpush.msra.mxu0 %v1738
    %4085 = vmatpush.msra.mxu0 %v1736
    %4086 = vmatpush.msra.mxu0 %v1734
    %4087 = vmatpush.msra.mxu0 %v1732
    %4088 = vmatpush.msra.mxu0 %v1730
    %4089 = vmatpush.msra.mxu0 %v1728
    %4090 = vmatpush.msra.mxu0 %v1726
    %4091 = vmatpush.msra.mxu0 %v1724
    %4092 = vmatpush.msra.mxu0 %v1722
    %4093 = vmatpush.msra.mxu0 %v1720
    %4094 = vmatpush.msra.mxu0 %v1718
    %4095 = vmatpush.msra.mxu0 %v1716
    %4096 = vmatmul.f32.gmra.mxu0 %v4079
    %v4097 = vpop.f32.mrf.mxu0
    %v4098 = vadd.f32 %v2258, %v4097
    %4099 = vdwg.mxu0
    %4100 = vmatpush.msra.mxu0 %v1747
    %4101 = vmatpush.msra.mxu0 %v1745
    %4102 = vmatpush.msra.mxu0 %v1743
    %4103 = vmatpush.msra.mxu0 %v1741
    %4104 = vmatpush.msra.mxu0 %v1739
    %4105 = vmatpush.msra.mxu0 %v1737
    %4106 = vmatpush.msra.mxu0 %v1735
    %4107 = vmatpush.msra.mxu0 %v1733
    %4108 = vmatpush.msra.mxu0 %v1731
    %4109 = vmatpush.msra.mxu0 %v1729
    %4110 = vmatpush.msra.mxu0 %v1727
    %4111 = vmatpush.msra.mxu0 %v1725
    %4112 = vmatpush.msra.mxu0 %v1723
    %4113 = vmatpush.msra.mxu0 %v1721
    %4114 = vmatpush.msra.mxu0 %v1719
    %4115 = vmatpush.msra.mxu0 %v1717
    %4116 = vmatmul.f32.gmra.mxu0 %v4079
    %v4117 = vpop.f32.mrf.mxu0
    %v4118 = vadd.f32 %v2259, %v4117
    %4119 = vdwg.mxu0
    %v4120 = vxor.u32 %v4098, 2147483648
    %v4121 = vxor.u32 %v4118, 2147483648
    %v4122 = vmul.f32 %v4120, 1.442695
    %v4123 = vpow.pop %v4122
    %v4124 = vmul.f32 %v4121, 1.442695
    %v4125 = vpow.pop %v4124
    %v4126 = vadd.f32 %v4123, 1.0
    %v4127 = vadd.f32 %v4125, 1.0
    %v4128 = vrcp.pop %v4126
    %v4129 = vmul.f32 %v4126, %v4128
    %v4130 = vsub.f32 1.0, %v4129
    %v4131 = vmul.f32 %v4128, %v4130
    %v4132 = vadd.f32 %v4128, %v4131
    %vm4133 = vweird.f32 %v4126
    %vm4134 = vweird.f32 %v4128
    %vm4135 = vmor %vm4133, %vm4134
    %v4136 = vsel %vm4135, %v4128, %v4132
    %v4137 = vand.u32 2147483647, %v4126
    %vm4138 = vcmp.eq.f32.partialorder %v4137, 8.507059e+37
    %v4139 = vand.u32 %v4126, 2147483648
    %v4140 = vor.u32 1.1754944e-38, %v4139
    %v4141 = vsel %vm4138, %v4140, %v4136
    %v4142 = vmul.f32 1.0, %v4141
    %v4143 = vrcp.pop %v4127
    %v4144 = vmul.f32 %v4127, %v4143
    %v4145 = vsub.f32 1.0, %v4144
    %v4146 = vmul.f32 %v4143, %v4145
    %v4147 = vadd.f32 %v4143, %v4146
    %vm4148 = vweird.f32 %v4127
    %vm4149 = vweird.f32 %v4143
    %vm4150 = vmor %vm4148, %vm4149
    %v4151 = vsel %vm4150, %v4143, %v4147
    %v4152 = vand.u32 2147483647, %v4127
    %vm4153 = vcmp.eq.f32.partialorder %v4152, 8.507059e+37
    %v4154 = vand.u32 %v4127, 2147483648
    %v4155 = vor.u32 1.1754944e-38, %v4154
    %v4156 = vsel %vm4153, %v4155, %v4151
    %v4157 = vmul.f32 1.0, %v4156
    %v4158 = vtanh.pop %v4118
    %v4159 = vmul.f32 %v4142, %v4068
    %4161 = vrot.lane.b32.xlu0 %v4158, 64
    %v4162 = vpop.permute.xlu0 %4161
    %v4164 = vmul.f32 %v4142, %v4162
    %4166 = vrot.lane.b32.xlu0 %v4164, 64
    %v4167 = vpop.permute.xlu0 %4166
    %v4169 = vadd.f32 %v4159, %v4167
    %v4170 = vtanh.pop %v4169
    %4172 = vrot.lane.b32.xlu0 %v4170, 64
    %v4173 = vpop.permute.xlu0 %4172
    %v4175 = vmul.f32 %v4157, %v4173
    %v4176 = vld [vmem:[%s8] sm:$0xff]
    %v4177 = vld [vmem:[%s8 + $0x8] sm:$0xff]
    %v4178 = vld [vmem:[%s8 + $0x10] sm:$0xff]
    %v4179 = vld [vmem:[%s8 + $0x18] sm:$0xff]
    %v4180 = vld [vmem:[%s8 + $0x20] sm:$0xff]
    %v4181 = vld [vmem:[%s8 + $0x28] sm:$0xff]
    %v4182 = vld [vmem:[%s8 + $0x30] sm:$0xff]
    %v4183 = vld [vmem:[%s8 + $0x38] sm:$0xff]
    %v4184 = vld [vmem:[%s9] sm:$0x1]
    %v4186 = vperm.slane %v4184, 0
    %v4189 = vsel %vm1749, %v4175, 0
    %4191 = vmatpush.msra.mxu0 0.0
    %4192 = vmatpush.msra.mxu0 0.0
    %4193 = vmatpush.msra.mxu0 0.0
    %4194 = vmatpush.msra.mxu0 0.0
    %4195 = vmatpush.msra.mxu0 0.0
    %4196 = vmatpush.msra.mxu0 0.0
    %4197 = vmatpush.msra.mxu0 0.0
    %4198 = vmatpush.msra.mxu0 0.0
    %4199 = vmatpush.msra.mxu0 %v4183
    %4200 = vmatpush.msra.mxu0 %v4182
    %4201 = vmatpush.msra.mxu0 %v4181
    %4202 = vmatpush.msra.mxu0 %v4180
    %4203 = vmatpush.msra.mxu0 %v4179
    %4204 = vmatpush.msra.mxu0 %v4178
    %4205 = vmatpush.msra.mxu0 %v4177
    %4206 = vmatpush.msra.mxu0 %v4176
    %4207 = vmatmul.f32.gmra.mxu0 %v4189
    %v4208 = vpop.f32.mrf.mxu0
    %v4209 = vadd.f32 %v4186, %v4208
    %4210 = vdwg.mxu0
    %vm4211 = vcmask 39936
    %4212 = vst.msk [vmem:[%s10] sm:$0xff] %vm4211, %v4209
    // Predicated region
    $region46: #{lstm_forward.1} parent=1 // pred_check
      _
    $region47: #{lstm_forward.1} parent=1 // pred_check_branch
      %4214 = sbr.rel (0) target = $region49
    $region48: #{lstm_forward.1} parent=1 // pred_region
      _
    $region49: #{lstm_forward.1} parent=1 // pred_fallthru
      _
    // Predicated region
    $region50: #{lstm_forward.1} parent=1 // pred_check
      _
    $region51: #{lstm_forward.1} parent=1 // pred_check_branch
      %4216 = sbr.rel (0) target = $region53
    $region52: #{lstm_forward.1} parent=1 // pred_region
      _
    $region53: #{lstm_forward.1} parent=1 // pred_fallthru
      _
    %4217 = vsyncpa [#allocation3], 1

</llo_original>
